<compile_context>
chip_gen: v7x
topology: tpu7x:2x2x1
jax: 0.10.0
libtpu: 0.0.40
codegen_flags: <defaults>
</compile_context>

<pallas_src>
import functools

import jax
import jax.numpy as jnp
import numpy as np
from jax.experimental import pallas as pl
from jax.experimental.pallas import tpu as pltpu

LANE = 128
SUBLANE = 8
_TARGET_ROWS = 2048  # flattened (batch*seq) rows per grid step


def _round_up(x, m):
    return (x + m - 1) // m * m


def _target_encoder_kernel(tok_ref, emb_ref,
                           w1_ref, b1_ref, w2_ref, b2_ref, w3_ref, b3_ref,
                           o_ref, buf_a, buf_b, *, seq_len_padded, valid_len):
    """One batch tile: one-hot embedding, 3x (per-tap conv + relu), masked max-pool."""
    rows = tok_ref.shape[0]              # TB * LP flattened (batch, position) rows
    lp = seq_len_padded
    tb = rows // lp
    pad_rows = buf_a.shape[0] - rows     # zeroed tail so taps can read past the end
    vp, ep = emb_ref.shape
    f1p = w1_ref.shape[2]
    f2p = w2_ref.shape[2]
    f3p = w3_ref.shape[2]

    # Zero the (k-1)-row overrun region once per step.  Rows that read across a
    # batch boundary / into this tail only ever feed positions >= valid_len,
    # which are masked before the max-pool.
    buf_a[pl.ds(rows, pad_rows), :] = jnp.zeros((pad_rows, buf_a.shape[1]), buf_a.dtype)
    buf_b[pl.ds(rows, pad_rows), :] = jnp.zeros((pad_rows, buf_b.shape[1]), buf_b.dtype)

    # ---- Embedding: single-shot exact one-hot @ f32 table on the MXU ----------
    vocab_ids = jax.lax.broadcasted_iota(jnp.int32, (rows, vp), 1)
    onehot = (tok_ref[...] == vocab_ids).astype(jnp.float32)          # (rows, Vp)
    emb = jnp.dot(onehot, emb_ref[...], preferred_element_type=jnp.float32)
    buf_a[pl.ds(0, rows), pl.ds(0, ep)] = emb                         # (rows, Ep) f32

    # ---- Valid conv1d + ReLU: k per-tap matmuls, f32 accumulation --------------
    def conv_relu(src_ref, w_ref, b_ref):
        k, cin, _ = w_ref.shape
        acc = None
        for j in range(k):                                            # static, small k
            tap = src_ref[pl.ds(j, rows), pl.ds(0, cin)].astype(jnp.bfloat16)
            contrib = jnp.dot(tap, w_ref[j], preferred_element_type=jnp.float32)
            acc = contrib if acc is None else acc + contrib
        return jnp.maximum(acc + b_ref[...], 0.0)                     # f32 epilogue (VPU)

    h1 = conv_relu(buf_a, w1_ref, b1_ref)                             # (rows, F1p) f32
    buf_b[pl.ds(0, rows), pl.ds(0, f1p)] = h1
    h2 = conv_relu(buf_b, w2_ref, b2_ref)                             # (rows, F2p) f32
    buf_a[pl.ds(0, rows), pl.ds(0, f2p)] = h2
    h3 = conv_relu(buf_a, w3_ref, b3_ref)                             # (rows, F3p) f32

    # ---- AdaptiveMaxPool1d(1): max over the *valid* conv3 output positions -----
    h3 = h3.reshape(tb, lp, f3p)
    pos = jax.lax.broadcasted_iota(jnp.int32, (tb, lp, f3p), 1)
    h3 = jnp.where(pos < valid_len, h3, 0.0)    # ReLU => >=0, so 0-mask == -inf-mask
    o_ref[...] = jnp.max(h3, axis=1)            # (TB, F3p), lane-dense


def target_encoder_forward(tokens, params, kernel_sizes, *, batch_tile=None):
    """tokens: (B, L) int. Returns (B, 3*filter_num) float32."""
    k1, k2, k3 = kernel_sizes
    emb_table = params["embedding"]                    # (vocab, E) f32
    w1, b1 = params["w1"], params["b1"]                # PyTorch layout (Cout, Cin, K), (Cout,)
    w2, b2 = params["w2"], params["b2"]
    w3, b3 = params["w3"], params["b3"]

    B, L = tokens.shape
    vocab, E = emb_table.shape
    F1, F2, F3 = w1.shape[0], w2.shape[0], w3.shape[0]

    valid_len = L - (k1 - 1) - (k2 - 1) - (k3 - 1)     # conv3 output length
    assert valid_len >= 1, "sequence too short for the conv stack"

    # Padded sizes: channels lane-dense (x128), sequence sublane-aligned (x8).
    LP = _round_up(L, SUBLANE)
    Vp, Ep = _round_up(vocab, LANE), _round_up(E, LANE)
    F1p, F2p, F3p = (_round_up(f, LANE) for f in (F1, F2, F3))
    Cmax = max(Ep, F1p, F2p, F3p)
    PAD = max(SUBLANE, _round_up(max(k1, k2, k3) - 1, SUBLANE))

    # Batch tile: ~_TARGET_ROWS flattened rows per grid step (amortizes per-step
    # overhead for short sequences; stays at 8 for long sequences / v7x VMEM).
    if batch_tile is None:
        batch_tile = _round_up(max(1, _TARGET_ROWS // LP), SUBLANE)
    assert batch_tile % SUBLANE == 0, "batch_tile must be a multiple of 8"
    TB = max(SUBLANE, min(batch_tile, _round_up(B, SUBLANE)))
    Bp = _round_up(B, TB)
    rows = TB * LP
    # NOTE: for tiny batches (e.g. B=2) the grid has a single step, so the second
    # TensorCore on v7x idles; a sequence-split grid axis would be needed there.

    # Tokens pre-flattened to a (Bp*LP, 1) column so the kernel builds the one-hot
    # with zero relayout.
    tokens_p = jnp.zeros((Bp, LP), jnp.int32).at[:B, :L].set(tokens.astype(jnp.int32))
    tokens_flat = tokens_p.reshape(Bp * LP, 1)

    table_p = jnp.zeros((Vp, Ep), jnp.float32).at[:vocab, :E].set(emb_table)  # f32

    def prep_conv(w, b, k, cin_p, cout_p):
        cout, cin, _ = w.shape
        wt = jnp.transpose(w, (2, 1, 0))               # (K, Cin, Cout): tap-major
        wp = jnp.zeros((k, cin_p, cout_p), jnp.float32).at[:, :cin, :cout].set(wt)
        bp = jnp.zeros((1, cout_p), jnp.float32).at[0, :cout].set(b)
        return wp.astype(jnp.bfloat16), bp

    w1f, b1p = prep_conv(w1, b1, k1, Ep, F1p)
    w2f, b2p = prep_conv(w2, b2, k2, F1p, F2p)
    w3f, b3p = prep_conv(w3, b3, k3, F2p, F3p)

    # VMEM budget computed from the actual block / scratch / transient sizes.
    bytes_blocks = (
        2 * rows * LANE * 4                                        # token column (lane-padded i32)
        + 2 * Vp * Ep * 4                                          # embedding table (f32)
        + 2 * 2 * (k1 * Ep * F1p + k2 * F1p * F2p + k3 * F2p * F3p)  # bf16 weights
        + 2 * SUBLANE * (F1p + F2p + F3p) * 4                      # biases (sublane-padded)
        + 2 * TB * F3p * 4                                         # output block
    )
    bytes_scratch = 2 * (rows + PAD) * Cmax * 4                    # two f32 slabs
    bytes_transient = rows * (Vp + Ep + 3 * Cmax) * 4              # onehot/emb/acc/h values
    vmem_limit = int(min(2 * (bytes_blocks + bytes_scratch + bytes_transient) + (8 << 20),
                         64 << 20))

    kernel = functools.partial(_target_encoder_kernel,
                               seq_len_padded=LP, valid_len=valid_len)
    out = pl.pallas_call(
        kernel,
        out_shape=jax.ShapeDtypeStruct((Bp, F3p), jnp.float32),
        grid=(Bp // TB,),
        in_specs=[
            pl.BlockSpec((rows, 1), lambda b: (b, 0)),             # flattened token column
            pl.BlockSpec((Vp, Ep), lambda b: (0, 0)),              # embedding table (resident)
            pl.BlockSpec((k1, Ep, F1p), lambda b: (0, 0, 0)),      # conv1 weight, tap-major
            pl.BlockSpec((1, F1p), lambda b: (0, 0)),              # conv1 bias
            pl.BlockSpec((k2, F1p, F2p), lambda b: (0, 0, 0)),     # conv2 weight
            pl.BlockSpec((1, F2p), lambda b: (0, 0)),              # conv2 bias
            pl.BlockSpec((k3, F2p, F3p), lambda b: (0, 0, 0)),     # conv3 weight
            pl.BlockSpec((1, F3p), lambda b: (0, 0)),              # conv3 bias
        ],
        out_specs=pl.BlockSpec((TB, F3p), lambda b: (b, 0)),
        scratch_shapes=[pltpu.VMEM((rows + PAD, Cmax), jnp.float32),
                        pltpu.VMEM((rows + PAD, Cmax), jnp.float32)],
        compiler_params=pltpu.CompilerParams(
            dimension_semantics=("parallel",),                     # shard batch tiles across TCs
            vmem_limit_bytes=vmem_limit),
    )(tokens_flat, table_p, w1f, b1p, w2f, b2p, w3f, b3p)

    return out[:B, :F3]


def _reference_forward(tokens, params, kernel_sizes):
    """Pure-JAX f32 reference with PyTorch Conv1d/AdaptiveMaxPool1d semantics."""
    h = params["embedding"][tokens]                             # (B, L, E)
    for i, k in enumerate(kernel_sizes, start=1):
        w, b = params[f"w{i}"], params[f"b{i}"]                 # (Cout, Cin, K), (Cout,)
        lout = h.shape[1] - k + 1
        acc = jnp.zeros((h.shape[0], lout, w.shape[0]), jnp.float32)
        for j in range(k):
            acc = acc + jnp.einsum("ble,oe->blo", h[:, j:j + lout, :], w[:, :, j])
        h = jnp.maximum(acc + b[None, None, :], 0.0)
    return jnp.max(h, axis=1)                                   # (B, 3F)


def init_params(key, vocab_size, embedding_size, kernel_sizes, filter_num):
    """Deterministic synthetic params with the same shapes as the nn.Module."""
    k1, k2, k3 = kernel_sizes
    F1, F2, F3 = filter_num, filter_num * 2, filter_num * 3
    keys = jax.random.split(key, 7)

    emb = jax.random.normal(keys[0], (vocab_size, embedding_size), jnp.float32) * 0.1
    emb = emb.at[0].set(0.0)                                    # padding_idx=0

    def conv_w(k, kern, cin, cout):
        # PyTorch Conv1d weight layout: (Cout, Cin, K).
        return (jax.random.normal(k, (cout, cin, kern), jnp.float32)
                * (1.0 / np.sqrt(cin * kern)))

    return {
        "embedding": emb,
        "w1": conv_w(keys[1], k1, embedding_size, F1),
        "b1": jax.random.normal(keys[2], (F1,), jnp.float32) * 0.01,
        "w2": conv_w(keys[3], k2, F1, F2),
        "b2": jax.random.normal(keys[4], (F2,), jnp.float32) * 0.01,
        "w3": conv_w(keys[5], k3, F2, F3),
        "b3": jax.random.normal(keys[6], (F3,), jnp.float32) * 0.01,
    }


if __name__ == "__main__":
    vocab_size = 26
    embedding_size = 32
    kernel_sizes = (3, 5, 7)
    filter_num = 32
    B, L = 2, 32

    key = jax.random.PRNGKey(0)
    k_param, k_tok = jax.random.split(key)
    params = init_params(k_param, vocab_size, embedding_size, kernel_sizes, filter_num)
    tokens = jax.random.randint(k_tok, (B, L), 0, vocab_size, dtype=jnp.int32)

    out = target_encoder_forward(tokens, params, kernel_sizes)
    out = jax.block_until_ready(out)

    ref = jax.block_until_ready(_reference_forward(tokens, params, kernel_sizes))
    assert out.shape == (B, filter_num * 3), out.shape
    # Conv MXU inputs are bf16 (f32 accumulation / f32 epilogue, f32 embedding),
    # so compare against the f32 module-semantics reference with bf16 tolerance.
    np.testing.assert_allclose(np.asarray(out), np.asarray(ref), rtol=5e-2, atol=5e-3)

    print("KERNEL_OK")
</pallas_src>

<mosaic_0001>
module attributes {stable_mosaic.version = 11 : i64} {
  func.func @_target_encoder_kernel(%arg0: i32, %arg1: memref<256x1xi32, #tpu.memory_space<vmem>>, %arg2: memref<128x128xf32, #tpu.memory_space<vmem>>, %arg3: memref<3x128x128xbf16, #tpu.memory_space<vmem>>, %arg4: memref<1x128xf32, #tpu.memory_space<vmem>>, %arg5: memref<5x128x128xbf16, #tpu.memory_space<vmem>>, %arg6: memref<1x128xf32, #tpu.memory_space<vmem>>, %arg7: memref<7x128x128xbf16, #tpu.memory_space<vmem>>, %arg8: memref<1x128xf32, #tpu.memory_space<vmem>>, %arg9: memref<8x128xf32, #tpu.memory_space<vmem>>, %arg10: memref<264x128xf32, #tpu.memory_space<vmem>>, %arg11: memref<264x128xf32, #tpu.memory_space<vmem>>) attributes {dimension_semantics = [#tpu.dimension_semantics<parallel>], iteration_bounds = array<i64: 1>, scalar_prefetch = 0 : i64, scratch_operands = 2 : i64, tpu.core_type = #tpu.core_type<tc>, window_params = [{transform_indices = @transform_0, window_bounds = array<i64: 256, 1>}, {pipeline_mode = #tpu.pipeline_mode<synchronous>, transform_indices = @transform_1, window_bounds = array<i64: 128, 128>}, {pipeline_mode = #tpu.pipeline_mode<synchronous>, transform_indices = @transform_2, window_bounds = array<i64: 3, 128, 128>}, {pipeline_mode = #tpu.pipeline_mode<synchronous>, transform_indices = @transform_3, window_bounds = array<i64: 1, 128>}, {pipeline_mode = #tpu.pipeline_mode<synchronous>, transform_indices = @transform_4, window_bounds = array<i64: 5, 128, 128>}, {pipeline_mode = #tpu.pipeline_mode<synchronous>, transform_indices = @transform_5, window_bounds = array<i64: 1, 128>}, {pipeline_mode = #tpu.pipeline_mode<synchronous>, transform_indices = @transform_6, window_bounds = array<i64: 7, 128, 128>}, {pipeline_mode = #tpu.pipeline_mode<synchronous>, transform_indices = @transform_7, window_bounds = array<i64: 1, 128>}, {transform_indices = @transform_8, window_bounds = array<i64: 8, 128>}]} {
    %cst = arith.constant 0.000000e+00 : f32
    %0 = vector.broadcast %cst : f32 to vector<8x128xf32>
    %c256 = arith.constant 256 : index
    %c0 = arith.constant 0 : index
    %1 = vector.load %arg10[%c256, %c0] : memref<264x128xf32, #tpu.memory_space<vmem>>, vector<8x128xf32>
    tpu.vector_store %arg10[%c256, %c0], %0 {strides = array<i32>} : memref<264x128xf32, #tpu.memory_space<vmem>>, vector<8x128xf32>,
    %cst_0 = arith.constant 0.000000e+00 : f32
    %2 = vector.broadcast %cst_0 : f32 to vector<8x128xf32>
    %c256_1 = arith.constant 256 : index
    %c0_2 = arith.constant 0 : index
    %3 = vector.load %arg11[%c256_1, %c0_2] : memref<264x128xf32, #tpu.memory_space<vmem>>, vector<8x128xf32>
    tpu.vector_store %arg11[%c256_1, %c0_2], %2 {strides = array<i32>} : memref<264x128xf32, #tpu.memory_space<vmem>>, vector<8x128xf32>,
    %4 = tpu.iota {dimensions = array<i32: 1>} : vector<256x128xi32>
    %c0_3 = arith.constant 0 : index
    %c0_4 = arith.constant 0 : index
    %5 = vector.load %arg1[%c0_3, %c0_4] : memref<256x1xi32, #tpu.memory_space<vmem>>, vector<256x1xi32>
    %6 = vector.broadcast %5 : vector<256x1xi32> to vector<256x128xi32>
    %7 = arith.cmpi eq, %6, %4 : vector<256x128xi32>
    %8 = arith.extui %7 : vector<256x128xi1> to vector<256x128xi32>
    %9 = arith.sitofp %8 : vector<256x128xi32> to vector<256x128xf32>
    %c0_5 = arith.constant 0 : index
    %c0_6 = arith.constant 0 : index
    %10 = vector.load %arg2[%c0_5, %c0_6] : memref<128x128xf32, #tpu.memory_space<vmem>>, vector<128x128xf32>
    %cst_7 = arith.constant dense<0.000000e+00> : vector<256x128xf32>
    %11 = tpu.matmul %9, %10, %cst_7 {dimension_numbers = #tpu.dot_dimension_numbers<[1], [0], [0], [1], [0, 0, 1, 1], [], []>} : vector<256x128xf32>, vector<128x128xf32>, vector<256x128xf32> -> vector<256x128xf32>
    %c0_8 = arith.constant 0 : index
    %c0_9 = arith.constant 0 : index
    %12 = vector.load %arg10[%c0_8, %c0_9] : memref<264x128xf32, #tpu.memory_space<vmem>>, vector<256x128xf32>
    tpu.vector_store %arg10[%c0_8, %c0_9], %11 {strides = array<i32>} : memref<264x128xf32, #tpu.memory_space<vmem>>, vector<256x128xf32>,
    %c0_10 = arith.constant 0 : index
    %c0_11 = arith.constant 0 : index
    %13 = vector.load %arg10[%c0_10, %c0_11] : memref<264x128xf32, #tpu.memory_space<vmem>>, vector<256x128xf32>
    %14 = arith.truncf %13 : vector<256x128xf32> to vector<256x128xbf16>
    %c0_12 = arith.constant 0 : index
    %c0_13 = arith.constant 0 : index
    %c0_14 = arith.constant 0 : index
    %15 = vector.load %arg3[%c0_12, %c0_13, %c0_14] : memref<3x128x128xbf16, #tpu.memory_space<vmem>>, vector<1x128x128xbf16>
    %16 = vector.shape_cast %15 : vector<1x128x128xbf16> to vector<128x128xbf16>
    %cst_15 = arith.constant dense<0.000000e+00> : vector<256x128xf32>
    %17 = tpu.matmul %14, %16, %cst_15 {dimension_numbers = #tpu.dot_dimension_numbers<[1], [0], [0], [1], [0, 0, 1, 1], [], []>} : vector<256x128xbf16>, vector<128x128xbf16>, vector<256x128xf32> -> vector<256x128xf32>
    %c1 = arith.constant 1 : index
    %c0_16 = arith.constant 0 : index
    %18 = vector.load %arg10[%c1, %c0_16] : memref<264x128xf32, #tpu.memory_space<vmem>>, vector<256x128xf32>
    %19 = arith.truncf %18 : vector<256x128xf32> to vector<256x128xbf16>
    %c1_17 = arith.constant 1 : index
    %c0_18 = arith.constant 0 : index
    %c0_19 = arith.constant 0 : index
    %20 = vector.load %arg3[%c1_17, %c0_18, %c0_19] : memref<3x128x128xbf16, #tpu.memory_space<vmem>>, vector<1x128x128xbf16>
    %21 = vector.shape_cast %20 : vector<1x128x128xbf16> to vector<128x128xbf16>
    %cst_20 = arith.constant dense<0.000000e+00> : vector<256x128xf32>
    %22 = tpu.matmul %19, %21, %cst_20 {dimension_numbers = #tpu.dot_dimension_numbers<[1], [0], [0], [1], [0, 0, 1, 1], [], []>} : vector<256x128xbf16>, vector<128x128xbf16>, vector<256x128xf32> -> vector<256x128xf32>
    %23 = arith.addf %17, %22 : vector<256x128xf32>
    %c2 = arith.constant 2 : index
    %c0_21 = arith.constant 0 : index
    %24 = vector.load %arg10[%c2, %c0_21] : memref<264x128xf32, #tpu.memory_space<vmem>>, vector<256x128xf32>
    %25 = arith.truncf %24 : vector<256x128xf32> to vector<256x128xbf16>
    %c2_22 = arith.constant 2 : index
    %c0_23 = arith.constant 0 : index
    %c0_24 = arith.constant 0 : index
    %26 = vector.load %arg3[%c2_22, %c0_23, %c0_24] : memref<3x128x128xbf16, #tpu.memory_space<vmem>>, vector<1x128x128xbf16>
    %27 = vector.shape_cast %26 : vector<1x128x128xbf16> to vector<128x128xbf16>
    %cst_25 = arith.constant dense<0.000000e+00> : vector<256x128xf32>
    %28 = tpu.matmul %25, %27, %cst_25 {dimension_numbers = #tpu.dot_dimension_numbers<[1], [0], [0], [1], [0, 0, 1, 1], [], []>} : vector<256x128xbf16>, vector<128x128xbf16>, vector<256x128xf32> -> vector<256x128xf32>
    %29 = arith.addf %23, %28 : vector<256x128xf32>
    %c0_26 = arith.constant 0 : index
    %c0_27 = arith.constant 0 : index
    %30 = vector.load %arg4[%c0_26, %c0_27] : memref<1x128xf32, #tpu.memory_space<vmem>>, vector<1x128xf32>
    %31 = vector.broadcast %30 : vector<1x128xf32> to vector<256x128xf32>
    %32 = arith.addf %29, %31 : vector<256x128xf32>
    %cst_28 = arith.constant 0.000000e+00 : f32
    %33 = vector.broadcast %cst_28 : f32 to vector<256x128xf32>
    %34 = arith.maximumf %32, %33 : vector<256x128xf32>
    %c0_29 = arith.constant 0 : index
    %c0_30 = arith.constant 0 : index
    %35 = vector.load %arg11[%c0_29, %c0_30] : memref<264x128xf32, #tpu.memory_space<vmem>>, vector<256x128xf32>
    tpu.vector_store %arg11[%c0_29, %c0_30], %34 {strides = array<i32>} : memref<264x128xf32, #tpu.memory_space<vmem>>, vector<256x128xf32>,
    %c0_31 = arith.constant 0 : index
    %c0_32 = arith.constant 0 : index
    %36 = vector.load %arg11[%c0_31, %c0_32] : memref<264x128xf32, #tpu.memory_space<vmem>>, vector<256x128xf32>
    %37 = arith.truncf %36 : vector<256x128xf32> to vector<256x128xbf16>
    %c0_33 = arith.constant 0 : index
    %c0_34 = arith.constant 0 : index
    %c0_35 = arith.constant 0 : index
    %38 = vector.load %arg5[%c0_33, %c0_34, %c0_35] : memref<5x128x128xbf16, #tpu.memory_space<vmem>>, vector<1x128x128xbf16>
    %39 = vector.shape_cast %38 : vector<1x128x128xbf16> to vector<128x128xbf16>
    %cst_36 = arith.constant dense<0.000000e+00> : vector<256x128xf32>
    %40 = tpu.matmul %37, %39, %cst_36 {dimension_numbers = #tpu.dot_dimension_numbers<[1], [0], [0], [1], [0, 0, 1, 1], [], []>} : vector<256x128xbf16>, vector<128x128xbf16>, vector<256x128xf32> -> vector<256x128xf32>
    %c1_37 = arith.constant 1 : index
    %c0_38 = arith.constant 0 : index
    %41 = vector.load %arg11[%c1_37, %c0_38] : memref<264x128xf32, #tpu.memory_space<vmem>>, vector<256x128xf32>
    %42 = arith.truncf %41 : vector<256x128xf32> to vector<256x128xbf16>
    %c1_39 = arith.constant 1 : index
    %c0_40 = arith.constant 0 : index
    %c0_41 = arith.constant 0 : index
    %43 = vector.load %arg5[%c1_39, %c0_40, %c0_41] : memref<5x128x128xbf16, #tpu.memory_space<vmem>>, vector<1x128x128xbf16>
    %44 = vector.shape_cast %43 : vector<1x128x128xbf16> to vector<128x128xbf16>
    %cst_42 = arith.constant dense<0.000000e+00> : vector<256x128xf32>
    %45 = tpu.matmul %42, %44, %cst_42 {dimension_numbers = #tpu.dot_dimension_numbers<[1], [0], [0], [1], [0, 0, 1, 1], [], []>} : vector<256x128xbf16>, vector<128x128xbf16>, vector<256x128xf32> -> vector<256x128xf32>
    %46 = arith.addf %40, %45 : vector<256x128xf32>
    %c2_43 = arith.constant 2 : index
    %c0_44 = arith.constant 0 : index
    %47 = vector.load %arg11[%c2_43, %c0_44] : memref<264x128xf32, #tpu.memory_space<vmem>>, vector<256x128xf32>
    %48 = arith.truncf %47 : vector<256x128xf32> to vector<256x128xbf16>
    %c2_45 = arith.constant 2 : index
    %c0_46 = arith.constant 0 : index
    %c0_47 = arith.constant 0 : index
    %49 = vector.load %arg5[%c2_45, %c0_46, %c0_47] : memref<5x128x128xbf16, #tpu.memory_space<vmem>>, vector<1x128x128xbf16>
    %50 = vector.shape_cast %49 : vector<1x128x128xbf16> to vector<128x128xbf16>
    %cst_48 = arith.constant dense<0.000000e+00> : vector<256x128xf32>
    %51 = tpu.matmul %48, %50, %cst_48 {dimension_numbers = #tpu.dot_dimension_numbers<[1], [0], [0], [1], [0, 0, 1, 1], [], []>} : vector<256x128xbf16>, vector<128x128xbf16>, vector<256x128xf32> -> vector<256x128xf32>
    %52 = arith.addf %46, %51 : vector<256x128xf32>
    %c3 = arith.constant 3 : index
    %c0_49 = arith.constant 0 : index
    %53 = vector.load %arg11[%c3, %c0_49] : memref<264x128xf32, #tpu.memory_space<vmem>>, vector<256x128xf32>
    %54 = arith.truncf %53 : vector<256x128xf32> to vector<256x128xbf16>
    %c3_50 = arith.constant 3 : index
    %c0_51 = arith.constant 0 : index
    %c0_52 = arith.constant 0 : index
    %55 = vector.load %arg5[%c3_50, %c0_51, %c0_52] : memref<5x128x128xbf16, #tpu.memory_space<vmem>>, vector<1x128x128xbf16>
    %56 = vector.shape_cast %55 : vector<1x128x128xbf16> to vector<128x128xbf16>
    %cst_53 = arith.constant dense<0.000000e+00> : vector<256x128xf32>
    %57 = tpu.matmul %54, %56, %cst_53 {dimension_numbers = #tpu.dot_dimension_numbers<[1], [0], [0], [1], [0, 0, 1, 1], [], []>} : vector<256x128xbf16>, vector<128x128xbf16>, vector<256x128xf32> -> vector<256x128xf32>
    %58 = arith.addf %52, %57 : vector<256x128xf32>
    %c4 = arith.constant 4 : index
    %c0_54 = arith.constant 0 : index
    %59 = vector.load %arg11[%c4, %c0_54] : memref<264x128xf32, #tpu.memory_space<vmem>>, vector<256x128xf32>
    %60 = arith.truncf %59 : vector<256x128xf32> to vector<256x128xbf16>
    %c4_55 = arith.constant 4 : index
    %c0_56 = arith.constant 0 : index
    %c0_57 = arith.constant 0 : index
    %61 = vector.load %arg5[%c4_55, %c0_56, %c0_57] : memref<5x128x128xbf16, #tpu.memory_space<vmem>>, vector<1x128x128xbf16>
    %62 = vector.shape_cast %61 : vector<1x128x128xbf16> to vector<128x128xbf16>
    %cst_58 = arith.constant dense<0.000000e+00> : vector<256x128xf32>
    %63 = tpu.matmul %60, %62, %cst_58 {dimension_numbers = #tpu.dot_dimension_numbers<[1], [0], [0], [1], [0, 0, 1, 1], [], []>} : vector<256x128xbf16>, vector<128x128xbf16>, vector<256x128xf32> -> vector<256x128xf32>
    %64 = arith.addf %58, %63 : vector<256x128xf32>
    %c0_59 = arith.constant 0 : index
    %c0_60 = arith.constant 0 : index
    %65 = vector.load %arg6[%c0_59, %c0_60] : memref<1x128xf32, #tpu.memory_space<vmem>>, vector<1x128xf32>
    %66 = vector.broadcast %65 : vector<1x128xf32> to vector<256x128xf32>
    %67 = arith.addf %64, %66 : vector<256x128xf32>
    %cst_61 = arith.constant 0.000000e+00 : f32
    %68 = vector.broadcast %cst_61 : f32 to vector<256x128xf32>
    %69 = arith.maximumf %67, %68 : vector<256x128xf32>
    %c0_62 = arith.constant 0 : index
    %c0_63 = arith.constant 0 : index
    %70 = vector.load %arg10[%c0_62, %c0_63] : memref<264x128xf32, #tpu.memory_space<vmem>>, vector<256x128xf32>
    tpu.vector_store %arg10[%c0_62, %c0_63], %69 {strides = array<i32>} : memref<264x128xf32, #tpu.memory_space<vmem>>, vector<256x128xf32>,
    %c0_64 = arith.constant 0 : index
    %c0_65 = arith.constant 0 : index
    %71 = vector.load %arg10[%c0_64, %c0_65] : memref<264x128xf32, #tpu.memory_space<vmem>>, vector<256x128xf32>
    %72 = arith.truncf %71 : vector<256x128xf32> to vector<256x128xbf16>
    %c0_66 = arith.constant 0 : index
    %c0_67 = arith.constant 0 : index
    %c0_68 = arith.constant 0 : index
    %73 = vector.load %arg7[%c0_66, %c0_67, %c0_68] : memref<7x128x128xbf16, #tpu.memory_space<vmem>>, vector<1x128x128xbf16>
    %74 = vector.shape_cast %73 : vector<1x128x128xbf16> to vector<128x128xbf16>
    %cst_69 = arith.constant dense<0.000000e+00> : vector<256x128xf32>
    %75 = tpu.matmul %72, %74, %cst_69 {dimension_numbers = #tpu.dot_dimension_numbers<[1], [0], [0], [1], [0, 0, 1, 1], [], []>} : vector<256x128xbf16>, vector<128x128xbf16>, vector<256x128xf32> -> vector<256x128xf32>
    %c1_70 = arith.constant 1 : index
    %c0_71 = arith.constant 0 : index
    %76 = vector.load %arg10[%c1_70, %c0_71] : memref<264x128xf32, #tpu.memory_space<vmem>>, vector<256x128xf32>
    %77 = arith.truncf %76 : vector<256x128xf32> to vector<256x128xbf16>
    %c1_72 = arith.constant 1 : index
    %c0_73 = arith.constant 0 : index
    %c0_74 = arith.constant 0 : index
    %78 = vector.load %arg7[%c1_72, %c0_73, %c0_74] : memref<7x128x128xbf16, #tpu.memory_space<vmem>>, vector<1x128x128xbf16>
    %79 = vector.shape_cast %78 : vector<1x128x128xbf16> to vector<128x128xbf16>
    %cst_75 = arith.constant dense<0.000000e+00> : vector<256x128xf32>
    %80 = tpu.matmul %77, %79, %cst_75 {dimension_numbers = #tpu.dot_dimension_numbers<[1], [0], [0], [1], [0, 0, 1, 1], [], []>} : vector<256x128xbf16>, vector<128x128xbf16>, vector<256x128xf32> -> vector<256x128xf32>
    %81 = arith.addf %75, %80 : vector<256x128xf32>
    %c2_76 = arith.constant 2 : index
    %c0_77 = arith.constant 0 : index
    %82 = vector.load %arg10[%c2_76, %c0_77] : memref<264x128xf32, #tpu.memory_space<vmem>>, vector<256x128xf32>
    %83 = arith.truncf %82 : vector<256x128xf32> to vector<256x128xbf16>
    %c2_78 = arith.constant 2 : index
    %c0_79 = arith.constant 0 : index
    %c0_80 = arith.constant 0 : index
    %84 = vector.load %arg7[%c2_78, %c0_79, %c0_80] : memref<7x128x128xbf16, #tpu.memory_space<vmem>>, vector<1x128x128xbf16>
    %85 = vector.shape_cast %84 : vector<1x128x128xbf16> to vector<128x128xbf16>
    %cst_81 = arith.constant dense<0.000000e+00> : vector<256x128xf32>
    %86 = tpu.matmul %83, %85, %cst_81 {dimension_numbers = #tpu.dot_dimension_numbers<[1], [0], [0], [1], [0, 0, 1, 1], [], []>} : vector<256x128xbf16>, vector<128x128xbf16>, vector<256x128xf32> -> vector<256x128xf32>
    %87 = arith.addf %81, %86 : vector<256x128xf32>
    %c3_82 = arith.constant 3 : index
    %c0_83 = arith.constant 0 : index
    %88 = vector.load %arg10[%c3_82, %c0_83] : memref<264x128xf32, #tpu.memory_space<vmem>>, vector<256x128xf32>
    %89 = arith.truncf %88 : vector<256x128xf32> to vector<256x128xbf16>
    %c3_84 = arith.constant 3 : index
    %c0_85 = arith.constant 0 : index
    %c0_86 = arith.constant 0 : index
    %90 = vector.load %arg7[%c3_84, %c0_85, %c0_86] : memref<7x128x128xbf16, #tpu.memory_space<vmem>>, vector<1x128x128xbf16>
    %91 = vector.shape_cast %90 : vector<1x128x128xbf16> to vector<128x128xbf16>
    %cst_87 = arith.constant dense<0.000000e+00> : vector<256x128xf32>
    %92 = tpu.matmul %89, %91, %cst_87 {dimension_numbers = #tpu.dot_dimension_numbers<[1], [0], [0], [1], [0, 0, 1, 1], [], []>} : vector<256x128xbf16>, vector<128x128xbf16>, vector<256x128xf32> -> vector<256x128xf32>
    %93 = arith.addf %87, %92 : vector<256x128xf32>
    %c4_88 = arith.constant 4 : index
    %c0_89 = arith.constant 0 : index
    %94 = vector.load %arg10[%c4_88, %c0_89] : memref<264x128xf32, #tpu.memory_space<vmem>>, vector<256x128xf32>
    %95 = arith.truncf %94 : vector<256x128xf32> to vector<256x128xbf16>
    %c4_90 = arith.constant 4 : index
    %c0_91 = arith.constant 0 : index
    %c0_92 = arith.constant 0 : index
    %96 = vector.load %arg7[%c4_90, %c0_91, %c0_92] : memref<7x128x128xbf16, #tpu.memory_space<vmem>>, vector<1x128x128xbf16>
    %97 = vector.shape_cast %96 : vector<1x128x128xbf16> to vector<128x128xbf16>
    %cst_93 = arith.constant dense<0.000000e+00> : vector<256x128xf32>
    %98 = tpu.matmul %95, %97, %cst_93 {dimension_numbers = #tpu.dot_dimension_numbers<[1], [0], [0], [1], [0, 0, 1, 1], [], []>} : vector<256x128xbf16>, vector<128x128xbf16>, vector<256x128xf32> -> vector<256x128xf32>
    %99 = arith.addf %93, %98 : vector<256x128xf32>
    %c5 = arith.constant 5 : index
    %c0_94 = arith.constant 0 : index
    %100 = vector.load %arg10[%c5, %c0_94] : memref<264x128xf32, #tpu.memory_space<vmem>>, vector<256x128xf32>
    %101 = arith.truncf %100 : vector<256x128xf32> to vector<256x128xbf16>
    %c5_95 = arith.constant 5 : index
    %c0_96 = arith.constant 0 : index
    %c0_97 = arith.constant 0 : index
    %102 = vector.load %arg7[%c5_95, %c0_96, %c0_97] : memref<7x128x128xbf16, #tpu.memory_space<vmem>>, vector<1x128x128xbf16>
    %103 = vector.shape_cast %102 : vector<1x128x128xbf16> to vector<128x128xbf16>
    %cst_98 = arith.constant dense<0.000000e+00> : vector<256x128xf32>
    %104 = tpu.matmul %101, %103, %cst_98 {dimension_numbers = #tpu.dot_dimension_numbers<[1], [0], [0], [1], [0, 0, 1, 1], [], []>} : vector<256x128xbf16>, vector<128x128xbf16>, vector<256x128xf32> -> vector<256x128xf32>
    %105 = arith.addf %99, %104 : vector<256x128xf32>
    %c6 = arith.constant 6 : index
    %c0_99 = arith.constant 0 : index
    %106 = vector.load %arg10[%c6, %c0_99] : memref<264x128xf32, #tpu.memory_space<vmem>>, vector<256x128xf32>
    %107 = arith.truncf %106 : vector<256x128xf32> to vector<256x128xbf16>
    %c6_100 = arith.constant 6 : index
    %c0_101 = arith.constant 0 : index
    %c0_102 = arith.constant 0 : index
    %108 = vector.load %arg7[%c6_100, %c0_101, %c0_102] : memref<7x128x128xbf16, #tpu.memory_space<vmem>>, vector<1x128x128xbf16>
    %109 = vector.shape_cast %108 : vector<1x128x128xbf16> to vector<128x128xbf16>
    %cst_103 = arith.constant dense<0.000000e+00> : vector<256x128xf32>
    %110 = tpu.matmul %107, %109, %cst_103 {dimension_numbers = #tpu.dot_dimension_numbers<[1], [0], [0], [1], [0, 0, 1, 1], [], []>} : vector<256x128xbf16>, vector<128x128xbf16>, vector<256x128xf32> -> vector<256x128xf32>
    %111 = arith.addf %105, %110 : vector<256x128xf32>
    %c0_104 = arith.constant 0 : index
    %c0_105 = arith.constant 0 : index
    %112 = vector.load %arg8[%c0_104, %c0_105] : memref<1x128xf32, #tpu.memory_space<vmem>>, vector<1x128xf32>
    %113 = vector.broadcast %112 : vector<1x128xf32> to vector<256x128xf32>
    %114 = arith.addf %111, %113 : vector<256x128xf32>
    %cst_106 = arith.constant 0.000000e+00 : f32
    %115 = vector.broadcast %cst_106 : f32 to vector<256x128xf32>
    %116 = arith.maximumf %114, %115 : vector<256x128xf32>
    %117 = vector.shape_cast %116 : vector<256x128xf32> to vector<8x32x128xf32>
    %118 = tpu.iota {dimensions = array<i32: 1>} : vector<8x32x128xi32>
    %c20_i32 = arith.constant 20 : i32
    %119 = vector.broadcast %c20_i32 : i32 to vector<8x32x128xi32>
    %120 = arith.cmpi slt, %118, %119 : vector<8x32x128xi32>
    %cst_107 = arith.constant 0.000000e+00 : f32
    %121 = vector.broadcast %cst_107 : f32 to vector<8x32x128xf32>
    %122 = arith.select %120, %117, %121 : vector<8x32x128xi1>, vector<8x32x128xf32>
    %cst_108 = arith.constant dense<0xFF800000> : vector<8x128xf32>
    %123 = vector.multi_reduction <maximumf>, %122, %cst_108 [1] : vector<8x32x128xf32> to vector<8x128xf32>
    %c0_109 = arith.constant 0 : index
    %c0_110 = arith.constant 0 : index
    %124 = vector.load %arg9[%c0_109, %c0_110] : memref<8x128xf32, #tpu.memory_space<vmem>>, vector<8x128xf32>
    tpu.vector_store %arg9[%c0_109, %c0_110], %123 {strides = array<i32>} : memref<8x128xf32, #tpu.memory_space<vmem>>, vector<8x128xf32>,
    return
  }
  func.func @transform_0(%arg0: i32) -> (i32, i32) {
    %c0_i32 = arith.constant 0 : i32
    %c0_i32_0 = arith.constant 0 : i32
    return %arg0, %c0_i32 : i32, i32
  }
  func.func @transform_1(%arg0: i32) -> (i32, i32) {
    %c0_i32 = arith.constant 0 : i32
    %c0_i32_0 = arith.constant 0 : i32
    %c0_i32_1 = arith.constant 0 : i32
    return %c0_i32, %c0_i32_0 : i32, i32
  }
  func.func @transform_2(%arg0: i32) -> (i32, i32, i32) {
    %c0_i32 = arith.constant 0 : i32
    %c0_i32_0 = arith.constant 0 : i32
    %c0_i32_1 = arith.constant 0 : i32
    %c0_i32_2 = arith.constant 0 : i32
    return %c0_i32, %c0_i32_0, %c0_i32_1 : i32, i32, i32
  }
  func.func @transform_3(%arg0: i32) -> (i32, i32) {
    %c0_i32 = arith.constant 0 : i32
    %c0_i32_0 = arith.constant 0 : i32
    %c0_i32_1 = arith.constant 0 : i32
    return %c0_i32, %c0_i32_0 : i32, i32
  }
  func.func @transform_4(%arg0: i32) -> (i32, i32, i32) {
    %c0_i32 = arith.constant 0 : i32
    %c0_i32_0 = arith.constant 0 : i32
    %c0_i32_1 = arith.constant 0 : i32
    %c0_i32_2 = arith.constant 0 : i32
    return %c0_i32, %c0_i32_0, %c0_i32_1 : i32, i32, i32
  }
  func.func @transform_5(%arg0: i32) -> (i32, i32) {
    %c0_i32 = arith.constant 0 : i32
    %c0_i32_0 = arith.constant 0 : i32
    %c0_i32_1 = arith.constant 0 : i32
    return %c0_i32, %c0_i32_0 : i32, i32
  }
  func.func @transform_6(%arg0: i32) -> (i32, i32, i32) {
    %c0_i32 = arith.constant 0 : i32
    %c0_i32_0 = arith.constant 0 : i32
    %c0_i32_1 = arith.constant 0 : i32
    %c0_i32_2 = arith.constant 0 : i32
    return %c0_i32, %c0_i32_0, %c0_i32_1 : i32, i32, i32
  }
  func.func @transform_7(%arg0: i32) -> (i32, i32) {
    %c0_i32 = arith.constant 0 : i32
    %c0_i32_0 = arith.constant 0 : i32
    %c0_i32_1 = arith.constant 0 : i32
    return %c0_i32, %c0_i32_0 : i32, i32
  }
  func.func @transform_8(%arg0: i32) -> (i32, i32) {
    %c0_i32 = arith.constant 0 : i32
    %c0_i32_0 = arith.constant 0 : i32
    return %arg0, %c0_i32 : i32, i32
  }
}

</mosaic_0001>

<llo_original>
// kernel: tpu_custom_call.1
$region0: #{tpu_custom_call.1}
  #allocation0 [shape = 'u32[]', space=smem, size = 0x4, offset = 0x4, fixed_abs, tag = 'smem constant byte address 0x4 - core index']
  #allocation1 [shape = 'u32[144,128]{1,0:T(1,128)}', space=vmem, size = 0x12000, scoped, tag = 'internal scratch']
  #allocation2 [shape = 'f32[264,128]{1,0:T(8,128)}', space=vmem, size = 0x21000, scoped, tag = 'scratch operand']
  #allocation3 [shape = 'f32[264,128]{1,0:T(8,128)}', space=vmem, size = 0x21000, scoped, tag = 'scratch operand']
  %s0 = inlined_call_operand.vmem [shape: s32[256,1], index: 0, kind: input, shape index: {}]
  %s1 = inlined_call_operand.hbm [shape: f32[128,128], index: 1, kind: input, shape index: {}]
  %s2 = inlined_call_operand.vmem [shape: bf16[3,128,128], index: 2, kind: input, shape index: {}]
  %s3 = inlined_call_operand.vmem [shape: f32[1,128], index: 3, kind: input, shape index: {}]
  %s4 = inlined_call_operand.hbm [shape: bf16[5,128,128], index: 4, kind: input, shape index: {}]
  %s5 = inlined_call_operand.vmem [shape: f32[1,128], index: 5, kind: input, shape index: {}]
  %s6 = inlined_call_operand.hbm [shape: bf16[7,128,128], index: 6, kind: input, shape index: {}]
  %s7 = inlined_call_operand.vmem [shape: f32[1,128], index: 7, kind: input, shape index: {}]
  %s8 = inlined_call_operand.hbm [shape: f32[8,128], index: 8, kind: output, shape index: {}]
  %s9 = sld [smem:[#allocation0]]
  $region54: #{tpu_custom_call.1} parent=0
    _
  %s11 = ssub.s32 1, %s9
  %s12 = scalar_select 0, %s11, %s9
  $region1: #{tpu_custom_call.1} parent=0
    #allocation4 [shape = 'u8[65536]{0}', space=vmem, size = 0x10000, scoped, tag = 'input window, operand 1, single buffered']
    #allocation5 [shape = 's32[1]{0}', space=sflag, size = 0x4, scoped, tag = 'scoped memory for tpu_custom_call.1']
    #allocation6 [shape = 's32[1]{0}', space=sflag, size = 0x4, scoped, tag = 'scoped memory for tpu_custom_call.1']
    #allocation7 [shape = 'u8[163840]{0}', space=vmem, size = 0x28000, scoped, tag = 'input window, operand 4, single buffered']
    #allocation8 [shape = 's32[1]{0}', space=sflag, size = 0x4, scoped, tag = 'scoped memory for tpu_custom_call.1']
    #allocation9 [shape = 'u8[229376]{0}', space=vmem, size = 0x38000, scoped, tag = 'input window, operand 6, single buffered']
    #allocation10 [shape = 'u8[4096]{0}', space=vmem, size = 0x1000, scoped, tag = 'output window, operand 0, single buffered']
    %13 = vsyncpa [#allocation5], 0
    %14 = vsyncpa [#allocation8], 0
    %15 = vsyncpa [#allocation6], 0
    // Predicated region
    $region2: #{tpu_custom_call.1} parent=1 // pred_check
      _
    $region3: #{tpu_custom_call.1} parent=1 // pred_check_branch
      %17 = sbr.rel (0) target = $region5
    $region4: #{tpu_custom_call.1} parent=1 // pred_region
      _
    $region5: #{tpu_custom_call.1} parent=1 // pred_fallthru
      _
    // Predicated region
    $region6: #{tpu_custom_call.1} parent=1 // pred_check
      _
    $region7: #{tpu_custom_call.1} parent=1 // pred_check_branch
      %19 = sbr.rel (0) target = $region9
    $region8: #{tpu_custom_call.1} parent=1 // pred_region
      %s21 = ssub.s32 2048, 2048
      %22 = vsyncadd [#allocation5], %s21
      %s23 = sshll.u32 [#allocation4], 4
      %s24 = int_to_ptr.vmem [resolvable:$true] %s23
      %29 = dma.hbm_to_vmem [thread:$0]  %s1, 2048, %s24, [#allocation5], 128, 128, 8
    $region9: #{tpu_custom_call.1} parent=1 // pred_fallthru
      _
    // Predicated region
    $region10: #{tpu_custom_call.1} parent=1 // pred_check
      _
    $region11: #{tpu_custom_call.1} parent=1 // pred_check_branch
      %31 = sbr.rel (0) target = $region13
    $region12: #{tpu_custom_call.1} parent=1 // pred_region
      _
    $region13: #{tpu_custom_call.1} parent=1 // pred_fallthru
      _
    // Predicated region
    $region14: #{tpu_custom_call.1} parent=1 // pred_check
      _
    $region15: #{tpu_custom_call.1} parent=1 // pred_check_branch
      %33 = sbr.rel (0) target = $region17
    $region16: #{tpu_custom_call.1} parent=1 // pred_region
      _
    $region17: #{tpu_custom_call.1} parent=1 // pred_fallthru
      _
    // Predicated region
    $region18: #{tpu_custom_call.1} parent=1 // pred_check
      _
    $region19: #{tpu_custom_call.1} parent=1 // pred_check_branch
      %35 = sbr.rel (0) target = $region21
    $region20: #{tpu_custom_call.1} parent=1 // pred_region
      %s37 = ssub.s32 5120, 5120
      %38 = vsyncadd [#allocation8], %s37
      %s39 = sshll.u32 [#allocation7], 4
      %s40 = int_to_ptr.vmem [resolvable:$true] %s39
      %45 = dma.hbm_to_vmem [thread:$0]  %s4, 5120, %s40, [#allocation8], 64, 64, 4
    $region21: #{tpu_custom_call.1} parent=1 // pred_fallthru
      _
    // Predicated region
    $region22: #{tpu_custom_call.1} parent=1 // pred_check
      _
    $region23: #{tpu_custom_call.1} parent=1 // pred_check_branch
      %47 = sbr.rel (0) target = $region25
    $region24: #{tpu_custom_call.1} parent=1 // pred_region
      _
    $region25: #{tpu_custom_call.1} parent=1 // pred_fallthru
      _
    // Predicated region
    $region26: #{tpu_custom_call.1} parent=1 // pred_check
      _
    $region27: #{tpu_custom_call.1} parent=1 // pred_check_branch
      %49 = sbr.rel (0) target = $region29
    $region28: #{tpu_custom_call.1} parent=1 // pred_region
      %s51 = ssub.s32 7168, 7168
      %52 = vsyncadd [#allocation8], %s51
      %s53 = sshll.u32 [#allocation9], 4
      %s54 = int_to_ptr.vmem [resolvable:$true] %s53
      %59 = dma.hbm_to_vmem [thread:$0]  %s6, 7168, %s54, [#allocation8], 64, 64, 4
    $region29: #{tpu_custom_call.1} parent=1 // pred_fallthru
      _
    // Predicated region
    $region30: #{tpu_custom_call.1} parent=1 // pred_check
      _
    $region31: #{tpu_custom_call.1} parent=1 // pred_check_branch
      %61 = sbr.rel (0) target = $region33
    $region32: #{tpu_custom_call.1} parent=1 // pred_region
      _
    $region33: #{tpu_custom_call.1} parent=1 // pred_fallthru
      _
    // Predicated region
    $region34: #{tpu_custom_call.1} parent=1 // pred_check
      _
    $region35: #{tpu_custom_call.1} parent=1 // pred_check_branch
      %63 = sbr.rel (0) target = $region37
    $region36: #{tpu_custom_call.1} parent=1 // pred_region
      %64 = dma.done [#allocation5], 2048
    $region37: #{tpu_custom_call.1} parent=1 // pred_fallthru
      _
    // Predicated region
    $region38: #{tpu_custom_call.1} parent=1 // pred_check
      _
    $region39: #{tpu_custom_call.1} parent=1 // pred_check_branch
      %66 = sbr.rel (0) target = $region41
    $region40: #{tpu_custom_call.1} parent=1 // pred_region
      %67 = dma.done [#allocation8], 5120
    $region41: #{tpu_custom_call.1} parent=1 // pred_fallthru
      _
    // Predicated region
    $region42: #{tpu_custom_call.1} parent=1 // pred_check
      _
    $region43: #{tpu_custom_call.1} parent=1 // pred_check_branch
      %69 = sbr.rel (0) target = $region45
    $region44: #{tpu_custom_call.1} parent=1 // pred_region
      %70 = dma.done [#allocation8], 7168
    $region45: #{tpu_custom_call.1} parent=1 // pred_fallthru
      _
    %72 = vst [vmem:[#allocation2 + $0x100] sm:$0xff] 0.0
    %73 = vst [vmem:[#allocation3 + $0x100] sm:$0xff] 0.0
    %v74 = vlaneseq
    %v75 = vand.u32 %v74, 127
    %v76 = vld [vmem:[%s0] sm:$0xff]
    %v77 = vld [vmem:[%s0 + $0x8] sm:$0xff]
    %v78 = vld [vmem:[%s0 + $0x10] sm:$0xff]
    %v79 = vld [vmem:[%s0 + $0x18] sm:$0xff]
    %v80 = vld [vmem:[%s0 + $0x20] sm:$0xff]
    %v81 = vld [vmem:[%s0 + $0x28] sm:$0xff]
    %v82 = vld [vmem:[%s0 + $0x30] sm:$0xff]
    %v83 = vld [vmem:[%s0 + $0x38] sm:$0xff]
    %v84 = vld [vmem:[%s0 + $0x40] sm:$0xff]
    %v85 = vld [vmem:[%s0 + $0x48] sm:$0xff]
    %v86 = vld [vmem:[%s0 + $0x50] sm:$0xff]
    %v87 = vld [vmem:[%s0 + $0x58] sm:$0xff]
    %v88 = vld [vmem:[%s0 + $0x60] sm:$0xff]
    %v89 = vld [vmem:[%s0 + $0x68] sm:$0xff]
    %v90 = vld [vmem:[%s0 + $0x70] sm:$0xff]
    %v91 = vld [vmem:[%s0 + $0x78] sm:$0xff]
    %v92 = vld [vmem:[%s0 + $0x80] sm:$0xff]
    %v93 = vld [vmem:[%s0 + $0x88] sm:$0xff]
    %v94 = vld [vmem:[%s0 + $0x90] sm:$0xff]
    %v95 = vld [vmem:[%s0 + $0x98] sm:$0xff]
    %v96 = vld [vmem:[%s0 + $0xa0] sm:$0xff]
    %v97 = vld [vmem:[%s0 + $0xa8] sm:$0xff]
    %v98 = vld [vmem:[%s0 + $0xb0] sm:$0xff]
    %v99 = vld [vmem:[%s0 + $0xb8] sm:$0xff]
    %v100 = vld [vmem:[%s0 + $0xc0] sm:$0xff]
    %v101 = vld [vmem:[%s0 + $0xc8] sm:$0xff]
    %v102 = vld [vmem:[%s0 + $0xd0] sm:$0xff]
    %v103 = vld [vmem:[%s0 + $0xd8] sm:$0xff]
    %v104 = vld [vmem:[%s0 + $0xe0] sm:$0xff]
    %v105 = vld [vmem:[%s0 + $0xe8] sm:$0xff]
    %v106 = vld [vmem:[%s0 + $0xf0] sm:$0xff]
    %v107 = vld [vmem:[%s0 + $0xf8] sm:$0xff]
    %108 = vset.pattern.permute.xlu0 0
    %109 = vperm.xlu0 %108, %v76
    %v110 = vpop.permute.xlu0 %109
    %111 = vset.pattern.permute.xlu0 0
    %112 = vperm.xlu0 %111, %v77
    %v113 = vpop.permute.xlu0 %112
    %114 = vset.pattern.permute.xlu0 0
    %115 = vperm.xlu0 %114, %v78
    %v116 = vpop.permute.xlu0 %115
    %117 = vset.pattern.permute.xlu0 0
    %118 = vperm.xlu0 %117, %v79
    %v119 = vpop.permute.xlu0 %118
    %120 = vset.pattern.permute.xlu0 0
    %121 = vperm.xlu0 %120, %v80
    %v122 = vpop.permute.xlu0 %121
    %123 = vset.pattern.permute.xlu0 0
    %124 = vperm.xlu0 %123, %v81
    %v125 = vpop.permute.xlu0 %124
    %126 = vset.pattern.permute.xlu0 0
    %127 = vperm.xlu0 %126, %v82
    %v128 = vpop.permute.xlu0 %127
    %129 = vset.pattern.permute.xlu0 0
    %130 = vperm.xlu0 %129, %v83
    %v131 = vpop.permute.xlu0 %130
    %132 = vset.pattern.permute.xlu0 0
    %133 = vperm.xlu0 %132, %v84
    %v134 = vpop.permute.xlu0 %133
    %135 = vset.pattern.permute.xlu0 0
    %136 = vperm.xlu0 %135, %v85
    %v137 = vpop.permute.xlu0 %136
    %138 = vset.pattern.permute.xlu0 0
    %139 = vperm.xlu0 %138, %v86
    %v140 = vpop.permute.xlu0 %139
    %141 = vset.pattern.permute.xlu0 0
    %142 = vperm.xlu0 %141, %v87
    %v143 = vpop.permute.xlu0 %142
    %144 = vset.pattern.permute.xlu0 0
    %145 = vperm.xlu0 %144, %v88
    %v146 = vpop.permute.xlu0 %145
    %147 = vset.pattern.permute.xlu0 0
    %148 = vperm.xlu0 %147, %v89
    %v149 = vpop.permute.xlu0 %148
    %150 = vset.pattern.permute.xlu0 0
    %151 = vperm.xlu0 %150, %v90
    %v152 = vpop.permute.xlu0 %151
    %153 = vset.pattern.permute.xlu0 0
    %154 = vperm.xlu0 %153, %v91
    %v155 = vpop.permute.xlu0 %154
    %156 = vset.pattern.permute.xlu0 0
    %157 = vperm.xlu0 %156, %v92
    %v158 = vpop.permute.xlu0 %157
    %159 = vset.pattern.permute.xlu0 0
    %160 = vperm.xlu0 %159, %v93
    %v161 = vpop.permute.xlu0 %160
    %162 = vset.pattern.permute.xlu0 0
    %163 = vperm.xlu0 %162, %v94
    %v164 = vpop.permute.xlu0 %163
    %165 = vset.pattern.permute.xlu0 0
    %166 = vperm.xlu0 %165, %v95
    %v167 = vpop.permute.xlu0 %166
    %168 = vset.pattern.permute.xlu0 0
    %169 = vperm.xlu0 %168, %v96
    %v170 = vpop.permute.xlu0 %169
    %171 = vset.pattern.permute.xlu0 0
    %172 = vperm.xlu0 %171, %v97
    %v173 = vpop.permute.xlu0 %172
    %174 = vset.pattern.permute.xlu0 0
    %175 = vperm.xlu0 %174, %v98
    %v176 = vpop.permute.xlu0 %175
    %177 = vset.pattern.permute.xlu0 0
    %178 = vperm.xlu0 %177, %v99
    %v179 = vpop.permute.xlu0 %178
    %180 = vset.pattern.permute.xlu0 0
    %181 = vperm.xlu0 %180, %v100
    %v182 = vpop.permute.xlu0 %181
    %183 = vset.pattern.permute.xlu0 0
    %184 = vperm.xlu0 %183, %v101
    %v185 = vpop.permute.xlu0 %184
    %186 = vset.pattern.permute.xlu0 0
    %187 = vperm.xlu0 %186, %v102
    %v188 = vpop.permute.xlu0 %187
    %189 = vset.pattern.permute.xlu0 0
    %190 = vperm.xlu0 %189, %v103
    %v191 = vpop.permute.xlu0 %190
    %192 = vset.pattern.permute.xlu0 0
    %193 = vperm.xlu0 %192, %v104
    %v194 = vpop.permute.xlu0 %193
    %195 = vset.pattern.permute.xlu0 0
    %196 = vperm.xlu0 %195, %v105
    %v197 = vpop.permute.xlu0 %196
    %198 = vset.pattern.permute.xlu0 0
    %199 = vperm.xlu0 %198, %v106
    %v200 = vpop.permute.xlu0 %199
    %201 = vset.pattern.permute.xlu0 0
    %202 = vperm.xlu0 %201, %v107
    %v203 = vpop.permute.xlu0 %202
    %vm204 = vcmp.eq.s32.totalorder %v110, %v75
    %vm205 = vcmp.eq.s32.totalorder %v113, %v75
    %vm206 = vcmp.eq.s32.totalorder %v116, %v75
    %vm207 = vcmp.eq.s32.totalorder %v119, %v75
    %vm208 = vcmp.eq.s32.totalorder %v122, %v75
    %vm209 = vcmp.eq.s32.totalorder %v125, %v75
    %vm210 = vcmp.eq.s32.totalorder %v128, %v75
    %vm211 = vcmp.eq.s32.totalorder %v131, %v75
    %vm212 = vcmp.eq.s32.totalorder %v134, %v75
    %vm213 = vcmp.eq.s32.totalorder %v137, %v75
    %vm214 = vcmp.eq.s32.totalorder %v140, %v75
    %vm215 = vcmp.eq.s32.totalorder %v143, %v75
    %vm216 = vcmp.eq.s32.totalorder %v146, %v75
    %vm217 = vcmp.eq.s32.totalorder %v149, %v75
    %vm218 = vcmp.eq.s32.totalorder %v152, %v75
    %vm219 = vcmp.eq.s32.totalorder %v155, %v75
    %vm220 = vcmp.eq.s32.totalorder %v158, %v75
    %vm221 = vcmp.eq.s32.totalorder %v161, %v75
    %vm222 = vcmp.eq.s32.totalorder %v164, %v75
    %vm223 = vcmp.eq.s32.totalorder %v167, %v75
    %vm224 = vcmp.eq.s32.totalorder %v170, %v75
    %vm225 = vcmp.eq.s32.totalorder %v173, %v75
    %vm226 = vcmp.eq.s32.totalorder %v176, %v75
    %vm227 = vcmp.eq.s32.totalorder %v179, %v75
    %vm228 = vcmp.eq.s32.totalorder %v182, %v75
    %vm229 = vcmp.eq.s32.totalorder %v185, %v75
    %vm230 = vcmp.eq.s32.totalorder %v188, %v75
    %vm231 = vcmp.eq.s32.totalorder %v191, %v75
    %vm232 = vcmp.eq.s32.totalorder %v194, %v75
    %vm233 = vcmp.eq.s32.totalorder %v197, %v75
    %vm234 = vcmp.eq.s32.totalorder %v200, %v75
    %vm235 = vcmp.eq.s32.totalorder %v203, %v75
    %v236 = vsel %vm204, 1, 0
    %v237 = vsel %vm205, 1, 0
    %v238 = vsel %vm206, 1, 0
    %v239 = vsel %vm207, 1, 0
    %v240 = vsel %vm208, 1, 0
    %v241 = vsel %vm209, 1, 0
    %v242 = vsel %vm210, 1, 0
    %v243 = vsel %vm211, 1, 0
    %v244 = vsel %vm212, 1, 0
    %v245 = vsel %vm213, 1, 0
    %v246 = vsel %vm214, 1, 0
    %v247 = vsel %vm215, 1, 0
    %v248 = vsel %vm216, 1, 0
    %v249 = vsel %vm217, 1, 0
    %v250 = vsel %vm218, 1, 0
    %v251 = vsel %vm219, 1, 0
    %v252 = vsel %vm220, 1, 0
    %v253 = vsel %vm221, 1, 0
    %v254 = vsel %vm222, 1, 0
    %v255 = vsel %vm223, 1, 0
    %v256 = vsel %vm224, 1, 0
    %v257 = vsel %vm225, 1, 0
    %v258 = vsel %vm226, 1, 0
    %v259 = vsel %vm227, 1, 0
    %v260 = vsel %vm228, 1, 0
    %v261 = vsel %vm229, 1, 0
    %v262 = vsel %vm230, 1, 0
    %v263 = vsel %vm231, 1, 0
    %v264 = vsel %vm232, 1, 0
    %v265 = vsel %vm233, 1, 0
    %v266 = vsel %vm234, 1, 0
    %v267 = vsel %vm235, 1, 0
    %v268 = vcvt.s32.f32 %v236
    %v269 = vcvt.s32.f32 %v237
    %v270 = vcvt.s32.f32 %v238
    %v271 = vcvt.s32.f32 %v239
    %v272 = vcvt.s32.f32 %v240
    %v273 = vcvt.s32.f32 %v241
    %v274 = vcvt.s32.f32 %v242
    %v275 = vcvt.s32.f32 %v243
    %v276 = vcvt.s32.f32 %v244
    %v277 = vcvt.s32.f32 %v245
    %v278 = vcvt.s32.f32 %v246
    %v279 = vcvt.s32.f32 %v247
    %v280 = vcvt.s32.f32 %v248
    %v281 = vcvt.s32.f32 %v249
    %v282 = vcvt.s32.f32 %v250
    %v283 = vcvt.s32.f32 %v251
    %v284 = vcvt.s32.f32 %v252
    %v285 = vcvt.s32.f32 %v253
    %v286 = vcvt.s32.f32 %v254
    %v287 = vcvt.s32.f32 %v255
    %v288 = vcvt.s32.f32 %v256
    %v289 = vcvt.s32.f32 %v257
    %v290 = vcvt.s32.f32 %v258
    %v291 = vcvt.s32.f32 %v259
    %v292 = vcvt.s32.f32 %v260
    %v293 = vcvt.s32.f32 %v261
    %v294 = vcvt.s32.f32 %v262
    %v295 = vcvt.s32.f32 %v263
    %v296 = vcvt.s32.f32 %v264
    %v297 = vcvt.s32.f32 %v265
    %v298 = vcvt.s32.f32 %v266
    %v299 = vcvt.s32.f32 %v267
    %v300 = vld [vmem:[#allocation4] sm:$0xff]
    %v301 = vld [vmem:[#allocation4 + $0x8] sm:$0xff]
    %v302 = vld [vmem:[#allocation4 + $0x10] sm:$0xff]
    %v303 = vld [vmem:[#allocation4 + $0x18] sm:$0xff]
    %v304 = vld [vmem:[#allocation4 + $0x20] sm:$0xff]
    %v305 = vld [vmem:[#allocation4 + $0x28] sm:$0xff]
    %v306 = vld [vmem:[#allocation4 + $0x30] sm:$0xff]
    %v307 = vld [vmem:[#allocation4 + $0x38] sm:$0xff]
    %v308 = vld [vmem:[#allocation4 + $0x40] sm:$0xff]
    %v309 = vld [vmem:[#allocation4 + $0x48] sm:$0xff]
    %v310 = vld [vmem:[#allocation4 + $0x50] sm:$0xff]
    %v311 = vld [vmem:[#allocation4 + $0x58] sm:$0xff]
    %v312 = vld [vmem:[#allocation4 + $0x60] sm:$0xff]
    %v313 = vld [vmem:[#allocation4 + $0x68] sm:$0xff]
    %v314 = vld [vmem:[#allocation4 + $0x70] sm:$0xff]
    %v315 = vld [vmem:[#allocation4 + $0x78] sm:$0xff]
    %316 = vmatprep.subr.mxu0 0.0
    %317 = vmatpush1.msra.mxu0 %v300
    %318 = vmatprep.subr.mxu0 0.0
    %319 = vmatpush1.msra.mxu0 %v301
    %320 = vmatprep.subr.mxu0 0.0
    %321 = vmatpush1.msra.mxu0 %v302
    %322 = vmatprep.subr.mxu0 0.0
    %323 = vmatpush1.msra.mxu0 %v303
    %324 = vmatprep.subr.mxu0 0.0
    %325 = vmatpush1.msra.mxu0 %v304
    %326 = vmatprep.subr.mxu0 0.0
    %327 = vmatpush1.msra.mxu0 %v305
    %328 = vmatprep.subr.mxu0 0.0
    %329 = vmatpush1.msra.mxu0 %v306
    %330 = vmatprep.subr.mxu0 0.0
    %331 = vmatpush1.msra.mxu0 %v307
    %332 = vmatprep.subr.mxu0 0.0
    %333 = vmatpush1.msra.mxu0 %v308
    %334 = vmatprep.subr.mxu0 0.0
    %335 = vmatpush1.msra.mxu0 %v309
    %336 = vmatprep.subr.mxu0 0.0
    %337 = vmatpush1.msra.mxu0 %v310
    %338 = vmatprep.subr.mxu0 0.0
    %339 = vmatpush1.msra.mxu0 %v311
    %340 = vmatprep.subr.mxu0 0.0
    %341 = vmatpush1.msra.mxu0 %v312
    %342 = vmatprep.subr.mxu0 0.0
    %343 = vmatpush1.msra.mxu0 %v313
    %344 = vmatprep.subr.mxu0 0.0
    %345 = vmatpush1.msra.mxu0 %v314
    %346 = vmatprep.subr.mxu0 0.0
    %347 = vmatpush1.msra.mxu0 %v315
    %348 = vmatprep.subr.mxu0 0.0
    %349 = vmatpush1.msra.mxu0 0.0
    %350 = vmatprep.subr.mxu0 0.0
    %351 = vmatpush1.msra.mxu0 0.0
    %352 = vmatprep.subr.mxu0 0.0
    %353 = vmatpush1.msra.mxu0 0.0
    %354 = vmatprep.subr.mxu0 0.0
    %355 = vmatpush1.msra.mxu0 0.0
    %356 = vmatprep.subr.mxu0 0.0
    %357 = vmatpush1.msra.mxu0 0.0
    %358 = vmatprep.subr.mxu0 0.0
    %359 = vmatpush1.msra.mxu0 0.0
    %360 = vmatprep.subr.mxu0 0.0
    %361 = vmatpush1.msra.mxu0 0.0
    %362 = vmatprep.subr.mxu0 0.0
    %363 = vmatpush1.msra.mxu0 0.0
    %364 = vmatprep.subr.mxu0 0.0
    %365 = vmatpush1.msra.mxu0 0.0
    %366 = vmatprep.subr.mxu0 0.0
    %367 = vmatpush1.msra.mxu0 0.0
    %368 = vmatprep.subr.mxu0 0.0
    %369 = vmatpush1.msra.mxu0 0.0
    %370 = vmatprep.subr.mxu0 0.0
    %371 = vmatpush1.msra.mxu0 0.0
    %372 = vmatprep.subr.mxu0 0.0
    %373 = vmatpush1.msra.mxu0 0.0
    %374 = vmatprep.subr.mxu0 0.0
    %375 = vmatpush1.msra.mxu0 0.0
    %376 = vmatprep.subr.mxu0 0.0
    %377 = vmatpush1.msra.mxu0 0.0
    %378 = vmatprep.subr.mxu0 0.0
    %379 = vmatpush1.msra.mxu0 0.0
    %380 = vmatprep.mubr.f32.mxu0 0.0
    %381 = vmatmul.mubr.f32.gmra.mrb[0].mxu0 %v268
    %v382 = vpop.f32.mrb[0].mxu0
    %v383 = vadd.f32 0.0, %v382
    %v384 = vpop.f32.mrb[0].mxu0
    %385 = vmatprep.mubr.f32.mxu0 0.0
    %386 = vmatmul.mubr.f32.gmra.mrb[0].mxu0 %v269
    %v387 = vpop.f32.mrb[0].mxu0
    %v388 = vadd.f32 0.0, %v387
    %v389 = vpop.f32.mrb[0].mxu0
    %390 = vmatprep.mubr.f32.mxu0 0.0
    %391 = vmatmul.mubr.f32.gmra.mrb[0].mxu0 %v270
    %v392 = vpop.f32.mrb[0].mxu0
    %v393 = vadd.f32 0.0, %v392
    %v394 = vpop.f32.mrb[0].mxu0
    %395 = vmatprep.mubr.f32.mxu0 0.0
    %396 = vmatmul.mubr.f32.gmra.mrb[0].mxu0 %v271
    %v397 = vpop.f32.mrb[0].mxu0
    %v398 = vadd.f32 0.0, %v397
    %v399 = vpop.f32.mrb[0].mxu0
    %400 = vmatprep.mubr.f32.mxu0 0.0
    %401 = vmatmul.mubr.f32.gmra.mrb[0].mxu0 %v272
    %v402 = vpop.f32.mrb[0].mxu0
    %v403 = vadd.f32 0.0, %v402
    %v404 = vpop.f32.mrb[0].mxu0
    %405 = vmatprep.mubr.f32.mxu0 0.0
    %406 = vmatmul.mubr.f32.gmra.mrb[0].mxu0 %v273
    %v407 = vpop.f32.mrb[0].mxu0
    %v408 = vadd.f32 0.0, %v407
    %v409 = vpop.f32.mrb[0].mxu0
    %410 = vmatprep.mubr.f32.mxu0 0.0
    %411 = vmatmul.mubr.f32.gmra.mrb[0].mxu0 %v274
    %v412 = vpop.f32.mrb[0].mxu0
    %v413 = vadd.f32 0.0, %v412
    %v414 = vpop.f32.mrb[0].mxu0
    %415 = vmatprep.mubr.f32.mxu0 0.0
    %416 = vmatmul.mubr.f32.gmra.mrb[0].mxu0 %v275
    %v417 = vpop.f32.mrb[0].mxu0
    %v418 = vadd.f32 0.0, %v417
    %v419 = vpop.f32.mrb[0].mxu0
    %420 = vmatprep.mubr.f32.mxu0 0.0
    %421 = vmatmul.mubr.f32.gmra.mrb[0].mxu0 %v276
    %v422 = vpop.f32.mrb[0].mxu0
    %v423 = vadd.f32 0.0, %v422
    %v424 = vpop.f32.mrb[0].mxu0
    %425 = vmatprep.mubr.f32.mxu0 0.0
    %426 = vmatmul.mubr.f32.gmra.mrb[0].mxu0 %v277
    %v427 = vpop.f32.mrb[0].mxu0
    %v428 = vadd.f32 0.0, %v427
    %v429 = vpop.f32.mrb[0].mxu0
    %430 = vmatprep.mubr.f32.mxu0 0.0
    %431 = vmatmul.mubr.f32.gmra.mrb[0].mxu0 %v278
    %v432 = vpop.f32.mrb[0].mxu0
    %v433 = vadd.f32 0.0, %v432
    %v434 = vpop.f32.mrb[0].mxu0
    %435 = vmatprep.mubr.f32.mxu0 0.0
    %436 = vmatmul.mubr.f32.gmra.mrb[0].mxu0 %v279
    %v437 = vpop.f32.mrb[0].mxu0
    %v438 = vadd.f32 0.0, %v437
    %v439 = vpop.f32.mrb[0].mxu0
    %440 = vmatprep.mubr.f32.mxu0 0.0
    %441 = vmatmul.mubr.f32.gmra.mrb[0].mxu0 %v280
    %v442 = vpop.f32.mrb[0].mxu0
    %v443 = vadd.f32 0.0, %v442
    %v444 = vpop.f32.mrb[0].mxu0
    %445 = vmatprep.mubr.f32.mxu0 0.0
    %446 = vmatmul.mubr.f32.gmra.mrb[0].mxu0 %v281
    %v447 = vpop.f32.mrb[0].mxu0
    %v448 = vadd.f32 0.0, %v447
    %v449 = vpop.f32.mrb[0].mxu0
    %450 = vmatprep.mubr.f32.mxu0 0.0
    %451 = vmatmul.mubr.f32.gmra.mrb[0].mxu0 %v282
    %v452 = vpop.f32.mrb[0].mxu0
    %v453 = vadd.f32 0.0, %v452
    %v454 = vpop.f32.mrb[0].mxu0
    %455 = vmatprep.mubr.f32.mxu0 0.0
    %456 = vmatmul.mubr.f32.gmra.mrb[0].mxu0 %v283
    %v457 = vpop.f32.mrb[0].mxu0
    %v458 = vadd.f32 0.0, %v457
    %v459 = vpop.f32.mrb[0].mxu0
    %460 = vmatprep.mubr.f32.mxu0 0.0
    %461 = vmatmul.mubr.f32.gmra.mrb[0].mxu0 %v284
    %v462 = vpop.f32.mrb[0].mxu0
    %v463 = vadd.f32 0.0, %v462
    %v464 = vpop.f32.mrb[0].mxu0
    %465 = vmatprep.mubr.f32.mxu0 0.0
    %466 = vmatmul.mubr.f32.gmra.mrb[0].mxu0 %v285
    %v467 = vpop.f32.mrb[0].mxu0
    %v468 = vadd.f32 0.0, %v467
    %v469 = vpop.f32.mrb[0].mxu0
    %470 = vmatprep.mubr.f32.mxu0 0.0
    %471 = vmatmul.mubr.f32.gmra.mrb[0].mxu0 %v286
    %v472 = vpop.f32.mrb[0].mxu0
    %v473 = vadd.f32 0.0, %v472
    %v474 = vpop.f32.mrb[0].mxu0
    %475 = vmatprep.mubr.f32.mxu0 0.0
    %476 = vmatmul.mubr.f32.gmra.mrb[0].mxu0 %v287
    %v477 = vpop.f32.mrb[0].mxu0
    %v478 = vadd.f32 0.0, %v477
    %v479 = vpop.f32.mrb[0].mxu0
    %480 = vmatprep.mubr.f32.mxu0 0.0
    %481 = vmatmul.mubr.f32.gmra.mrb[0].mxu0 %v288
    %v482 = vpop.f32.mrb[0].mxu0
    %v483 = vadd.f32 0.0, %v482
    %v484 = vpop.f32.mrb[0].mxu0
    %485 = vmatprep.mubr.f32.mxu0 0.0
    %486 = vmatmul.mubr.f32.gmra.mrb[0].mxu0 %v289
    %v487 = vpop.f32.mrb[0].mxu0
    %v488 = vadd.f32 0.0, %v487
    %v489 = vpop.f32.mrb[0].mxu0
    %490 = vmatprep.mubr.f32.mxu0 0.0
    %491 = vmatmul.mubr.f32.gmra.mrb[0].mxu0 %v290
    %v492 = vpop.f32.mrb[0].mxu0
    %v493 = vadd.f32 0.0, %v492
    %v494 = vpop.f32.mrb[0].mxu0
    %495 = vmatprep.mubr.f32.mxu0 0.0
    %496 = vmatmul.mubr.f32.gmra.mrb[0].mxu0 %v291
    %v497 = vpop.f32.mrb[0].mxu0
    %v498 = vadd.f32 0.0, %v497
    %v499 = vpop.f32.mrb[0].mxu0
    %500 = vmatprep.mubr.f32.mxu0 0.0
    %501 = vmatmul.mubr.f32.gmra.mrb[0].mxu0 %v292
    %v502 = vpop.f32.mrb[0].mxu0
    %v503 = vadd.f32 0.0, %v502
    %v504 = vpop.f32.mrb[0].mxu0
    %505 = vmatprep.mubr.f32.mxu0 0.0
    %506 = vmatmul.mubr.f32.gmra.mrb[0].mxu0 %v293
    %v507 = vpop.f32.mrb[0].mxu0
    %v508 = vadd.f32 0.0, %v507
    %v509 = vpop.f32.mrb[0].mxu0
    %510 = vmatprep.mubr.f32.mxu0 0.0
    %511 = vmatmul.mubr.f32.gmra.mrb[0].mxu0 %v294
    %v512 = vpop.f32.mrb[0].mxu0
    %v513 = vadd.f32 0.0, %v512
    %v514 = vpop.f32.mrb[0].mxu0
    %515 = vmatprep.mubr.f32.mxu0 0.0
    %516 = vmatmul.mubr.f32.gmra.mrb[0].mxu0 %v295
    %v517 = vpop.f32.mrb[0].mxu0
    %v518 = vadd.f32 0.0, %v517
    %v519 = vpop.f32.mrb[0].mxu0
    %520 = vmatprep.mubr.f32.mxu0 0.0
    %521 = vmatmul.mubr.f32.gmra.mrb[0].mxu0 %v296
    %v522 = vpop.f32.mrb[0].mxu0
    %v523 = vadd.f32 0.0, %v522
    %v524 = vpop.f32.mrb[0].mxu0
    %525 = vmatprep.mubr.f32.mxu0 0.0
    %526 = vmatmul.mubr.f32.gmra.mrb[0].mxu0 %v297
    %v527 = vpop.f32.mrb[0].mxu0
    %v528 = vadd.f32 0.0, %v527
    %v529 = vpop.f32.mrb[0].mxu0
    %530 = vmatprep.mubr.f32.mxu0 0.0
    %531 = vmatmul.mubr.f32.gmra.mrb[0].mxu0 %v298
    %v532 = vpop.f32.mrb[0].mxu0
    %v533 = vadd.f32 0.0, %v532
    %v534 = vpop.f32.mrb[0].mxu0
    %535 = vmatprep.mubr.f32.mxu0 0.0
    %536 = vmatmul.mubr.f32.gmra.mrb[0].mxu0 %v299
    %v537 = vpop.f32.mrb[0].mxu0
    %v538 = vadd.f32 0.0, %v537
    %v539 = vpop.f32.mrb[0].mxu0
    %540 = vdwg.mxu0
    %541 = vst [vmem:[#allocation2] sm:$0xff] %v383
    %542 = vst [vmem:[#allocation2 + $0x8] sm:$0xff] %v388
    %543 = vst [vmem:[#allocation2 + $0x10] sm:$0xff] %v393
    %544 = vst [vmem:[#allocation2 + $0x18] sm:$0xff] %v398
    %545 = vst [vmem:[#allocation2 + $0x20] sm:$0xff] %v403
    %546 = vst [vmem:[#allocation2 + $0x28] sm:$0xff] %v408
    %547 = vst [vmem:[#allocation2 + $0x30] sm:$0xff] %v413
    %548 = vst [vmem:[#allocation2 + $0x38] sm:$0xff] %v418
    %549 = vst [vmem:[#allocation2 + $0x40] sm:$0xff] %v423
    %550 = vst [vmem:[#allocation2 + $0x48] sm:$0xff] %v428
    %551 = vst [vmem:[#allocation2 + $0x50] sm:$0xff] %v433
    %552 = vst [vmem:[#allocation2 + $0x58] sm:$0xff] %v438
    %553 = vst [vmem:[#allocation2 + $0x60] sm:$0xff] %v443
    %554 = vst [vmem:[#allocation2 + $0x68] sm:$0xff] %v448
    %555 = vst [vmem:[#allocation2 + $0x70] sm:$0xff] %v453
    %556 = vst [vmem:[#allocation2 + $0x78] sm:$0xff] %v458
    %557 = vst [vmem:[#allocation2 + $0x80] sm:$0xff] %v463
    %558 = vst [vmem:[#allocation2 + $0x88] sm:$0xff] %v468
    %559 = vst [vmem:[#allocation2 + $0x90] sm:$0xff] %v473
    %560 = vst [vmem:[#allocation2 + $0x98] sm:$0xff] %v478
    %561 = vst [vmem:[#allocation2 + $0xa0] sm:$0xff] %v483
    %562 = vst [vmem:[#allocation2 + $0xa8] sm:$0xff] %v488
    %563 = vst [vmem:[#allocation2 + $0xb0] sm:$0xff] %v493
    %564 = vst [vmem:[#allocation2 + $0xb8] sm:$0xff] %v498
    %565 = vst [vmem:[#allocation2 + $0xc0] sm:$0xff] %v503
    %566 = vst [vmem:[#allocation2 + $0xc8] sm:$0xff] %v508
    %567 = vst [vmem:[#allocation2 + $0xd0] sm:$0xff] %v513
    %568 = vst [vmem:[#allocation2 + $0xd8] sm:$0xff] %v518
    %569 = vst [vmem:[#allocation2 + $0xe0] sm:$0xff] %v523
    %570 = vst [vmem:[#allocation2 + $0xe8] sm:$0xff] %v528
    %571 = vst [vmem:[#allocation2 + $0xf0] sm:$0xff] %v533
    %572 = vst [vmem:[#allocation2 + $0xf8] sm:$0xff] %v538
    %v573 = vld [vmem:[#allocation2] sm:$0xff]
    %v574 = vld [vmem:[#allocation2 + $0x8] sm:$0xff]
    %v575 = vld [vmem:[#allocation2 + $0x10] sm:$0xff]
    %v576 = vld [vmem:[#allocation2 + $0x18] sm:$0xff]
    %v577 = vld [vmem:[#allocation2 + $0x20] sm:$0xff]
    %v578 = vld [vmem:[#allocation2 + $0x28] sm:$0xff]
    %v579 = vld [vmem:[#allocation2 + $0x30] sm:$0xff]
    %v580 = vld [vmem:[#allocation2 + $0x38] sm:$0xff]
    %v581 = vld [vmem:[#allocation2 + $0x40] sm:$0xff]
    %v582 = vld [vmem:[#allocation2 + $0x48] sm:$0xff]
    %v583 = vld [vmem:[#allocation2 + $0x50] sm:$0xff]
    %v584 = vld [vmem:[#allocation2 + $0x58] sm:$0xff]
    %v585 = vld [vmem:[#allocation2 + $0x60] sm:$0xff]
    %v586 = vld [vmem:[#allocation2 + $0x68] sm:$0xff]
    %v587 = vld [vmem:[#allocation2 + $0x70] sm:$0xff]
    %v588 = vld [vmem:[#allocation2 + $0x78] sm:$0xff]
    %v589 = vld [vmem:[#allocation2 + $0x80] sm:$0xff]
    %v590 = vld [vmem:[#allocation2 + $0x88] sm:$0xff]
    %v591 = vld [vmem:[#allocation2 + $0x90] sm:$0xff]
    %v592 = vld [vmem:[#allocation2 + $0x98] sm:$0xff]
    %v593 = vld [vmem:[#allocation2 + $0xa0] sm:$0xff]
    %v594 = vld [vmem:[#allocation2 + $0xa8] sm:$0xff]
    %v595 = vld [vmem:[#allocation2 + $0xb0] sm:$0xff]
    %v596 = vld [vmem:[#allocation2 + $0xb8] sm:$0xff]
    %v597 = vld [vmem:[#allocation2 + $0xc0] sm:$0xff]
    %v598 = vld [vmem:[#allocation2 + $0xc8] sm:$0xff]
    %v599 = vld [vmem:[#allocation2 + $0xd0] sm:$0xff]
    %v600 = vld [vmem:[#allocation2 + $0xd8] sm:$0xff]
    %v601 = vld [vmem:[#allocation2 + $0xe0] sm:$0xff]
    %v602 = vld [vmem:[#allocation2 + $0xe8] sm:$0xff]
    %v603 = vld [vmem:[#allocation2 + $0xf0] sm:$0xff]
    %v604 = vld [vmem:[#allocation2 + $0xf8] sm:$0xff]
    %v605 = vpack.c.bf16 %v574, %v573
    %v606 = vpack.c.bf16 %v576, %v575
    %v607 = vpack.c.bf16 %v578, %v577
    %v608 = vpack.c.bf16 %v580, %v579
    %v609 = vpack.c.bf16 %v582, %v581
    %v610 = vpack.c.bf16 %v584, %v583
    %v611 = vpack.c.bf16 %v586, %v585
    %v612 = vpack.c.bf16 %v588, %v587
    %v613 = vpack.c.bf16 %v590, %v589
    %v614 = vpack.c.bf16 %v592, %v591
    %v615 = vpack.c.bf16 %v594, %v593
    %v616 = vpack.c.bf16 %v596, %v595
    %v617 = vpack.c.bf16 %v598, %v597
    %v618 = vpack.c.bf16 %v600, %v599
    %v619 = vpack.c.bf16 %v602, %v601
    %v620 = vpack.c.bf16 %v604, %v603
    %v621 = vld [vmem:[%s2] sm:$0xf]
    %v622 = vld [vmem:[%s2 + $0x4] sm:$0xf]
    %v623 = vld [vmem:[%s2 + $0x8] sm:$0xf]
    %v624 = vld [vmem:[%s2 + $0xc] sm:$0xf]
    %v625 = vld [vmem:[%s2 + $0x10] sm:$0xf]
    %v626 = vld [vmem:[%s2 + $0x14] sm:$0xf]
    %v627 = vld [vmem:[%s2 + $0x18] sm:$0xf]
    %v628 = vld [vmem:[%s2 + $0x1c] sm:$0xf]
    %v629 = vld [vmem:[%s2 + $0x20] sm:$0xf]
    %v630 = vld [vmem:[%s2 + $0x24] sm:$0xf]
    %v631 = vld [vmem:[%s2 + $0x28] sm:$0xf]
    %v632 = vld [vmem:[%s2 + $0x2c] sm:$0xf]
    %v633 = vld [vmem:[%s2 + $0x30] sm:$0xf]
    %v634 = vld [vmem:[%s2 + $0x34] sm:$0xf]
    %v635 = vld [vmem:[%s2 + $0x38] sm:$0xf]
    %v636 = vld [vmem:[%s2 + $0x3c] sm:$0xf]
    %v637 = vld [vmem:[#allocation2 + $0x1] sm:$0xff]
    %v638 = vld [vmem:[#allocation2 + $0x9] sm:$0xff]
    %v639 = vld [vmem:[#allocation2 + $0x11] sm:$0xff]
    %v640 = vld [vmem:[#allocation2 + $0x19] sm:$0xff]
    %v641 = vld [vmem:[#allocation2 + $0x21] sm:$0xff]
    %v642 = vld [vmem:[#allocation2 + $0x29] sm:$0xff]
    %v643 = vld [vmem:[#allocation2 + $0x31] sm:$0xff]
    %v644 = vld [vmem:[#allocation2 + $0x39] sm:$0xff]
    %v645 = vld [vmem:[#allocation2 + $0x41] sm:$0xff]
    %v646 = vld [vmem:[#allocation2 + $0x49] sm:$0xff]
    %v647 = vld [vmem:[#allocation2 + $0x51] sm:$0xff]
    %v648 = vld [vmem:[#allocation2 + $0x59] sm:$0xff]
    %v649 = vld [vmem:[#allocation2 + $0x61] sm:$0xff]
    %v650 = vld [vmem:[#allocation2 + $0x69] sm:$0xff]
    %v651 = vld [vmem:[#allocation2 + $0x71] sm:$0xff]
    %v652 = vld [vmem:[#allocation2 + $0x79] sm:$0xff]
    %v653 = vld [vmem:[#allocation2 + $0x81] sm:$0xff]
    %v654 = vld [vmem:[#allocation2 + $0x89] sm:$0xff]
    %v655 = vld [vmem:[#allocation2 + $0x91] sm:$0xff]
    %v656 = vld [vmem:[#allocation2 + $0x99] sm:$0xff]
    %v657 = vld [vmem:[#allocation2 + $0xa1] sm:$0xff]
    %v658 = vld [vmem:[#allocation2 + $0xa9] sm:$0xff]
    %v659 = vld [vmem:[#allocation2 + $0xb1] sm:$0xff]
    %v660 = vld [vmem:[#allocation2 + $0xb9] sm:$0xff]
    %v661 = vld [vmem:[#allocation2 + $0xc1] sm:$0xff]
    %v662 = vld [vmem:[#allocation2 + $0xc9] sm:$0xff]
    %v663 = vld [vmem:[#allocation2 + $0xd1] sm:$0xff]
    %v664 = vld [vmem:[#allocation2 + $0xd9] sm:$0xff]
    %v665 = vld [vmem:[#allocation2 + $0xe1] sm:$0xff]
    %v666 = vld [vmem:[#allocation2 + $0xe9] sm:$0xff]
    %v667 = vld [vmem:[#allocation2 + $0xf1] sm:$0xff]
    %v668 = vld [vmem:[#allocation2 + $0xf9] sm:$0xff]
    %v669 = vpack.c.bf16 %v638, %v637
    %v670 = vpack.c.bf16 %v640, %v639
    %v671 = vpack.c.bf16 %v642, %v641
    %v672 = vpack.c.bf16 %v644, %v643
    %v673 = vpack.c.bf16 %v646, %v645
    %v674 = vpack.c.bf16 %v648, %v647
    %v675 = vpack.c.bf16 %v650, %v649
    %v676 = vpack.c.bf16 %v652, %v651
    %v677 = vpack.c.bf16 %v654, %v653
    %v678 = vpack.c.bf16 %v656, %v655
    %v679 = vpack.c.bf16 %v658, %v657
    %v680 = vpack.c.bf16 %v660, %v659
    %v681 = vpack.c.bf16 %v662, %v661
    %v682 = vpack.c.bf16 %v664, %v663
    %v683 = vpack.c.bf16 %v666, %v665
    %v684 = vpack.c.bf16 %v668, %v667
    %s685 = scalar_lea.vmem %s2, 64
    %v686 = vld [vmem:[%s685] sm:$0xf]
    %v687 = vld [vmem:[%s685 + $0x4] sm:$0xf]
    %v688 = vld [vmem:[%s685 + $0x8] sm:$0xf]
    %v689 = vld [vmem:[%s685 + $0xc] sm:$0xf]
    %v690 = vld [vmem:[%s685 + $0x10] sm:$0xf]
    %v691 = vld [vmem:[%s685 + $0x14] sm:$0xf]
    %v692 = vld [vmem:[%s685 + $0x18] sm:$0xf]
    %v693 = vld [vmem:[%s685 + $0x1c] sm:$0xf]
    %v694 = vld [vmem:[%s685 + $0x20] sm:$0xf]
    %v695 = vld [vmem:[%s685 + $0x24] sm:$0xf]
    %v696 = vld [vmem:[%s685 + $0x28] sm:$0xf]
    %v697 = vld [vmem:[%s685 + $0x2c] sm:$0xf]
    %v698 = vld [vmem:[%s685 + $0x30] sm:$0xf]
    %v699 = vld [vmem:[%s685 + $0x34] sm:$0xf]
    %v700 = vld [vmem:[%s685 + $0x38] sm:$0xf]
    %v701 = vld [vmem:[%s685 + $0x3c] sm:$0xf]
    %v718 = vunpack.c.l.b16 %v686
    %v719 = vunpack.c.l.b16 %v687
    %v720 = vunpack.c.l.b16 %v688
    %v721 = vunpack.c.l.b16 %v689
    %v722 = vunpack.c.l.b16 %v690
    %v723 = vunpack.c.l.b16 %v691
    %v724 = vunpack.c.l.b16 %v692
    %v725 = vunpack.c.l.b16 %v693
    %v726 = vunpack.c.l.b16 %v694
    %v727 = vunpack.c.l.b16 %v695
    %v728 = vunpack.c.l.b16 %v696
    %v729 = vunpack.c.l.b16 %v697
    %v730 = vunpack.c.l.b16 %v698
    %v731 = vunpack.c.l.b16 %v699
    %v732 = vunpack.c.l.b16 %v700
    %v733 = vunpack.c.l.b16 %v701
    %v734 = vpack.c.b16 %v719, %v718
    %v735 = vpack.c.b16 %v721, %v720
    %v736 = vpack.c.b16 %v723, %v722
    %v737 = vpack.c.b16 %v725, %v724
    %v738 = vpack.c.b16 %v727, %v726
    %v739 = vpack.c.b16 %v729, %v728
    %v740 = vpack.c.b16 %v731, %v730
    %v741 = vpack.c.b16 %v733, %v732
    %750 = vmatprep.subr.bf16.mxu0 0
    %751 = vmatpush1.bf16.msra.mxu0 %v734
    %752 = vmatprep.subr.bf16.mxu0 0
    %753 = vmatpush1.bf16.msra.mxu0 %v735
    %754 = vmatprep.subr.bf16.mxu0 0
    %755 = vmatpush1.bf16.msra.mxu0 %v736
    %756 = vmatprep.subr.bf16.mxu0 0
    %757 = vmatpush1.bf16.msra.mxu0 %v737
    %758 = vmatprep.subr.bf16.mxu0 0
    %759 = vmatpush1.bf16.msra.mxu0 %v738
    %760 = vmatprep.subr.bf16.mxu0 0
    %761 = vmatpush1.bf16.msra.mxu0 %v739
    %762 = vmatprep.subr.bf16.mxu0 0
    %763 = vmatpush1.bf16.msra.mxu0 %v740
    %764 = vmatprep.subr.bf16.mxu0 0
    %765 = vmatpush1.bf16.msra.mxu0 %v741
    %766 = vmatprep.subr.bf16.mxu0 0
    %767 = vmatpush1.bf16.msra.mxu0 0
    %768 = vmatprep.subr.bf16.mxu0 0
    %769 = vmatpush1.bf16.msra.mxu0 0
    %770 = vmatprep.subr.bf16.mxu0 0
    %771 = vmatpush1.bf16.msra.mxu0 0
    %772 = vmatprep.subr.bf16.mxu0 0
    %773 = vmatpush1.bf16.msra.mxu0 0
    %774 = vmatprep.subr.bf16.mxu0 0
    %775 = vmatpush1.bf16.msra.mxu0 0
    %776 = vmatprep.subr.bf16.mxu0 0
    %777 = vmatpush1.bf16.msra.mxu0 0
    %778 = vmatprep.subr.bf16.mxu0 0
    %779 = vmatpush1.bf16.msra.mxu0 0
    %780 = vmatprep.subr.bf16.mxu0 0
    %781 = vmatpush1.bf16.msra.mxu0 0
    %782 = vmatprep.mubr.bf16.mxu0 0
    %783 = vmatmul.mubr.bf16.gmra.mrb[0].mxu0 %v669
    %v784 = vpop.f32.mrb[0].mxu0
    %v785 = vadd.f32 0.0, %v784
    %v786 = vpop.f32.mrb[0].mxu0
    %v787 = vpop.f32.mrb[0].mxu0
    %v788 = vadd.f32 0.0, %v787
    %v789 = vpop.f32.mrb[0].mxu0
    %790 = vmatprep.mubr.bf16.mxu0 0
    %791 = vmatmul.mubr.bf16.gmra.mrb[0].mxu0 %v670
    %v792 = vpop.f32.mrb[0].mxu0
    %v793 = vadd.f32 0.0, %v792
    %v794 = vpop.f32.mrb[0].mxu0
    %v795 = vpop.f32.mrb[0].mxu0
    %v796 = vadd.f32 0.0, %v795
    %v797 = vpop.f32.mrb[0].mxu0
    %798 = vmatprep.mubr.bf16.mxu0 0
    %799 = vmatmul.mubr.bf16.gmra.mrb[0].mxu0 %v671
    %v800 = vpop.f32.mrb[0].mxu0
    %v801 = vadd.f32 0.0, %v800
    %v802 = vpop.f32.mrb[0].mxu0
    %v803 = vpop.f32.mrb[0].mxu0
    %v804 = vadd.f32 0.0, %v803
    %v805 = vpop.f32.mrb[0].mxu0
    %806 = vmatprep.mubr.bf16.mxu0 0
    %807 = vmatmul.mubr.bf16.gmra.mrb[0].mxu0 %v672
    %v808 = vpop.f32.mrb[0].mxu0
    %v809 = vadd.f32 0.0, %v808
    %v810 = vpop.f32.mrb[0].mxu0
    %v811 = vpop.f32.mrb[0].mxu0
    %v812 = vadd.f32 0.0, %v811
    %v813 = vpop.f32.mrb[0].mxu0
    %814 = vmatprep.mubr.bf16.mxu0 0
    %815 = vmatmul.mubr.bf16.gmra.mrb[0].mxu0 %v673
    %v816 = vpop.f32.mrb[0].mxu0
    %v817 = vadd.f32 0.0, %v816
    %v818 = vpop.f32.mrb[0].mxu0
    %v819 = vpop.f32.mrb[0].mxu0
    %v820 = vadd.f32 0.0, %v819
    %v821 = vpop.f32.mrb[0].mxu0
    %822 = vmatprep.mubr.bf16.mxu0 0
    %823 = vmatmul.mubr.bf16.gmra.mrb[0].mxu0 %v674
    %v824 = vpop.f32.mrb[0].mxu0
    %v825 = vadd.f32 0.0, %v824
    %v826 = vpop.f32.mrb[0].mxu0
    %v827 = vpop.f32.mrb[0].mxu0
    %v828 = vadd.f32 0.0, %v827
    %v829 = vpop.f32.mrb[0].mxu0
    %830 = vmatprep.mubr.bf16.mxu0 0
    %831 = vmatmul.mubr.bf16.gmra.mrb[0].mxu0 %v675
    %v832 = vpop.f32.mrb[0].mxu0
    %v833 = vadd.f32 0.0, %v832
    %v834 = vpop.f32.mrb[0].mxu0
    %v835 = vpop.f32.mrb[0].mxu0
    %v836 = vadd.f32 0.0, %v835
    %v837 = vpop.f32.mrb[0].mxu0
    %838 = vmatprep.mubr.bf16.mxu0 0
    %839 = vmatmul.mubr.bf16.gmra.mrb[0].mxu0 %v676
    %v840 = vpop.f32.mrb[0].mxu0
    %v841 = vadd.f32 0.0, %v840
    %v842 = vpop.f32.mrb[0].mxu0
    %v843 = vpop.f32.mrb[0].mxu0
    %v844 = vadd.f32 0.0, %v843
    %v845 = vpop.f32.mrb[0].mxu0
    %846 = vmatprep.mubr.bf16.mxu0 0
    %847 = vmatmul.mubr.bf16.gmra.mrb[0].mxu0 %v677
    %v848 = vpop.f32.mrb[0].mxu0
    %v849 = vadd.f32 0.0, %v848
    %v850 = vpop.f32.mrb[0].mxu0
    %v851 = vpop.f32.mrb[0].mxu0
    %v852 = vadd.f32 0.0, %v851
    %v853 = vpop.f32.mrb[0].mxu0
    %854 = vmatprep.mubr.bf16.mxu0 0
    %855 = vmatmul.mubr.bf16.gmra.mrb[0].mxu0 %v678
    %v856 = vpop.f32.mrb[0].mxu0
    %v857 = vadd.f32 0.0, %v856
    %v858 = vpop.f32.mrb[0].mxu0
    %v859 = vpop.f32.mrb[0].mxu0
    %v860 = vadd.f32 0.0, %v859
    %v861 = vpop.f32.mrb[0].mxu0
    %862 = vmatprep.mubr.bf16.mxu0 0
    %863 = vmatmul.mubr.bf16.gmra.mrb[0].mxu0 %v679
    %v864 = vpop.f32.mrb[0].mxu0
    %v865 = vadd.f32 0.0, %v864
    %v866 = vpop.f32.mrb[0].mxu0
    %v867 = vpop.f32.mrb[0].mxu0
    %v868 = vadd.f32 0.0, %v867
    %v869 = vpop.f32.mrb[0].mxu0
    %870 = vmatprep.mubr.bf16.mxu0 0
    %871 = vmatmul.mubr.bf16.gmra.mrb[0].mxu0 %v680
    %v872 = vpop.f32.mrb[0].mxu0
    %v873 = vadd.f32 0.0, %v872
    %v874 = vpop.f32.mrb[0].mxu0
    %v875 = vpop.f32.mrb[0].mxu0
    %v876 = vadd.f32 0.0, %v875
    %v877 = vpop.f32.mrb[0].mxu0
    %878 = vmatprep.mubr.bf16.mxu0 0
    %879 = vmatmul.mubr.bf16.gmra.mrb[0].mxu0 %v681
    %v880 = vpop.f32.mrb[0].mxu0
    %v881 = vadd.f32 0.0, %v880
    %v882 = vpop.f32.mrb[0].mxu0
    %v883 = vpop.f32.mrb[0].mxu0
    %v884 = vadd.f32 0.0, %v883
    %v885 = vpop.f32.mrb[0].mxu0
    %886 = vmatprep.mubr.bf16.mxu0 0
    %887 = vmatmul.mubr.bf16.gmra.mrb[0].mxu0 %v682
    %v888 = vpop.f32.mrb[0].mxu0
    %v889 = vadd.f32 0.0, %v888
    %v890 = vpop.f32.mrb[0].mxu0
    %v891 = vpop.f32.mrb[0].mxu0
    %v892 = vadd.f32 0.0, %v891
    %v893 = vpop.f32.mrb[0].mxu0
    %894 = vmatprep.mubr.bf16.mxu0 0
    %895 = vmatmul.mubr.bf16.gmra.mrb[0].mxu0 %v683
    %v896 = vpop.f32.mrb[0].mxu0
    %v897 = vadd.f32 0.0, %v896
    %v898 = vpop.f32.mrb[0].mxu0
    %v899 = vpop.f32.mrb[0].mxu0
    %v900 = vadd.f32 0.0, %v899
    %v901 = vpop.f32.mrb[0].mxu0
    %902 = vmatprep.mubr.bf16.mxu0 0
    %903 = vmatmul.mubr.bf16.gmra.mrb[0].mxu0 %v684
    %v904 = vpop.f32.mrb[0].mxu0
    %v905 = vadd.f32 0.0, %v904
    %v906 = vpop.f32.mrb[0].mxu0
    %v907 = vpop.f32.mrb[0].mxu0
    %v908 = vadd.f32 0.0, %v907
    %v909 = vpop.f32.mrb[0].mxu0
    %910 = vdwg.mxu0
    %v927 = vunpack.c.l.b16 %v621
    %v928 = vunpack.c.l.b16 %v622
    %v929 = vunpack.c.l.b16 %v623
    %v930 = vunpack.c.l.b16 %v624
    %v931 = vunpack.c.l.b16 %v625
    %v932 = vunpack.c.l.b16 %v626
    %v933 = vunpack.c.l.b16 %v627
    %v934 = vunpack.c.l.b16 %v628
    %v935 = vunpack.c.l.b16 %v629
    %v936 = vunpack.c.l.b16 %v630
    %v937 = vunpack.c.l.b16 %v631
    %v938 = vunpack.c.l.b16 %v632
    %v939 = vunpack.c.l.b16 %v633
    %v940 = vunpack.c.l.b16 %v634
    %v941 = vunpack.c.l.b16 %v635
    %v942 = vunpack.c.l.b16 %v636
    %v943 = vpack.c.b16 %v928, %v927
    %v944 = vpack.c.b16 %v930, %v929
    %v945 = vpack.c.b16 %v932, %v931
    %v946 = vpack.c.b16 %v934, %v933
    %v947 = vpack.c.b16 %v936, %v935
    %v948 = vpack.c.b16 %v938, %v937
    %v949 = vpack.c.b16 %v940, %v939
    %v950 = vpack.c.b16 %v942, %v941
    %959 = vmatprep.subr.bf16.mxu0 0
    %960 = vmatpush1.bf16.msra.mxu0 %v943
    %961 = vmatprep.subr.bf16.mxu0 0
    %962 = vmatpush1.bf16.msra.mxu0 %v944
    %963 = vmatprep.subr.bf16.mxu0 0
    %964 = vmatpush1.bf16.msra.mxu0 %v945
    %965 = vmatprep.subr.bf16.mxu0 0
    %966 = vmatpush1.bf16.msra.mxu0 %v946
    %967 = vmatprep.subr.bf16.mxu0 0
    %968 = vmatpush1.bf16.msra.mxu0 %v947
    %969 = vmatprep.subr.bf16.mxu0 0
    %970 = vmatpush1.bf16.msra.mxu0 %v948
    %971 = vmatprep.subr.bf16.mxu0 0
    %972 = vmatpush1.bf16.msra.mxu0 %v949
    %973 = vmatprep.subr.bf16.mxu0 0
    %974 = vmatpush1.bf16.msra.mxu0 %v950
    %975 = vmatprep.subr.bf16.mxu0 0
    %976 = vmatpush1.bf16.msra.mxu0 0
    %977 = vmatprep.subr.bf16.mxu0 0
    %978 = vmatpush1.bf16.msra.mxu0 0
    %979 = vmatprep.subr.bf16.mxu0 0
    %980 = vmatpush1.bf16.msra.mxu0 0
    %981 = vmatprep.subr.bf16.mxu0 0
    %982 = vmatpush1.bf16.msra.mxu0 0
    %983 = vmatprep.subr.bf16.mxu0 0
    %984 = vmatpush1.bf16.msra.mxu0 0
    %985 = vmatprep.subr.bf16.mxu0 0
    %986 = vmatpush1.bf16.msra.mxu0 0
    %987 = vmatprep.subr.bf16.mxu0 0
    %988 = vmatpush1.bf16.msra.mxu0 0
    %989 = vmatprep.subr.bf16.mxu0 0
    %990 = vmatpush1.bf16.msra.mxu0 0
    %991 = vmatprep.mubr.bf16.mxu0 0
    %992 = vmatmul.mubr.bf16.gmra.mrb[0].mxu0 %v605
    %v993 = vpop.f32.mrb[0].mxu0
    %v994 = vadd.f32 %v785, %v993
    %v995 = vpop.f32.mrb[0].mxu0
    %v996 = vpop.f32.mrb[0].mxu0
    %v997 = vadd.f32 %v788, %v996
    %v998 = vpop.f32.mrb[0].mxu0
    %999 = vmatprep.mubr.bf16.mxu0 0
    %1000 = vmatmul.mubr.bf16.gmra.mrb[0].mxu0 %v606
    %v1001 = vpop.f32.mrb[0].mxu0
    %v1002 = vadd.f32 %v793, %v1001
    %v1003 = vpop.f32.mrb[0].mxu0
    %v1004 = vpop.f32.mrb[0].mxu0
    %v1005 = vadd.f32 %v796, %v1004
    %v1006 = vpop.f32.mrb[0].mxu0
    %1007 = vmatprep.mubr.bf16.mxu0 0
    %1008 = vmatmul.mubr.bf16.gmra.mrb[0].mxu0 %v607
    %v1009 = vpop.f32.mrb[0].mxu0
    %v1010 = vadd.f32 %v801, %v1009
    %v1011 = vpop.f32.mrb[0].mxu0
    %v1012 = vpop.f32.mrb[0].mxu0
    %v1013 = vadd.f32 %v804, %v1012
    %v1014 = vpop.f32.mrb[0].mxu0
    %1015 = vmatprep.mubr.bf16.mxu0 0
    %1016 = vmatmul.mubr.bf16.gmra.mrb[0].mxu0 %v608
    %v1017 = vpop.f32.mrb[0].mxu0
    %v1018 = vadd.f32 %v809, %v1017
    %v1019 = vpop.f32.mrb[0].mxu0
    %v1020 = vpop.f32.mrb[0].mxu0
    %v1021 = vadd.f32 %v812, %v1020
    %v1022 = vpop.f32.mrb[0].mxu0
    %1023 = vmatprep.mubr.bf16.mxu0 0
    %1024 = vmatmul.mubr.bf16.gmra.mrb[0].mxu0 %v609
    %v1025 = vpop.f32.mrb[0].mxu0
    %v1026 = vadd.f32 %v817, %v1025
    %v1027 = vpop.f32.mrb[0].mxu0
    %v1028 = vpop.f32.mrb[0].mxu0
    %v1029 = vadd.f32 %v820, %v1028
    %v1030 = vpop.f32.mrb[0].mxu0
    %1031 = vmatprep.mubr.bf16.mxu0 0
    %1032 = vmatmul.mubr.bf16.gmra.mrb[0].mxu0 %v610
    %v1033 = vpop.f32.mrb[0].mxu0
    %v1034 = vadd.f32 %v825, %v1033
    %v1035 = vpop.f32.mrb[0].mxu0
    %v1036 = vpop.f32.mrb[0].mxu0
    %v1037 = vadd.f32 %v828, %v1036
    %v1038 = vpop.f32.mrb[0].mxu0
    %1039 = vmatprep.mubr.bf16.mxu0 0
    %1040 = vmatmul.mubr.bf16.gmra.mrb[0].mxu0 %v611
    %v1041 = vpop.f32.mrb[0].mxu0
    %v1042 = vadd.f32 %v833, %v1041
    %v1043 = vpop.f32.mrb[0].mxu0
    %v1044 = vpop.f32.mrb[0].mxu0
    %v1045 = vadd.f32 %v836, %v1044
    %v1046 = vpop.f32.mrb[0].mxu0
    %1047 = vmatprep.mubr.bf16.mxu0 0
    %1048 = vmatmul.mubr.bf16.gmra.mrb[0].mxu0 %v612
    %v1049 = vpop.f32.mrb[0].mxu0
    %v1050 = vadd.f32 %v841, %v1049
    %v1051 = vpop.f32.mrb[0].mxu0
    %v1052 = vpop.f32.mrb[0].mxu0
    %v1053 = vadd.f32 %v844, %v1052
    %v1054 = vpop.f32.mrb[0].mxu0
    %1055 = vmatprep.mubr.bf16.mxu0 0
    %1056 = vmatmul.mubr.bf16.gmra.mrb[0].mxu0 %v613
    %v1057 = vpop.f32.mrb[0].mxu0
    %v1058 = vadd.f32 %v849, %v1057
    %v1059 = vpop.f32.mrb[0].mxu0
    %v1060 = vpop.f32.mrb[0].mxu0
    %v1061 = vadd.f32 %v852, %v1060
    %v1062 = vpop.f32.mrb[0].mxu0
    %1063 = vmatprep.mubr.bf16.mxu0 0
    %1064 = vmatmul.mubr.bf16.gmra.mrb[0].mxu0 %v614
    %v1065 = vpop.f32.mrb[0].mxu0
    %v1066 = vadd.f32 %v857, %v1065
    %v1067 = vpop.f32.mrb[0].mxu0
    %v1068 = vpop.f32.mrb[0].mxu0
    %v1069 = vadd.f32 %v860, %v1068
    %v1070 = vpop.f32.mrb[0].mxu0
    %1071 = vmatprep.mubr.bf16.mxu0 0
    %1072 = vmatmul.mubr.bf16.gmra.mrb[0].mxu0 %v615
    %v1073 = vpop.f32.mrb[0].mxu0
    %v1074 = vadd.f32 %v865, %v1073
    %v1075 = vpop.f32.mrb[0].mxu0
    %v1076 = vpop.f32.mrb[0].mxu0
    %v1077 = vadd.f32 %v868, %v1076
    %v1078 = vpop.f32.mrb[0].mxu0
    %1079 = vmatprep.mubr.bf16.mxu0 0
    %1080 = vmatmul.mubr.bf16.gmra.mrb[0].mxu0 %v616
    %v1081 = vpop.f32.mrb[0].mxu0
    %v1082 = vadd.f32 %v873, %v1081
    %v1083 = vpop.f32.mrb[0].mxu0
    %v1084 = vpop.f32.mrb[0].mxu0
    %v1085 = vadd.f32 %v876, %v1084
    %v1086 = vpop.f32.mrb[0].mxu0
    %1087 = vmatprep.mubr.bf16.mxu0 0
    %1088 = vmatmul.mubr.bf16.gmra.mrb[0].mxu0 %v617
    %v1089 = vpop.f32.mrb[0].mxu0
    %v1090 = vadd.f32 %v881, %v1089
    %v1091 = vpop.f32.mrb[0].mxu0
    %v1092 = vpop.f32.mrb[0].mxu0
    %v1093 = vadd.f32 %v884, %v1092
    %v1094 = vpop.f32.mrb[0].mxu0
    %1095 = vmatprep.mubr.bf16.mxu0 0
    %1096 = vmatmul.mubr.bf16.gmra.mrb[0].mxu0 %v618
    %v1097 = vpop.f32.mrb[0].mxu0
    %v1098 = vadd.f32 %v889, %v1097
    %v1099 = vpop.f32.mrb[0].mxu0
    %v1100 = vpop.f32.mrb[0].mxu0
    %v1101 = vadd.f32 %v892, %v1100
    %v1102 = vpop.f32.mrb[0].mxu0
    %1103 = vmatprep.mubr.bf16.mxu0 0
    %1104 = vmatmul.mubr.bf16.gmra.mrb[0].mxu0 %v619
    %v1105 = vpop.f32.mrb[0].mxu0
    %v1106 = vadd.f32 %v897, %v1105
    %v1107 = vpop.f32.mrb[0].mxu0
    %v1108 = vpop.f32.mrb[0].mxu0
    %v1109 = vadd.f32 %v900, %v1108
    %v1110 = vpop.f32.mrb[0].mxu0
    %1111 = vmatprep.mubr.bf16.mxu0 0
    %1112 = vmatmul.mubr.bf16.gmra.mrb[0].mxu0 %v620
    %v1113 = vpop.f32.mrb[0].mxu0
    %v1114 = vadd.f32 %v905, %v1113
    %v1115 = vpop.f32.mrb[0].mxu0
    %v1116 = vpop.f32.mrb[0].mxu0
    %v1117 = vadd.f32 %v908, %v1116
    %v1118 = vpop.f32.mrb[0].mxu0
    %1119 = vdwg.mxu0
    %v1120 = vld [vmem:[#allocation2 + $0x2] sm:$0xff]
    %v1121 = vld [vmem:[#allocation2 + $0xa] sm:$0xff]
    %v1122 = vld [vmem:[#allocation2 + $0x12] sm:$0xff]
    %v1123 = vld [vmem:[#allocation2 + $0x1a] sm:$0xff]
    %v1124 = vld [vmem:[#allocation2 + $0x22] sm:$0xff]
    %v1125 = vld [vmem:[#allocation2 + $0x2a] sm:$0xff]
    %v1126 = vld [vmem:[#allocation2 + $0x32] sm:$0xff]
    %v1127 = vld [vmem:[#allocation2 + $0x3a] sm:$0xff]
    %v1128 = vld [vmem:[#allocation2 + $0x42] sm:$0xff]
    %v1129 = vld [vmem:[#allocation2 + $0x4a] sm:$0xff]
    %v1130 = vld [vmem:[#allocation2 + $0x52] sm:$0xff]
    %v1131 = vld [vmem:[#allocation2 + $0x5a] sm:$0xff]
    %v1132 = vld [vmem:[#allocation2 + $0x62] sm:$0xff]
    %v1133 = vld [vmem:[#allocation2 + $0x6a] sm:$0xff]
    %v1134 = vld [vmem:[#allocation2 + $0x72] sm:$0xff]
    %v1135 = vld [vmem:[#allocation2 + $0x7a] sm:$0xff]
    %v1136 = vld [vmem:[#allocation2 + $0x82] sm:$0xff]
    %v1137 = vld [vmem:[#allocation2 + $0x8a] sm:$0xff]
    %v1138 = vld [vmem:[#allocation2 + $0x92] sm:$0xff]
    %v1139 = vld [vmem:[#allocation2 + $0x9a] sm:$0xff]
    %v1140 = vld [vmem:[#allocation2 + $0xa2] sm:$0xff]
    %v1141 = vld [vmem:[#allocation2 + $0xaa] sm:$0xff]
    %v1142 = vld [vmem:[#allocation2 + $0xb2] sm:$0xff]
    %v1143 = vld [vmem:[#allocation2 + $0xba] sm:$0xff]
    %v1144 = vld [vmem:[#allocation2 + $0xc2] sm:$0xff]
    %v1145 = vld [vmem:[#allocation2 + $0xca] sm:$0xff]
    %v1146 = vld [vmem:[#allocation2 + $0xd2] sm:$0xff]
    %v1147 = vld [vmem:[#allocation2 + $0xda] sm:$0xff]
    %v1148 = vld [vmem:[#allocation2 + $0xe2] sm:$0xff]
    %v1149 = vld [vmem:[#allocation2 + $0xea] sm:$0xff]
    %v1150 = vld [vmem:[#allocation2 + $0xf2] sm:$0xff]
    %v1151 = vld [vmem:[#allocation2 + $0xfa] sm:$0xff]
    %v1152 = vpack.c.bf16 %v1121, %v1120
    %v1153 = vpack.c.bf16 %v1123, %v1122
    %v1154 = vpack.c.bf16 %v1125, %v1124
    %v1155 = vpack.c.bf16 %v1127, %v1126
    %v1156 = vpack.c.bf16 %v1129, %v1128
    %v1157 = vpack.c.bf16 %v1131, %v1130
    %v1158 = vpack.c.bf16 %v1133, %v1132
    %v1159 = vpack.c.bf16 %v1135, %v1134
    %v1160 = vpack.c.bf16 %v1137, %v1136
    %v1161 = vpack.c.bf16 %v1139, %v1138
    %v1162 = vpack.c.bf16 %v1141, %v1140
    %v1163 = vpack.c.bf16 %v1143, %v1142
    %v1164 = vpack.c.bf16 %v1145, %v1144
    %v1165 = vpack.c.bf16 %v1147, %v1146
    %v1166 = vpack.c.bf16 %v1149, %v1148
    %v1167 = vpack.c.bf16 %v1151, %v1150
    %s1168 = scalar_lea.vmem %s2, 128
    %v1169 = vld [vmem:[%s1168] sm:$0xf]
    %v1170 = vld [vmem:[%s1168 + $0x4] sm:$0xf]
    %v1171 = vld [vmem:[%s1168 + $0x8] sm:$0xf]
    %v1172 = vld [vmem:[%s1168 + $0xc] sm:$0xf]
    %v1173 = vld [vmem:[%s1168 + $0x10] sm:$0xf]
    %v1174 = vld [vmem:[%s1168 + $0x14] sm:$0xf]
    %v1175 = vld [vmem:[%s1168 + $0x18] sm:$0xf]
    %v1176 = vld [vmem:[%s1168 + $0x1c] sm:$0xf]
    %v1177 = vld [vmem:[%s1168 + $0x20] sm:$0xf]
    %v1178 = vld [vmem:[%s1168 + $0x24] sm:$0xf]
    %v1179 = vld [vmem:[%s1168 + $0x28] sm:$0xf]
    %v1180 = vld [vmem:[%s1168 + $0x2c] sm:$0xf]
    %v1181 = vld [vmem:[%s1168 + $0x30] sm:$0xf]
    %v1182 = vld [vmem:[%s1168 + $0x34] sm:$0xf]
    %v1183 = vld [vmem:[%s1168 + $0x38] sm:$0xf]
    %v1184 = vld [vmem:[%s1168 + $0x3c] sm:$0xf]
    %v1201 = vunpack.c.l.b16 %v1169
    %v1202 = vunpack.c.l.b16 %v1170
    %v1203 = vunpack.c.l.b16 %v1171
    %v1204 = vunpack.c.l.b16 %v1172
    %v1205 = vunpack.c.l.b16 %v1173
    %v1206 = vunpack.c.l.b16 %v1174
    %v1207 = vunpack.c.l.b16 %v1175
    %v1208 = vunpack.c.l.b16 %v1176
    %v1209 = vunpack.c.l.b16 %v1177
    %v1210 = vunpack.c.l.b16 %v1178
    %v1211 = vunpack.c.l.b16 %v1179
    %v1212 = vunpack.c.l.b16 %v1180
    %v1213 = vunpack.c.l.b16 %v1181
    %v1214 = vunpack.c.l.b16 %v1182
    %v1215 = vunpack.c.l.b16 %v1183
    %v1216 = vunpack.c.l.b16 %v1184
    %v1217 = vpack.c.b16 %v1202, %v1201
    %v1218 = vpack.c.b16 %v1204, %v1203
    %v1219 = vpack.c.b16 %v1206, %v1205
    %v1220 = vpack.c.b16 %v1208, %v1207
    %v1221 = vpack.c.b16 %v1210, %v1209
    %v1222 = vpack.c.b16 %v1212, %v1211
    %v1223 = vpack.c.b16 %v1214, %v1213
    %v1224 = vpack.c.b16 %v1216, %v1215
    %1233 = vmatprep.subr.bf16.mxu0 0
    %1234 = vmatpush1.bf16.msra.mxu0 %v1217
    %1235 = vmatprep.subr.bf16.mxu0 0
    %1236 = vmatpush1.bf16.msra.mxu0 %v1218
    %1237 = vmatprep.subr.bf16.mxu0 0
    %1238 = vmatpush1.bf16.msra.mxu0 %v1219
    %1239 = vmatprep.subr.bf16.mxu0 0
    %1240 = vmatpush1.bf16.msra.mxu0 %v1220
    %1241 = vmatprep.subr.bf16.mxu0 0
    %1242 = vmatpush1.bf16.msra.mxu0 %v1221
    %1243 = vmatprep.subr.bf16.mxu0 0
    %1244 = vmatpush1.bf16.msra.mxu0 %v1222
    %1245 = vmatprep.subr.bf16.mxu0 0
    %1246 = vmatpush1.bf16.msra.mxu0 %v1223
    %1247 = vmatprep.subr.bf16.mxu0 0
    %1248 = vmatpush1.bf16.msra.mxu0 %v1224
    %1249 = vmatprep.subr.bf16.mxu0 0
    %1250 = vmatpush1.bf16.msra.mxu0 0
    %1251 = vmatprep.subr.bf16.mxu0 0
    %1252 = vmatpush1.bf16.msra.mxu0 0
    %1253 = vmatprep.subr.bf16.mxu0 0
    %1254 = vmatpush1.bf16.msra.mxu0 0
    %1255 = vmatprep.subr.bf16.mxu0 0
    %1256 = vmatpush1.bf16.msra.mxu0 0
    %1257 = vmatprep.subr.bf16.mxu0 0
    %1258 = vmatpush1.bf16.msra.mxu0 0
    %1259 = vmatprep.subr.bf16.mxu0 0
    %1260 = vmatpush1.bf16.msra.mxu0 0
    %1261 = vmatprep.subr.bf16.mxu0 0
    %1262 = vmatpush1.bf16.msra.mxu0 0
    %1263 = vmatprep.subr.bf16.mxu0 0
    %1264 = vmatpush1.bf16.msra.mxu0 0
    %1265 = vmatprep.mubr.bf16.mxu0 0
    %1266 = vmatmul.mubr.bf16.gmra.mrb[0].mxu0 %v1152
    %v1267 = vpop.f32.mrb[0].mxu0
    %v1268 = vadd.f32 0.0, %v1267
    %v1269 = vpop.f32.mrb[0].mxu0
    %v1270 = vpop.f32.mrb[0].mxu0
    %v1271 = vadd.f32 0.0, %v1270
    %v1272 = vpop.f32.mrb[0].mxu0
    %1273 = vmatprep.mubr.bf16.mxu0 0
    %1274 = vmatmul.mubr.bf16.gmra.mrb[0].mxu0 %v1153
    %v1275 = vpop.f32.mrb[0].mxu0
    %v1276 = vadd.f32 0.0, %v1275
    %v1277 = vpop.f32.mrb[0].mxu0
    %v1278 = vpop.f32.mrb[0].mxu0
    %v1279 = vadd.f32 0.0, %v1278
    %v1280 = vpop.f32.mrb[0].mxu0
    %1281 = vmatprep.mubr.bf16.mxu0 0
    %1282 = vmatmul.mubr.bf16.gmra.mrb[0].mxu0 %v1154
    %v1283 = vpop.f32.mrb[0].mxu0
    %v1284 = vadd.f32 0.0, %v1283
    %v1285 = vpop.f32.mrb[0].mxu0
    %v1286 = vpop.f32.mrb[0].mxu0
    %v1287 = vadd.f32 0.0, %v1286
    %v1288 = vpop.f32.mrb[0].mxu0
    %1289 = vmatprep.mubr.bf16.mxu0 0
    %1290 = vmatmul.mubr.bf16.gmra.mrb[0].mxu0 %v1155
    %v1291 = vpop.f32.mrb[0].mxu0
    %v1292 = vadd.f32 0.0, %v1291
    %v1293 = vpop.f32.mrb[0].mxu0
    %v1294 = vpop.f32.mrb[0].mxu0
    %v1295 = vadd.f32 0.0, %v1294
    %v1296 = vpop.f32.mrb[0].mxu0
    %1297 = vmatprep.mubr.bf16.mxu0 0
    %1298 = vmatmul.mubr.bf16.gmra.mrb[0].mxu0 %v1156
    %v1299 = vpop.f32.mrb[0].mxu0
    %v1300 = vadd.f32 0.0, %v1299
    %v1301 = vpop.f32.mrb[0].mxu0
    %v1302 = vpop.f32.mrb[0].mxu0
    %v1303 = vadd.f32 0.0, %v1302
    %v1304 = vpop.f32.mrb[0].mxu0
    %1305 = vmatprep.mubr.bf16.mxu0 0
    %1306 = vmatmul.mubr.bf16.gmra.mrb[0].mxu0 %v1157
    %v1307 = vpop.f32.mrb[0].mxu0
    %v1308 = vadd.f32 0.0, %v1307
    %v1309 = vpop.f32.mrb[0].mxu0
    %v1310 = vpop.f32.mrb[0].mxu0
    %v1311 = vadd.f32 0.0, %v1310
    %v1312 = vpop.f32.mrb[0].mxu0
    %1313 = vmatprep.mubr.bf16.mxu0 0
    %1314 = vmatmul.mubr.bf16.gmra.mrb[0].mxu0 %v1158
    %v1315 = vpop.f32.mrb[0].mxu0
    %v1316 = vadd.f32 0.0, %v1315
    %v1317 = vpop.f32.mrb[0].mxu0
    %v1318 = vpop.f32.mrb[0].mxu0
    %v1319 = vadd.f32 0.0, %v1318
    %v1320 = vpop.f32.mrb[0].mxu0
    %1321 = vmatprep.mubr.bf16.mxu0 0
    %1322 = vmatmul.mubr.bf16.gmra.mrb[0].mxu0 %v1159
    %v1323 = vpop.f32.mrb[0].mxu0
    %v1324 = vadd.f32 0.0, %v1323
    %v1325 = vpop.f32.mrb[0].mxu0
    %v1326 = vpop.f32.mrb[0].mxu0
    %v1327 = vadd.f32 0.0, %v1326
    %v1328 = vpop.f32.mrb[0].mxu0
    %1329 = vmatprep.mubr.bf16.mxu0 0
    %1330 = vmatmul.mubr.bf16.gmra.mrb[0].mxu0 %v1160
    %v1331 = vpop.f32.mrb[0].mxu0
    %v1332 = vadd.f32 0.0, %v1331
    %v1333 = vpop.f32.mrb[0].mxu0
    %v1334 = vpop.f32.mrb[0].mxu0
    %v1335 = vadd.f32 0.0, %v1334
    %v1336 = vpop.f32.mrb[0].mxu0
    %1337 = vmatprep.mubr.bf16.mxu0 0
    %1338 = vmatmul.mubr.bf16.gmra.mrb[0].mxu0 %v1161
    %v1339 = vpop.f32.mrb[0].mxu0
    %v1340 = vadd.f32 0.0, %v1339
    %v1341 = vpop.f32.mrb[0].mxu0
    %v1342 = vpop.f32.mrb[0].mxu0
    %v1343 = vadd.f32 0.0, %v1342
    %v1344 = vpop.f32.mrb[0].mxu0
    %1345 = vmatprep.mubr.bf16.mxu0 0
    %1346 = vmatmul.mubr.bf16.gmra.mrb[0].mxu0 %v1162
    %v1347 = vpop.f32.mrb[0].mxu0
    %v1348 = vadd.f32 0.0, %v1347
    %v1349 = vpop.f32.mrb[0].mxu0
    %v1350 = vpop.f32.mrb[0].mxu0
    %v1351 = vadd.f32 0.0, %v1350
    %v1352 = vpop.f32.mrb[0].mxu0
    %1353 = vmatprep.mubr.bf16.mxu0 0
    %1354 = vmatmul.mubr.bf16.gmra.mrb[0].mxu0 %v1163
    %v1355 = vpop.f32.mrb[0].mxu0
    %v1356 = vadd.f32 0.0, %v1355
    %v1357 = vpop.f32.mrb[0].mxu0
    %v1358 = vpop.f32.mrb[0].mxu0
    %v1359 = vadd.f32 0.0, %v1358
    %v1360 = vpop.f32.mrb[0].mxu0
    %1361 = vmatprep.mubr.bf16.mxu0 0
    %1362 = vmatmul.mubr.bf16.gmra.mrb[0].mxu0 %v1164
    %v1363 = vpop.f32.mrb[0].mxu0
    %v1364 = vadd.f32 0.0, %v1363
    %v1365 = vpop.f32.mrb[0].mxu0
    %v1366 = vpop.f32.mrb[0].mxu0
    %v1367 = vadd.f32 0.0, %v1366
    %v1368 = vpop.f32.mrb[0].mxu0
    %1369 = vmatprep.mubr.bf16.mxu0 0
    %1370 = vmatmul.mubr.bf16.gmra.mrb[0].mxu0 %v1165
    %v1371 = vpop.f32.mrb[0].mxu0
    %v1372 = vadd.f32 0.0, %v1371
    %v1373 = vpop.f32.mrb[0].mxu0
    %v1374 = vpop.f32.mrb[0].mxu0
    %v1375 = vadd.f32 0.0, %v1374
    %v1376 = vpop.f32.mrb[0].mxu0
    %1377 = vmatprep.mubr.bf16.mxu0 0
    %1378 = vmatmul.mubr.bf16.gmra.mrb[0].mxu0 %v1166
    %v1379 = vpop.f32.mrb[0].mxu0
    %v1380 = vadd.f32 0.0, %v1379
    %v1381 = vpop.f32.mrb[0].mxu0
    %v1382 = vpop.f32.mrb[0].mxu0
    %v1383 = vadd.f32 0.0, %v1382
    %v1384 = vpop.f32.mrb[0].mxu0
    %1385 = vmatprep.mubr.bf16.mxu0 0
    %1386 = vmatmul.mubr.bf16.gmra.mrb[0].mxu0 %v1167
    %v1387 = vpop.f32.mrb[0].mxu0
    %v1388 = vadd.f32 0.0, %v1387
    %v1389 = vpop.f32.mrb[0].mxu0
    %v1390 = vpop.f32.mrb[0].mxu0
    %v1391 = vadd.f32 0.0, %v1390
    %v1392 = vpop.f32.mrb[0].mxu0
    %1393 = vdwg.mxu0
    %v1394 = vadd.f32 %v994, %v1268
    %v1395 = vadd.f32 %v997, %v1271
    %v1396 = vadd.f32 %v1002, %v1276
    %v1397 = vadd.f32 %v1005, %v1279
    %v1398 = vadd.f32 %v1010, %v1284
    %v1399 = vadd.f32 %v1013, %v1287
    %v1400 = vadd.f32 %v1018, %v1292
    %v1401 = vadd.f32 %v1021, %v1295
    %v1402 = vadd.f32 %v1026, %v1300
    %v1403 = vadd.f32 %v1029, %v1303
    %v1404 = vadd.f32 %v1034, %v1308
    %v1405 = vadd.f32 %v1037, %v1311
    %v1406 = vadd.f32 %v1042, %v1316
    %v1407 = vadd.f32 %v1045, %v1319
    %v1408 = vadd.f32 %v1050, %v1324
    %v1409 = vadd.f32 %v1053, %v1327
    %v1410 = vadd.f32 %v1058, %v1332
    %v1411 = vadd.f32 %v1061, %v1335
    %v1412 = vadd.f32 %v1066, %v1340
    %v1413 = vadd.f32 %v1069, %v1343
    %v1414 = vadd.f32 %v1074, %v1348
    %v1415 = vadd.f32 %v1077, %v1351
    %v1416 = vadd.f32 %v1082, %v1356
    %v1417 = vadd.f32 %v1085, %v1359
    %v1418 = vadd.f32 %v1090, %v1364
    %v1419 = vadd.f32 %v1093, %v1367
    %v1420 = vadd.f32 %v1098, %v1372
    %v1421 = vadd.f32 %v1101, %v1375
    %v1422 = vadd.f32 %v1106, %v1380
    %v1423 = vadd.f32 %v1109, %v1383
    %v1424 = vadd.f32 %v1114, %v1388
    %v1425 = vadd.f32 %v1117, %v1391
    %v1426 = vld [vmem:[%s3] sm:$0x1]
    %v1428 = vlaneseq
    %v1429 = vshrl.u32 %v1428, 7
    %v1430 = vsub.s32 0, %v1429
    %v1431 = vrot.slane %v1426, %v1430
    %v1433 = vadd.f32 %v1394, %v1431
    %v1434 = vadd.f32 %v1395, %v1431
    %v1435 = vadd.f32 %v1396, %v1431
    %v1436 = vadd.f32 %v1397, %v1431
    %v1437 = vadd.f32 %v1398, %v1431
    %v1438 = vadd.f32 %v1399, %v1431
    %v1439 = vadd.f32 %v1400, %v1431
    %v1440 = vadd.f32 %v1401, %v1431
    %v1441 = vadd.f32 %v1402, %v1431
    %v1442 = vadd.f32 %v1403, %v1431
    %v1443 = vadd.f32 %v1404, %v1431
    %v1444 = vadd.f32 %v1405, %v1431
    %v1445 = vadd.f32 %v1406, %v1431
    %v1446 = vadd.f32 %v1407, %v1431
    %v1447 = vadd.f32 %v1408, %v1431
    %v1448 = vadd.f32 %v1409, %v1431
    %v1449 = vadd.f32 %v1410, %v1431
    %v1450 = vadd.f32 %v1411, %v1431
    %v1451 = vadd.f32 %v1412, %v1431
    %v1452 = vadd.f32 %v1413, %v1431
    %v1453 = vadd.f32 %v1414, %v1431
    %v1454 = vadd.f32 %v1415, %v1431
    %v1455 = vadd.f32 %v1416, %v1431
    %v1456 = vadd.f32 %v1417, %v1431
    %v1457 = vadd.f32 %v1418, %v1431
    %v1458 = vadd.f32 %v1419, %v1431
    %v1459 = vadd.f32 %v1420, %v1431
    %v1460 = vadd.f32 %v1421, %v1431
    %v1461 = vadd.f32 %v1422, %v1431
    %v1462 = vadd.f32 %v1423, %v1431
    %v1463 = vadd.f32 %v1424, %v1431
    %v1464 = vadd.f32 %v1425, %v1431
    %v1465 = vmax.f32 %v1433, 0.0
    %v1466 = vmax.f32 %v1434, 0.0
    %v1467 = vmax.f32 %v1435, 0.0
    %v1468 = vmax.f32 %v1436, 0.0
    %v1469 = vmax.f32 %v1437, 0.0
    %v1470 = vmax.f32 %v1438, 0.0
    %v1471 = vmax.f32 %v1439, 0.0
    %v1472 = vmax.f32 %v1440, 0.0
    %v1473 = vmax.f32 %v1441, 0.0
    %v1474 = vmax.f32 %v1442, 0.0
    %v1475 = vmax.f32 %v1443, 0.0
    %v1476 = vmax.f32 %v1444, 0.0
    %v1477 = vmax.f32 %v1445, 0.0
    %v1478 = vmax.f32 %v1446, 0.0
    %v1479 = vmax.f32 %v1447, 0.0
    %v1480 = vmax.f32 %v1448, 0.0
    %v1481 = vmax.f32 %v1449, 0.0
    %v1482 = vmax.f32 %v1450, 0.0
    %v1483 = vmax.f32 %v1451, 0.0
    %v1484 = vmax.f32 %v1452, 0.0
    %v1485 = vmax.f32 %v1453, 0.0
    %v1486 = vmax.f32 %v1454, 0.0
    %v1487 = vmax.f32 %v1455, 0.0
    %v1488 = vmax.f32 %v1456, 0.0
    %v1489 = vmax.f32 %v1457, 0.0
    %v1490 = vmax.f32 %v1458, 0.0
    %v1491 = vmax.f32 %v1459, 0.0
    %v1492 = vmax.f32 %v1460, 0.0
    %v1493 = vmax.f32 %v1461, 0.0
    %v1494 = vmax.f32 %v1462, 0.0
    %v1495 = vmax.f32 %v1463, 0.0
    %v1496 = vmax.f32 %v1464, 0.0
    %1497 = vst [vmem:[#allocation3] sm:$0xff] %v1465
    %1498 = vst [vmem:[#allocation3 + $0x8] sm:$0xff] %v1466
    %1499 = vst [vmem:[#allocation3 + $0x10] sm:$0xff] %v1467
    %1500 = vst [vmem:[#allocation3 + $0x18] sm:$0xff] %v1468
    %1501 = vst [vmem:[#allocation3 + $0x20] sm:$0xff] %v1469
    %1502 = vst [vmem:[#allocation3 + $0x28] sm:$0xff] %v1470
    %1503 = vst [vmem:[#allocation3 + $0x30] sm:$0xff] %v1471
    %1504 = vst [vmem:[#allocation3 + $0x38] sm:$0xff] %v1472
    %1505 = vst [vmem:[#allocation3 + $0x40] sm:$0xff] %v1473
    %1506 = vst [vmem:[#allocation3 + $0x48] sm:$0xff] %v1474
    %1507 = vst [vmem:[#allocation3 + $0x50] sm:$0xff] %v1475
    %1508 = vst [vmem:[#allocation3 + $0x58] sm:$0xff] %v1476
    %1509 = vst [vmem:[#allocation3 + $0x60] sm:$0xff] %v1477
    %1510 = vst [vmem:[#allocation3 + $0x68] sm:$0xff] %v1478
    %1511 = vst [vmem:[#allocation3 + $0x70] sm:$0xff] %v1479
    %1512 = vst [vmem:[#allocation3 + $0x78] sm:$0xff] %v1480
    %1513 = vst [vmem:[#allocation3 + $0x80] sm:$0xff] %v1481
    %1514 = vst [vmem:[#allocation3 + $0x88] sm:$0xff] %v1482
    %1515 = vst [vmem:[#allocation3 + $0x90] sm:$0xff] %v1483
    %1516 = vst [vmem:[#allocation3 + $0x98] sm:$0xff] %v1484
    %1517 = vst [vmem:[#allocation3 + $0xa0] sm:$0xff] %v1485
    %1518 = vst [vmem:[#allocation3 + $0xa8] sm:$0xff] %v1486
    %1519 = vst [vmem:[#allocation3 + $0xb0] sm:$0xff] %v1487
    %1520 = vst [vmem:[#allocation3 + $0xb8] sm:$0xff] %v1488
    %1521 = vst [vmem:[#allocation3 + $0xc0] sm:$0xff] %v1489
    %1522 = vst [vmem:[#allocation3 + $0xc8] sm:$0xff] %v1490
    %1523 = vst [vmem:[#allocation3 + $0xd0] sm:$0xff] %v1491
    %1524 = vst [vmem:[#allocation3 + $0xd8] sm:$0xff] %v1492
    %1525 = vst [vmem:[#allocation3 + $0xe0] sm:$0xff] %v1493
    %1526 = vst [vmem:[#allocation3 + $0xe8] sm:$0xff] %v1494
    %1527 = vst [vmem:[#allocation3 + $0xf0] sm:$0xff] %v1495
    %1528 = vst [vmem:[#allocation3 + $0xf8] sm:$0xff] %v1496
    %v1529 = vld [vmem:[#allocation3] sm:$0xff]
    %v1530 = vld [vmem:[#allocation3 + $0x8] sm:$0xff]
    %v1531 = vld [vmem:[#allocation3 + $0x10] sm:$0xff]
    %v1532 = vld [vmem:[#allocation3 + $0x18] sm:$0xff]
    %v1533 = vld [vmem:[#allocation3 + $0x20] sm:$0xff]
    %v1534 = vld [vmem:[#allocation3 + $0x28] sm:$0xff]
    %v1535 = vld [vmem:[#allocation3 + $0x30] sm:$0xff]
    %v1536 = vld [vmem:[#allocation3 + $0x38] sm:$0xff]
    %v1537 = vld [vmem:[#allocation3 + $0x40] sm:$0xff]
    %v1538 = vld [vmem:[#allocation3 + $0x48] sm:$0xff]
    %v1539 = vld [vmem:[#allocation3 + $0x50] sm:$0xff]
    %v1540 = vld [vmem:[#allocation3 + $0x58] sm:$0xff]
    %v1541 = vld [vmem:[#allocation3 + $0x60] sm:$0xff]
    %v1542 = vld [vmem:[#allocation3 + $0x68] sm:$0xff]
    %v1543 = vld [vmem:[#allocation3 + $0x70] sm:$0xff]
    %v1544 = vld [vmem:[#allocation3 + $0x78] sm:$0xff]
    %v1545 = vld [vmem:[#allocation3 + $0x80] sm:$0xff]
    %v1546 = vld [vmem:[#allocation3 + $0x88] sm:$0xff]
    %v1547 = vld [vmem:[#allocation3 + $0x90] sm:$0xff]
    %v1548 = vld [vmem:[#allocation3 + $0x98] sm:$0xff]
    %v1549 = vld [vmem:[#allocation3 + $0xa0] sm:$0xff]
    %v1550 = vld [vmem:[#allocation3 + $0xa8] sm:$0xff]
    %v1551 = vld [vmem:[#allocation3 + $0xb0] sm:$0xff]
    %v1552 = vld [vmem:[#allocation3 + $0xb8] sm:$0xff]
    %v1553 = vld [vmem:[#allocation3 + $0xc0] sm:$0xff]
    %v1554 = vld [vmem:[#allocation3 + $0xc8] sm:$0xff]
    %v1555 = vld [vmem:[#allocation3 + $0xd0] sm:$0xff]
    %v1556 = vld [vmem:[#allocation3 + $0xd8] sm:$0xff]
    %v1557 = vld [vmem:[#allocation3 + $0xe0] sm:$0xff]
    %v1558 = vld [vmem:[#allocation3 + $0xe8] sm:$0xff]
    %v1559 = vld [vmem:[#allocation3 + $0xf0] sm:$0xff]
    %v1560 = vld [vmem:[#allocation3 + $0xf8] sm:$0xff]
    %v1561 = vpack.c.bf16 %v1530, %v1529
    %v1562 = vpack.c.bf16 %v1532, %v1531
    %v1563 = vpack.c.bf16 %v1534, %v1533
    %v1564 = vpack.c.bf16 %v1536, %v1535
    %v1565 = vpack.c.bf16 %v1538, %v1537
    %v1566 = vpack.c.bf16 %v1540, %v1539
    %v1567 = vpack.c.bf16 %v1542, %v1541
    %v1568 = vpack.c.bf16 %v1544, %v1543
    %v1569 = vpack.c.bf16 %v1546, %v1545
    %v1570 = vpack.c.bf16 %v1548, %v1547
    %v1571 = vpack.c.bf16 %v1550, %v1549
    %v1572 = vpack.c.bf16 %v1552, %v1551
    %v1573 = vpack.c.bf16 %v1554, %v1553
    %v1574 = vpack.c.bf16 %v1556, %v1555
    %v1575 = vpack.c.bf16 %v1558, %v1557
    %v1576 = vpack.c.bf16 %v1560, %v1559
    %v1577 = vld [vmem:[#allocation7] sm:$0xf]
    %v1578 = vld [vmem:[#allocation7 + $0x4] sm:$0xf]
    %v1579 = vld [vmem:[#allocation7 + $0x8] sm:$0xf]
    %v1580 = vld [vmem:[#allocation7 + $0xc] sm:$0xf]
    %v1581 = vld [vmem:[#allocation7 + $0x10] sm:$0xf]
    %v1582 = vld [vmem:[#allocation7 + $0x14] sm:$0xf]
    %v1583 = vld [vmem:[#allocation7 + $0x18] sm:$0xf]
    %v1584 = vld [vmem:[#allocation7 + $0x1c] sm:$0xf]
    %v1585 = vld [vmem:[#allocation7 + $0x20] sm:$0xf]
    %v1586 = vld [vmem:[#allocation7 + $0x24] sm:$0xf]
    %v1587 = vld [vmem:[#allocation7 + $0x28] sm:$0xf]
    %v1588 = vld [vmem:[#allocation7 + $0x2c] sm:$0xf]
    %v1589 = vld [vmem:[#allocation7 + $0x30] sm:$0xf]
    %v1590 = vld [vmem:[#allocation7 + $0x34] sm:$0xf]
    %v1591 = vld [vmem:[#allocation7 + $0x38] sm:$0xf]
    %v1592 = vld [vmem:[#allocation7 + $0x3c] sm:$0xf]
    %v1593 = vld [vmem:[#allocation3 + $0x1] sm:$0xff]
    %v1594 = vld [vmem:[#allocation3 + $0x9] sm:$0xff]
    %v1595 = vld [vmem:[#allocation3 + $0x11] sm:$0xff]
    %v1596 = vld [vmem:[#allocation3 + $0x19] sm:$0xff]
    %v1597 = vld [vmem:[#allocation3 + $0x21] sm:$0xff]
    %v1598 = vld [vmem:[#allocation3 + $0x29] sm:$0xff]
    %v1599 = vld [vmem:[#allocation3 + $0x31] sm:$0xff]
    %v1600 = vld [vmem:[#allocation3 + $0x39] sm:$0xff]
    %v1601 = vld [vmem:[#allocation3 + $0x41] sm:$0xff]
    %v1602 = vld [vmem:[#allocation3 + $0x49] sm:$0xff]
    %v1603 = vld [vmem:[#allocation3 + $0x51] sm:$0xff]
    %v1604 = vld [vmem:[#allocation3 + $0x59] sm:$0xff]
    %v1605 = vld [vmem:[#allocation3 + $0x61] sm:$0xff]
    %v1606 = vld [vmem:[#allocation3 + $0x69] sm:$0xff]
    %v1607 = vld [vmem:[#allocation3 + $0x71] sm:$0xff]
    %v1608 = vld [vmem:[#allocation3 + $0x79] sm:$0xff]
    %v1609 = vld [vmem:[#allocation3 + $0x81] sm:$0xff]
    %v1610 = vld [vmem:[#allocation3 + $0x89] sm:$0xff]
    %v1611 = vld [vmem:[#allocation3 + $0x91] sm:$0xff]
    %v1612 = vld [vmem:[#allocation3 + $0x99] sm:$0xff]
    %v1613 = vld [vmem:[#allocation3 + $0xa1] sm:$0xff]
    %v1614 = vld [vmem:[#allocation3 + $0xa9] sm:$0xff]
    %v1615 = vld [vmem:[#allocation3 + $0xb1] sm:$0xff]
    %v1616 = vld [vmem:[#allocation3 + $0xb9] sm:$0xff]
    %v1617 = vld [vmem:[#allocation3 + $0xc1] sm:$0xff]
    %v1618 = vld [vmem:[#allocation3 + $0xc9] sm:$0xff]
    %v1619 = vld [vmem:[#allocation3 + $0xd1] sm:$0xff]
    %v1620 = vld [vmem:[#allocation3 + $0xd9] sm:$0xff]
    %v1621 = vld [vmem:[#allocation3 + $0xe1] sm:$0xff]
    %v1622 = vld [vmem:[#allocation3 + $0xe9] sm:$0xff]
    %v1623 = vld [vmem:[#allocation3 + $0xf1] sm:$0xff]
    %v1624 = vld [vmem:[#allocation3 + $0xf9] sm:$0xff]
    %v1625 = vpack.c.bf16 %v1594, %v1593
    %v1626 = vpack.c.bf16 %v1596, %v1595
    %v1627 = vpack.c.bf16 %v1598, %v1597
    %v1628 = vpack.c.bf16 %v1600, %v1599
    %v1629 = vpack.c.bf16 %v1602, %v1601
    %v1630 = vpack.c.bf16 %v1604, %v1603
    %v1631 = vpack.c.bf16 %v1606, %v1605
    %v1632 = vpack.c.bf16 %v1608, %v1607
    %v1633 = vpack.c.bf16 %v1610, %v1609
    %v1634 = vpack.c.bf16 %v1612, %v1611
    %v1635 = vpack.c.bf16 %v1614, %v1613
    %v1636 = vpack.c.bf16 %v1616, %v1615
    %v1637 = vpack.c.bf16 %v1618, %v1617
    %v1638 = vpack.c.bf16 %v1620, %v1619
    %v1639 = vpack.c.bf16 %v1622, %v1621
    %v1640 = vpack.c.bf16 %v1624, %v1623
    %s1641 = scalar_lea.vmem [#allocation7], 64
    %v1642 = vld [vmem:[%s1641] sm:$0xf]
    %v1643 = vld [vmem:[%s1641 + $0x4] sm:$0xf]
    %v1644 = vld [vmem:[%s1641 + $0x8] sm:$0xf]
    %v1645 = vld [vmem:[%s1641 + $0xc] sm:$0xf]
    %v1646 = vld [vmem:[%s1641 + $0x10] sm:$0xf]
    %v1647 = vld [vmem:[%s1641 + $0x14] sm:$0xf]
    %v1648 = vld [vmem:[%s1641 + $0x18] sm:$0xf]
    %v1649 = vld [vmem:[%s1641 + $0x1c] sm:$0xf]
    %v1650 = vld [vmem:[%s1641 + $0x20] sm:$0xf]
    %v1651 = vld [vmem:[%s1641 + $0x24] sm:$0xf]
    %v1652 = vld [vmem:[%s1641 + $0x28] sm:$0xf]
    %v1653 = vld [vmem:[%s1641 + $0x2c] sm:$0xf]
    %v1654 = vld [vmem:[%s1641 + $0x30] sm:$0xf]
    %v1655 = vld [vmem:[%s1641 + $0x34] sm:$0xf]
    %v1656 = vld [vmem:[%s1641 + $0x38] sm:$0xf]
    %v1657 = vld [vmem:[%s1641 + $0x3c] sm:$0xf]
    %v1674 = vunpack.c.l.b16 %v1642
    %v1675 = vunpack.c.l.b16 %v1643
    %v1676 = vunpack.c.l.b16 %v1644
    %v1677 = vunpack.c.l.b16 %v1645
    %v1678 = vunpack.c.l.b16 %v1646
    %v1679 = vunpack.c.l.b16 %v1647
    %v1680 = vunpack.c.l.b16 %v1648
    %v1681 = vunpack.c.l.b16 %v1649
    %v1682 = vunpack.c.l.b16 %v1650
    %v1683 = vunpack.c.l.b16 %v1651
    %v1684 = vunpack.c.l.b16 %v1652
    %v1685 = vunpack.c.l.b16 %v1653
    %v1686 = vunpack.c.l.b16 %v1654
    %v1687 = vunpack.c.l.b16 %v1655
    %v1688 = vunpack.c.l.b16 %v1656
    %v1689 = vunpack.c.l.b16 %v1657
    %v1690 = vpack.c.b16 %v1675, %v1674
    %v1691 = vpack.c.b16 %v1677, %v1676
    %v1692 = vpack.c.b16 %v1679, %v1678
    %v1693 = vpack.c.b16 %v1681, %v1680
    %v1694 = vpack.c.b16 %v1683, %v1682
    %v1695 = vpack.c.b16 %v1685, %v1684
    %v1696 = vpack.c.b16 %v1687, %v1686
    %v1697 = vpack.c.b16 %v1689, %v1688
    %1706 = vmatprep.subr.bf16.mxu0 0
    %1707 = vmatpush1.bf16.msra.mxu0 %v1690
    %1708 = vmatprep.subr.bf16.mxu0 0
    %1709 = vmatpush1.bf16.msra.mxu0 %v1691
    %1710 = vmatprep.subr.bf16.mxu0 0
    %1711 = vmatpush1.bf16.msra.mxu0 %v1692
    %1712 = vmatprep.subr.bf16.mxu0 0
    %1713 = vmatpush1.bf16.msra.mxu0 %v1693
    %1714 = vmatprep.subr.bf16.mxu0 0
    %1715 = vmatpush1.bf16.msra.mxu0 %v1694
    %1716 = vmatprep.subr.bf16.mxu0 0
    %1717 = vmatpush1.bf16.msra.mxu0 %v1695
    %1718 = vmatprep.subr.bf16.mxu0 0
    %1719 = vmatpush1.bf16.msra.mxu0 %v1696
    %1720 = vmatprep.subr.bf16.mxu0 0
    %1721 = vmatpush1.bf16.msra.mxu0 %v1697
    %1722 = vmatprep.subr.bf16.mxu0 0
    %1723 = vmatpush1.bf16.msra.mxu0 0
    %1724 = vmatprep.subr.bf16.mxu0 0
    %1725 = vmatpush1.bf16.msra.mxu0 0
    %1726 = vmatprep.subr.bf16.mxu0 0
    %1727 = vmatpush1.bf16.msra.mxu0 0
    %1728 = vmatprep.subr.bf16.mxu0 0
    %1729 = vmatpush1.bf16.msra.mxu0 0
    %1730 = vmatprep.subr.bf16.mxu0 0
    %1731 = vmatpush1.bf16.msra.mxu0 0
    %1732 = vmatprep.subr.bf16.mxu0 0
    %1733 = vmatpush1.bf16.msra.mxu0 0
    %1734 = vmatprep.subr.bf16.mxu0 0
    %1735 = vmatpush1.bf16.msra.mxu0 0
    %1736 = vmatprep.subr.bf16.mxu0 0
    %1737 = vmatpush1.bf16.msra.mxu0 0
    %1738 = vmatprep.mubr.bf16.mxu0 0
    %1739 = vmatmul.mubr.bf16.gmra.mrb[0].mxu0 %v1625
    %v1740 = vpop.f32.mrb[0].mxu0
    %v1741 = vadd.f32 0.0, %v1740
    %v1742 = vpop.f32.mrb[0].mxu0
    %v1743 = vpop.f32.mrb[0].mxu0
    %v1744 = vadd.f32 0.0, %v1743
    %v1745 = vpop.f32.mrb[0].mxu0
    %1746 = vmatprep.mubr.bf16.mxu0 0
    %1747 = vmatmul.mubr.bf16.gmra.mrb[0].mxu0 %v1626
    %v1748 = vpop.f32.mrb[0].mxu0
    %v1749 = vadd.f32 0.0, %v1748
    %v1750 = vpop.f32.mrb[0].mxu0
    %v1751 = vpop.f32.mrb[0].mxu0
    %v1752 = vadd.f32 0.0, %v1751
    %v1753 = vpop.f32.mrb[0].mxu0
    %1754 = vmatprep.mubr.bf16.mxu0 0
    %1755 = vmatmul.mubr.bf16.gmra.mrb[0].mxu0 %v1627
    %v1756 = vpop.f32.mrb[0].mxu0
    %v1757 = vadd.f32 0.0, %v1756
    %v1758 = vpop.f32.mrb[0].mxu0
    %v1759 = vpop.f32.mrb[0].mxu0
    %v1760 = vadd.f32 0.0, %v1759
    %v1761 = vpop.f32.mrb[0].mxu0
    %1762 = vmatprep.mubr.bf16.mxu0 0
    %1763 = vmatmul.mubr.bf16.gmra.mrb[0].mxu0 %v1628
    %v1764 = vpop.f32.mrb[0].mxu0
    %v1765 = vadd.f32 0.0, %v1764
    %v1766 = vpop.f32.mrb[0].mxu0
    %v1767 = vpop.f32.mrb[0].mxu0
    %v1768 = vadd.f32 0.0, %v1767
    %v1769 = vpop.f32.mrb[0].mxu0
    %1770 = vmatprep.mubr.bf16.mxu0 0
    %1771 = vmatmul.mubr.bf16.gmra.mrb[0].mxu0 %v1629
    %v1772 = vpop.f32.mrb[0].mxu0
    %v1773 = vadd.f32 0.0, %v1772
    %v1774 = vpop.f32.mrb[0].mxu0
    %v1775 = vpop.f32.mrb[0].mxu0
    %v1776 = vadd.f32 0.0, %v1775
    %v1777 = vpop.f32.mrb[0].mxu0
    %1778 = vmatprep.mubr.bf16.mxu0 0
    %1779 = vmatmul.mubr.bf16.gmra.mrb[0].mxu0 %v1630
    %v1780 = vpop.f32.mrb[0].mxu0
    %v1781 = vadd.f32 0.0, %v1780
    %v1782 = vpop.f32.mrb[0].mxu0
    %v1783 = vpop.f32.mrb[0].mxu0
    %v1784 = vadd.f32 0.0, %v1783
    %v1785 = vpop.f32.mrb[0].mxu0
    %1786 = vmatprep.mubr.bf16.mxu0 0
    %1787 = vmatmul.mubr.bf16.gmra.mrb[0].mxu0 %v1631
    %v1788 = vpop.f32.mrb[0].mxu0
    %v1789 = vadd.f32 0.0, %v1788
    %v1790 = vpop.f32.mrb[0].mxu0
    %v1791 = vpop.f32.mrb[0].mxu0
    %v1792 = vadd.f32 0.0, %v1791
    %v1793 = vpop.f32.mrb[0].mxu0
    %1794 = vmatprep.mubr.bf16.mxu0 0
    %1795 = vmatmul.mubr.bf16.gmra.mrb[0].mxu0 %v1632
    %v1796 = vpop.f32.mrb[0].mxu0
    %v1797 = vadd.f32 0.0, %v1796
    %v1798 = vpop.f32.mrb[0].mxu0
    %v1799 = vpop.f32.mrb[0].mxu0
    %v1800 = vadd.f32 0.0, %v1799
    %v1801 = vpop.f32.mrb[0].mxu0
    %1802 = vmatprep.mubr.bf16.mxu0 0
    %1803 = vmatmul.mubr.bf16.gmra.mrb[0].mxu0 %v1633
    %v1804 = vpop.f32.mrb[0].mxu0
    %v1805 = vadd.f32 0.0, %v1804
    %v1806 = vpop.f32.mrb[0].mxu0
    %v1807 = vpop.f32.mrb[0].mxu0
    %v1808 = vadd.f32 0.0, %v1807
    %v1809 = vpop.f32.mrb[0].mxu0
    %1810 = vmatprep.mubr.bf16.mxu0 0
    %1811 = vmatmul.mubr.bf16.gmra.mrb[0].mxu0 %v1634
    %v1812 = vpop.f32.mrb[0].mxu0
    %v1813 = vadd.f32 0.0, %v1812
    %v1814 = vpop.f32.mrb[0].mxu0
    %v1815 = vpop.f32.mrb[0].mxu0
    %v1816 = vadd.f32 0.0, %v1815
    %v1817 = vpop.f32.mrb[0].mxu0
    %1818 = vmatprep.mubr.bf16.mxu0 0
    %1819 = vmatmul.mubr.bf16.gmra.mrb[0].mxu0 %v1635
    %v1820 = vpop.f32.mrb[0].mxu0
    %v1821 = vadd.f32 0.0, %v1820
    %v1822 = vpop.f32.mrb[0].mxu0
    %v1823 = vpop.f32.mrb[0].mxu0
    %v1824 = vadd.f32 0.0, %v1823
    %v1825 = vpop.f32.mrb[0].mxu0
    %1826 = vmatprep.mubr.bf16.mxu0 0
    %1827 = vmatmul.mubr.bf16.gmra.mrb[0].mxu0 %v1636
    %v1828 = vpop.f32.mrb[0].mxu0
    %v1829 = vadd.f32 0.0, %v1828
    %v1830 = vpop.f32.mrb[0].mxu0
    %v1831 = vpop.f32.mrb[0].mxu0
    %v1832 = vadd.f32 0.0, %v1831
    %v1833 = vpop.f32.mrb[0].mxu0
    %1834 = vmatprep.mubr.bf16.mxu0 0
    %1835 = vmatmul.mubr.bf16.gmra.mrb[0].mxu0 %v1637
    %v1836 = vpop.f32.mrb[0].mxu0
    %v1837 = vadd.f32 0.0, %v1836
    %v1838 = vpop.f32.mrb[0].mxu0
    %v1839 = vpop.f32.mrb[0].mxu0
    %v1840 = vadd.f32 0.0, %v1839
    %v1841 = vpop.f32.mrb[0].mxu0
    %1842 = vmatprep.mubr.bf16.mxu0 0
    %1843 = vmatmul.mubr.bf16.gmra.mrb[0].mxu0 %v1638
    %v1844 = vpop.f32.mrb[0].mxu0
    %v1845 = vadd.f32 0.0, %v1844
    %v1846 = vpop.f32.mrb[0].mxu0
    %v1847 = vpop.f32.mrb[0].mxu0
    %v1848 = vadd.f32 0.0, %v1847
    %v1849 = vpop.f32.mrb[0].mxu0
    %1850 = vmatprep.mubr.bf16.mxu0 0
    %1851 = vmatmul.mubr.bf16.gmra.mrb[0].mxu0 %v1639
    %v1852 = vpop.f32.mrb[0].mxu0
    %v1853 = vadd.f32 0.0, %v1852
    %v1854 = vpop.f32.mrb[0].mxu0
    %v1855 = vpop.f32.mrb[0].mxu0
    %v1856 = vadd.f32 0.0, %v1855
    %v1857 = vpop.f32.mrb[0].mxu0
    %1858 = vmatprep.mubr.bf16.mxu0 0
    %1859 = vmatmul.mubr.bf16.gmra.mrb[0].mxu0 %v1640
    %v1860 = vpop.f32.mrb[0].mxu0
    %v1861 = vadd.f32 0.0, %v1860
    %v1862 = vpop.f32.mrb[0].mxu0
    %v1863 = vpop.f32.mrb[0].mxu0
    %v1864 = vadd.f32 0.0, %v1863
    %v1865 = vpop.f32.mrb[0].mxu0
    %1866 = vdwg.mxu0
    %v1883 = vunpack.c.l.b16 %v1577
    %v1884 = vunpack.c.l.b16 %v1578
    %v1885 = vunpack.c.l.b16 %v1579
    %v1886 = vunpack.c.l.b16 %v1580
    %v1887 = vunpack.c.l.b16 %v1581
    %v1888 = vunpack.c.l.b16 %v1582
    %v1889 = vunpack.c.l.b16 %v1583
    %v1890 = vunpack.c.l.b16 %v1584
    %v1891 = vunpack.c.l.b16 %v1585
    %v1892 = vunpack.c.l.b16 %v1586
    %v1893 = vunpack.c.l.b16 %v1587
    %v1894 = vunpack.c.l.b16 %v1588
    %v1895 = vunpack.c.l.b16 %v1589
    %v1896 = vunpack.c.l.b16 %v1590
    %v1897 = vunpack.c.l.b16 %v1591
    %v1898 = vunpack.c.l.b16 %v1592
    %v1899 = vpack.c.b16 %v1884, %v1883
    %v1900 = vpack.c.b16 %v1886, %v1885
    %v1901 = vpack.c.b16 %v1888, %v1887
    %v1902 = vpack.c.b16 %v1890, %v1889
    %v1903 = vpack.c.b16 %v1892, %v1891
    %v1904 = vpack.c.b16 %v1894, %v1893
    %v1905 = vpack.c.b16 %v1896, %v1895
    %v1906 = vpack.c.b16 %v1898, %v1897
    %1915 = vmatprep.subr.bf16.mxu0 0
    %1916 = vmatpush1.bf16.msra.mxu0 %v1899
    %1917 = vmatprep.subr.bf16.mxu0 0
    %1918 = vmatpush1.bf16.msra.mxu0 %v1900
    %1919 = vmatprep.subr.bf16.mxu0 0
    %1920 = vmatpush1.bf16.msra.mxu0 %v1901
    %1921 = vmatprep.subr.bf16.mxu0 0
    %1922 = vmatpush1.bf16.msra.mxu0 %v1902
    %1923 = vmatprep.subr.bf16.mxu0 0
    %1924 = vmatpush1.bf16.msra.mxu0 %v1903
    %1925 = vmatprep.subr.bf16.mxu0 0
    %1926 = vmatpush1.bf16.msra.mxu0 %v1904
    %1927 = vmatprep.subr.bf16.mxu0 0
    %1928 = vmatpush1.bf16.msra.mxu0 %v1905
    %1929 = vmatprep.subr.bf16.mxu0 0
    %1930 = vmatpush1.bf16.msra.mxu0 %v1906
    %1931 = vmatprep.subr.bf16.mxu0 0
    %1932 = vmatpush1.bf16.msra.mxu0 0
    %1933 = vmatprep.subr.bf16.mxu0 0
    %1934 = vmatpush1.bf16.msra.mxu0 0
    %1935 = vmatprep.subr.bf16.mxu0 0
    %1936 = vmatpush1.bf16.msra.mxu0 0
    %1937 = vmatprep.subr.bf16.mxu0 0
    %1938 = vmatpush1.bf16.msra.mxu0 0
    %1939 = vmatprep.subr.bf16.mxu0 0
    %1940 = vmatpush1.bf16.msra.mxu0 0
    %1941 = vmatprep.subr.bf16.mxu0 0
    %1942 = vmatpush1.bf16.msra.mxu0 0
    %1943 = vmatprep.subr.bf16.mxu0 0
    %1944 = vmatpush1.bf16.msra.mxu0 0
    %1945 = vmatprep.subr.bf16.mxu0 0
    %1946 = vmatpush1.bf16.msra.mxu0 0
    %1947 = vmatprep.mubr.bf16.mxu0 0
    %1948 = vmatmul.mubr.bf16.gmra.mrb[0].mxu0 %v1561
    %v1949 = vpop.f32.mrb[0].mxu0
    %v1950 = vadd.f32 %v1741, %v1949
    %v1951 = vpop.f32.mrb[0].mxu0
    %v1952 = vpop.f32.mrb[0].mxu0
    %v1953 = vadd.f32 %v1744, %v1952
    %v1954 = vpop.f32.mrb[0].mxu0
    %1955 = vmatprep.mubr.bf16.mxu0 0
    %1956 = vmatmul.mubr.bf16.gmra.mrb[0].mxu0 %v1562
    %v1957 = vpop.f32.mrb[0].mxu0
    %v1958 = vadd.f32 %v1749, %v1957
    %v1959 = vpop.f32.mrb[0].mxu0
    %v1960 = vpop.f32.mrb[0].mxu0
    %v1961 = vadd.f32 %v1752, %v1960
    %v1962 = vpop.f32.mrb[0].mxu0
    %1963 = vmatprep.mubr.bf16.mxu0 0
    %1964 = vmatmul.mubr.bf16.gmra.mrb[0].mxu0 %v1563
    %v1965 = vpop.f32.mrb[0].mxu0
    %v1966 = vadd.f32 %v1757, %v1965
    %v1967 = vpop.f32.mrb[0].mxu0
    %v1968 = vpop.f32.mrb[0].mxu0
    %v1969 = vadd.f32 %v1760, %v1968
    %v1970 = vpop.f32.mrb[0].mxu0
    %1971 = vmatprep.mubr.bf16.mxu0 0
    %1972 = vmatmul.mubr.bf16.gmra.mrb[0].mxu0 %v1564
    %v1973 = vpop.f32.mrb[0].mxu0
    %v1974 = vadd.f32 %v1765, %v1973
    %v1975 = vpop.f32.mrb[0].mxu0
    %v1976 = vpop.f32.mrb[0].mxu0
    %v1977 = vadd.f32 %v1768, %v1976
    %v1978 = vpop.f32.mrb[0].mxu0
    %1979 = vmatprep.mubr.bf16.mxu0 0
    %1980 = vmatmul.mubr.bf16.gmra.mrb[0].mxu0 %v1565
    %v1981 = vpop.f32.mrb[0].mxu0
    %v1982 = vadd.f32 %v1773, %v1981
    %v1983 = vpop.f32.mrb[0].mxu0
    %v1984 = vpop.f32.mrb[0].mxu0
    %v1985 = vadd.f32 %v1776, %v1984
    %v1986 = vpop.f32.mrb[0].mxu0
    %1987 = vmatprep.mubr.bf16.mxu0 0
    %1988 = vmatmul.mubr.bf16.gmra.mrb[0].mxu0 %v1566
    %v1989 = vpop.f32.mrb[0].mxu0
    %v1990 = vadd.f32 %v1781, %v1989
    %v1991 = vpop.f32.mrb[0].mxu0
    %v1992 = vpop.f32.mrb[0].mxu0
    %v1993 = vadd.f32 %v1784, %v1992
    %v1994 = vpop.f32.mrb[0].mxu0
    %1995 = vmatprep.mubr.bf16.mxu0 0
    %1996 = vmatmul.mubr.bf16.gmra.mrb[0].mxu0 %v1567
    %v1997 = vpop.f32.mrb[0].mxu0
    %v1998 = vadd.f32 %v1789, %v1997
    %v1999 = vpop.f32.mrb[0].mxu0
    %v2000 = vpop.f32.mrb[0].mxu0
    %v2001 = vadd.f32 %v1792, %v2000
    %v2002 = vpop.f32.mrb[0].mxu0
    %2003 = vmatprep.mubr.bf16.mxu0 0
    %2004 = vmatmul.mubr.bf16.gmra.mrb[0].mxu0 %v1568
    %v2005 = vpop.f32.mrb[0].mxu0
    %v2006 = vadd.f32 %v1797, %v2005
    %v2007 = vpop.f32.mrb[0].mxu0
    %v2008 = vpop.f32.mrb[0].mxu0
    %v2009 = vadd.f32 %v1800, %v2008
    %v2010 = vpop.f32.mrb[0].mxu0
    %2011 = vmatprep.mubr.bf16.mxu0 0
    %2012 = vmatmul.mubr.bf16.gmra.mrb[0].mxu0 %v1569
    %v2013 = vpop.f32.mrb[0].mxu0
    %v2014 = vadd.f32 %v1805, %v2013
    %v2015 = vpop.f32.mrb[0].mxu0
    %v2016 = vpop.f32.mrb[0].mxu0
    %v2017 = vadd.f32 %v1808, %v2016
    %v2018 = vpop.f32.mrb[0].mxu0
    %2019 = vmatprep.mubr.bf16.mxu0 0
    %2020 = vmatmul.mubr.bf16.gmra.mrb[0].mxu0 %v1570
    %v2021 = vpop.f32.mrb[0].mxu0
    %v2022 = vadd.f32 %v1813, %v2021
    %v2023 = vpop.f32.mrb[0].mxu0
    %v2024 = vpop.f32.mrb[0].mxu0
    %v2025 = vadd.f32 %v1816, %v2024
    %v2026 = vpop.f32.mrb[0].mxu0
    %2027 = vmatprep.mubr.bf16.mxu0 0
    %2028 = vmatmul.mubr.bf16.gmra.mrb[0].mxu0 %v1571
    %v2029 = vpop.f32.mrb[0].mxu0
    %v2030 = vadd.f32 %v1821, %v2029
    %v2031 = vpop.f32.mrb[0].mxu0
    %v2032 = vpop.f32.mrb[0].mxu0
    %v2033 = vadd.f32 %v1824, %v2032
    %v2034 = vpop.f32.mrb[0].mxu0
    %2035 = vmatprep.mubr.bf16.mxu0 0
    %2036 = vmatmul.mubr.bf16.gmra.mrb[0].mxu0 %v1572
    %v2037 = vpop.f32.mrb[0].mxu0
    %v2038 = vadd.f32 %v1829, %v2037
    %v2039 = vpop.f32.mrb[0].mxu0
    %v2040 = vpop.f32.mrb[0].mxu0
    %v2041 = vadd.f32 %v1832, %v2040
    %v2042 = vpop.f32.mrb[0].mxu0
    %2043 = vmatprep.mubr.bf16.mxu0 0
    %2044 = vmatmul.mubr.bf16.gmra.mrb[0].mxu0 %v1573
    %v2045 = vpop.f32.mrb[0].mxu0
    %v2046 = vadd.f32 %v1837, %v2045
    %v2047 = vpop.f32.mrb[0].mxu0
    %v2048 = vpop.f32.mrb[0].mxu0
    %v2049 = vadd.f32 %v1840, %v2048
    %v2050 = vpop.f32.mrb[0].mxu0
    %2051 = vmatprep.mubr.bf16.mxu0 0
    %2052 = vmatmul.mubr.bf16.gmra.mrb[0].mxu0 %v1574
    %v2053 = vpop.f32.mrb[0].mxu0
    %v2054 = vadd.f32 %v1845, %v2053
    %v2055 = vpop.f32.mrb[0].mxu0
    %v2056 = vpop.f32.mrb[0].mxu0
    %v2057 = vadd.f32 %v1848, %v2056
    %v2058 = vpop.f32.mrb[0].mxu0
    %2059 = vmatprep.mubr.bf16.mxu0 0
    %2060 = vmatmul.mubr.bf16.gmra.mrb[0].mxu0 %v1575
    %v2061 = vpop.f32.mrb[0].mxu0
    %v2062 = vadd.f32 %v1853, %v2061
    %v2063 = vpop.f32.mrb[0].mxu0
    %v2064 = vpop.f32.mrb[0].mxu0
    %v2065 = vadd.f32 %v1856, %v2064
    %v2066 = vpop.f32.mrb[0].mxu0
    %2067 = vmatprep.mubr.bf16.mxu0 0
    %2068 = vmatmul.mubr.bf16.gmra.mrb[0].mxu0 %v1576
    %v2069 = vpop.f32.mrb[0].mxu0
    %v2070 = vadd.f32 %v1861, %v2069
    %v2071 = vpop.f32.mrb[0].mxu0
    %v2072 = vpop.f32.mrb[0].mxu0
    %v2073 = vadd.f32 %v1864, %v2072
    %v2074 = vpop.f32.mrb[0].mxu0
    %2075 = vdwg.mxu0
    %v2076 = vld [vmem:[#allocation3 + $0x2] sm:$0xff]
    %v2077 = vld [vmem:[#allocation3 + $0xa] sm:$0xff]
    %v2078 = vld [vmem:[#allocation3 + $0x12] sm:$0xff]
    %v2079 = vld [vmem:[#allocation3 + $0x1a] sm:$0xff]
    %v2080 = vld [vmem:[#allocation3 + $0x22] sm:$0xff]
    %v2081 = vld [vmem:[#allocation3 + $0x2a] sm:$0xff]
    %v2082 = vld [vmem:[#allocation3 + $0x32] sm:$0xff]
    %v2083 = vld [vmem:[#allocation3 + $0x3a] sm:$0xff]
    %v2084 = vld [vmem:[#allocation3 + $0x42] sm:$0xff]
    %v2085 = vld [vmem:[#allocation3 + $0x4a] sm:$0xff]
    %v2086 = vld [vmem:[#allocation3 + $0x52] sm:$0xff]
    %v2087 = vld [vmem:[#allocation3 + $0x5a] sm:$0xff]
    %v2088 = vld [vmem:[#allocation3 + $0x62] sm:$0xff]
    %v2089 = vld [vmem:[#allocation3 + $0x6a] sm:$0xff]
    %v2090 = vld [vmem:[#allocation3 + $0x72] sm:$0xff]
    %v2091 = vld [vmem:[#allocation3 + $0x7a] sm:$0xff]
    %v2092 = vld [vmem:[#allocation3 + $0x82] sm:$0xff]
    %v2093 = vld [vmem:[#allocation3 + $0x8a] sm:$0xff]
    %v2094 = vld [vmem:[#allocation3 + $0x92] sm:$0xff]
    %v2095 = vld [vmem:[#allocation3 + $0x9a] sm:$0xff]
    %v2096 = vld [vmem:[#allocation3 + $0xa2] sm:$0xff]
    %v2097 = vld [vmem:[#allocation3 + $0xaa] sm:$0xff]
    %v2098 = vld [vmem:[#allocation3 + $0xb2] sm:$0xff]
    %v2099 = vld [vmem:[#allocation3 + $0xba] sm:$0xff]
    %v2100 = vld [vmem:[#allocation3 + $0xc2] sm:$0xff]
    %v2101 = vld [vmem:[#allocation3 + $0xca] sm:$0xff]
    %v2102 = vld [vmem:[#allocation3 + $0xd2] sm:$0xff]
    %v2103 = vld [vmem:[#allocation3 + $0xda] sm:$0xff]
    %v2104 = vld [vmem:[#allocation3 + $0xe2] sm:$0xff]
    %v2105 = vld [vmem:[#allocation3 + $0xea] sm:$0xff]
    %v2106 = vld [vmem:[#allocation3 + $0xf2] sm:$0xff]
    %v2107 = vld [vmem:[#allocation3 + $0xfa] sm:$0xff]
    %v2108 = vpack.c.bf16 %v2077, %v2076
    %v2109 = vpack.c.bf16 %v2079, %v2078
    %v2110 = vpack.c.bf16 %v2081, %v2080
    %v2111 = vpack.c.bf16 %v2083, %v2082
    %v2112 = vpack.c.bf16 %v2085, %v2084
    %v2113 = vpack.c.bf16 %v2087, %v2086
    %v2114 = vpack.c.bf16 %v2089, %v2088
    %v2115 = vpack.c.bf16 %v2091, %v2090
    %v2116 = vpack.c.bf16 %v2093, %v2092
    %v2117 = vpack.c.bf16 %v2095, %v2094
    %v2118 = vpack.c.bf16 %v2097, %v2096
    %v2119 = vpack.c.bf16 %v2099, %v2098
    %v2120 = vpack.c.bf16 %v2101, %v2100
    %v2121 = vpack.c.bf16 %v2103, %v2102
    %v2122 = vpack.c.bf16 %v2105, %v2104
    %v2123 = vpack.c.bf16 %v2107, %v2106
    %s2124 = scalar_lea.vmem [#allocation7], 128
    %v2125 = vld [vmem:[%s2124] sm:$0xf]
    %v2126 = vld [vmem:[%s2124 + $0x4] sm:$0xf]
    %v2127 = vld [vmem:[%s2124 + $0x8] sm:$0xf]
    %v2128 = vld [vmem:[%s2124 + $0xc] sm:$0xf]
    %v2129 = vld [vmem:[%s2124 + $0x10] sm:$0xf]
    %v2130 = vld [vmem:[%s2124 + $0x14] sm:$0xf]
    %v2131 = vld [vmem:[%s2124 + $0x18] sm:$0xf]
    %v2132 = vld [vmem:[%s2124 + $0x1c] sm:$0xf]
    %v2133 = vld [vmem:[%s2124 + $0x20] sm:$0xf]
    %v2134 = vld [vmem:[%s2124 + $0x24] sm:$0xf]
    %v2135 = vld [vmem:[%s2124 + $0x28] sm:$0xf]
    %v2136 = vld [vmem:[%s2124 + $0x2c] sm:$0xf]
    %v2137 = vld [vmem:[%s2124 + $0x30] sm:$0xf]
    %v2138 = vld [vmem:[%s2124 + $0x34] sm:$0xf]
    %v2139 = vld [vmem:[%s2124 + $0x38] sm:$0xf]
    %v2140 = vld [vmem:[%s2124 + $0x3c] sm:$0xf]
    %v2157 = vunpack.c.l.b16 %v2125
    %v2158 = vunpack.c.l.b16 %v2126
    %v2159 = vunpack.c.l.b16 %v2127
    %v2160 = vunpack.c.l.b16 %v2128
    %v2161 = vunpack.c.l.b16 %v2129
    %v2162 = vunpack.c.l.b16 %v2130
    %v2163 = vunpack.c.l.b16 %v2131
    %v2164 = vunpack.c.l.b16 %v2132
    %v2165 = vunpack.c.l.b16 %v2133
    %v2166 = vunpack.c.l.b16 %v2134
    %v2167 = vunpack.c.l.b16 %v2135
    %v2168 = vunpack.c.l.b16 %v2136
    %v2169 = vunpack.c.l.b16 %v2137
    %v2170 = vunpack.c.l.b16 %v2138
    %v2171 = vunpack.c.l.b16 %v2139
    %v2172 = vunpack.c.l.b16 %v2140
    %v2173 = vpack.c.b16 %v2158, %v2157
    %v2174 = vpack.c.b16 %v2160, %v2159
    %v2175 = vpack.c.b16 %v2162, %v2161
    %v2176 = vpack.c.b16 %v2164, %v2163
    %v2177 = vpack.c.b16 %v2166, %v2165
    %v2178 = vpack.c.b16 %v2168, %v2167
    %v2179 = vpack.c.b16 %v2170, %v2169
    %v2180 = vpack.c.b16 %v2172, %v2171
    %2189 = vmatprep.subr.bf16.mxu0 0
    %2190 = vmatpush1.bf16.msra.mxu0 %v2173
    %2191 = vmatprep.subr.bf16.mxu0 0
    %2192 = vmatpush1.bf16.msra.mxu0 %v2174
    %2193 = vmatprep.subr.bf16.mxu0 0
    %2194 = vmatpush1.bf16.msra.mxu0 %v2175
    %2195 = vmatprep.subr.bf16.mxu0 0
    %2196 = vmatpush1.bf16.msra.mxu0 %v2176
    %2197 = vmatprep.subr.bf16.mxu0 0
    %2198 = vmatpush1.bf16.msra.mxu0 %v2177
    %2199 = vmatprep.subr.bf16.mxu0 0
    %2200 = vmatpush1.bf16.msra.mxu0 %v2178
    %2201 = vmatprep.subr.bf16.mxu0 0
    %2202 = vmatpush1.bf16.msra.mxu0 %v2179
    %2203 = vmatprep.subr.bf16.mxu0 0
    %2204 = vmatpush1.bf16.msra.mxu0 %v2180
    %2205 = vmatprep.subr.bf16.mxu0 0
    %2206 = vmatpush1.bf16.msra.mxu0 0
    %2207 = vmatprep.subr.bf16.mxu0 0
    %2208 = vmatpush1.bf16.msra.mxu0 0
    %2209 = vmatprep.subr.bf16.mxu0 0
    %2210 = vmatpush1.bf16.msra.mxu0 0
    %2211 = vmatprep.subr.bf16.mxu0 0
    %2212 = vmatpush1.bf16.msra.mxu0 0
    %2213 = vmatprep.subr.bf16.mxu0 0
    %2214 = vmatpush1.bf16.msra.mxu0 0
    %2215 = vmatprep.subr.bf16.mxu0 0
    %2216 = vmatpush1.bf16.msra.mxu0 0
    %2217 = vmatprep.subr.bf16.mxu0 0
    %2218 = vmatpush1.bf16.msra.mxu0 0
    %2219 = vmatprep.subr.bf16.mxu0 0
    %2220 = vmatpush1.bf16.msra.mxu0 0
    %2221 = vmatprep.mubr.bf16.mxu0 0
    %2222 = vmatmul.mubr.bf16.gmra.mrb[0].mxu0 %v2108
    %v2223 = vpop.f32.mrb[0].mxu0
    %v2224 = vadd.f32 0.0, %v2223
    %v2225 = vpop.f32.mrb[0].mxu0
    %v2226 = vpop.f32.mrb[0].mxu0
    %v2227 = vadd.f32 0.0, %v2226
    %v2228 = vpop.f32.mrb[0].mxu0
    %2229 = vmatprep.mubr.bf16.mxu0 0
    %2230 = vmatmul.mubr.bf16.gmra.mrb[0].mxu0 %v2109
    %v2231 = vpop.f32.mrb[0].mxu0
    %v2232 = vadd.f32 0.0, %v2231
    %v2233 = vpop.f32.mrb[0].mxu0
    %v2234 = vpop.f32.mrb[0].mxu0
    %v2235 = vadd.f32 0.0, %v2234
    %v2236 = vpop.f32.mrb[0].mxu0
    %2237 = vmatprep.mubr.bf16.mxu0 0
    %2238 = vmatmul.mubr.bf16.gmra.mrb[0].mxu0 %v2110
    %v2239 = vpop.f32.mrb[0].mxu0
    %v2240 = vadd.f32 0.0, %v2239
    %v2241 = vpop.f32.mrb[0].mxu0
    %v2242 = vpop.f32.mrb[0].mxu0
    %v2243 = vadd.f32 0.0, %v2242
    %v2244 = vpop.f32.mrb[0].mxu0
    %2245 = vmatprep.mubr.bf16.mxu0 0
    %2246 = vmatmul.mubr.bf16.gmra.mrb[0].mxu0 %v2111
    %v2247 = vpop.f32.mrb[0].mxu0
    %v2248 = vadd.f32 0.0, %v2247
    %v2249 = vpop.f32.mrb[0].mxu0
    %v2250 = vpop.f32.mrb[0].mxu0
    %v2251 = vadd.f32 0.0, %v2250
    %v2252 = vpop.f32.mrb[0].mxu0
    %2253 = vmatprep.mubr.bf16.mxu0 0
    %2254 = vmatmul.mubr.bf16.gmra.mrb[0].mxu0 %v2112
    %v2255 = vpop.f32.mrb[0].mxu0
    %v2256 = vadd.f32 0.0, %v2255
    %v2257 = vpop.f32.mrb[0].mxu0
    %v2258 = vpop.f32.mrb[0].mxu0
    %v2259 = vadd.f32 0.0, %v2258
    %v2260 = vpop.f32.mrb[0].mxu0
    %2261 = vmatprep.mubr.bf16.mxu0 0
    %2262 = vmatmul.mubr.bf16.gmra.mrb[0].mxu0 %v2113
    %v2263 = vpop.f32.mrb[0].mxu0
    %v2264 = vadd.f32 0.0, %v2263
    %v2265 = vpop.f32.mrb[0].mxu0
    %v2266 = vpop.f32.mrb[0].mxu0
    %v2267 = vadd.f32 0.0, %v2266
    %v2268 = vpop.f32.mrb[0].mxu0
    %2269 = vmatprep.mubr.bf16.mxu0 0
    %2270 = vmatmul.mubr.bf16.gmra.mrb[0].mxu0 %v2114
    %v2271 = vpop.f32.mrb[0].mxu0
    %v2272 = vadd.f32 0.0, %v2271
    %v2273 = vpop.f32.mrb[0].mxu0
    %v2274 = vpop.f32.mrb[0].mxu0
    %v2275 = vadd.f32 0.0, %v2274
    %v2276 = vpop.f32.mrb[0].mxu0
    %2277 = vmatprep.mubr.bf16.mxu0 0
    %2278 = vmatmul.mubr.bf16.gmra.mrb[0].mxu0 %v2115
    %v2279 = vpop.f32.mrb[0].mxu0
    %v2280 = vadd.f32 0.0, %v2279
    %v2281 = vpop.f32.mrb[0].mxu0
    %v2282 = vpop.f32.mrb[0].mxu0
    %v2283 = vadd.f32 0.0, %v2282
    %v2284 = vpop.f32.mrb[0].mxu0
    %2285 = vmatprep.mubr.bf16.mxu0 0
    %2286 = vmatmul.mubr.bf16.gmra.mrb[0].mxu0 %v2116
    %v2287 = vpop.f32.mrb[0].mxu0
    %v2288 = vadd.f32 0.0, %v2287
    %v2289 = vpop.f32.mrb[0].mxu0
    %v2290 = vpop.f32.mrb[0].mxu0
    %v2291 = vadd.f32 0.0, %v2290
    %v2292 = vpop.f32.mrb[0].mxu0
    %2293 = vmatprep.mubr.bf16.mxu0 0
    %2294 = vmatmul.mubr.bf16.gmra.mrb[0].mxu0 %v2117
    %v2295 = vpop.f32.mrb[0].mxu0
    %v2296 = vadd.f32 0.0, %v2295
    %v2297 = vpop.f32.mrb[0].mxu0
    %v2298 = vpop.f32.mrb[0].mxu0
    %v2299 = vadd.f32 0.0, %v2298
    %v2300 = vpop.f32.mrb[0].mxu0
    %2301 = vmatprep.mubr.bf16.mxu0 0
    %2302 = vmatmul.mubr.bf16.gmra.mrb[0].mxu0 %v2118
    %v2303 = vpop.f32.mrb[0].mxu0
    %v2304 = vadd.f32 0.0, %v2303
    %v2305 = vpop.f32.mrb[0].mxu0
    %v2306 = vpop.f32.mrb[0].mxu0
    %v2307 = vadd.f32 0.0, %v2306
    %v2308 = vpop.f32.mrb[0].mxu0
    %2309 = vmatprep.mubr.bf16.mxu0 0
    %2310 = vmatmul.mubr.bf16.gmra.mrb[0].mxu0 %v2119
    %v2311 = vpop.f32.mrb[0].mxu0
    %v2312 = vadd.f32 0.0, %v2311
    %v2313 = vpop.f32.mrb[0].mxu0
    %v2314 = vpop.f32.mrb[0].mxu0
    %v2315 = vadd.f32 0.0, %v2314
    %v2316 = vpop.f32.mrb[0].mxu0
    %2317 = vmatprep.mubr.bf16.mxu0 0
    %2318 = vmatmul.mubr.bf16.gmra.mrb[0].mxu0 %v2120
    %v2319 = vpop.f32.mrb[0].mxu0
    %v2320 = vadd.f32 0.0, %v2319
    %v2321 = vpop.f32.mrb[0].mxu0
    %v2322 = vpop.f32.mrb[0].mxu0
    %v2323 = vadd.f32 0.0, %v2322
    %v2324 = vpop.f32.mrb[0].mxu0
    %2325 = vmatprep.mubr.bf16.mxu0 0
    %2326 = vmatmul.mubr.bf16.gmra.mrb[0].mxu0 %v2121
    %v2327 = vpop.f32.mrb[0].mxu0
    %v2328 = vadd.f32 0.0, %v2327
    %v2329 = vpop.f32.mrb[0].mxu0
    %v2330 = vpop.f32.mrb[0].mxu0
    %v2331 = vadd.f32 0.0, %v2330
    %v2332 = vpop.f32.mrb[0].mxu0
    %2333 = vmatprep.mubr.bf16.mxu0 0
    %2334 = vmatmul.mubr.bf16.gmra.mrb[0].mxu0 %v2122
    %v2335 = vpop.f32.mrb[0].mxu0
    %v2336 = vadd.f32 0.0, %v2335
    %v2337 = vpop.f32.mrb[0].mxu0
    %v2338 = vpop.f32.mrb[0].mxu0
    %v2339 = vadd.f32 0.0, %v2338
    %v2340 = vpop.f32.mrb[0].mxu0
    %2341 = vmatprep.mubr.bf16.mxu0 0
    %2342 = vmatmul.mubr.bf16.gmra.mrb[0].mxu0 %v2123
    %v2343 = vpop.f32.mrb[0].mxu0
    %v2344 = vadd.f32 0.0, %v2343
    %v2345 = vpop.f32.mrb[0].mxu0
    %v2346 = vpop.f32.mrb[0].mxu0
    %v2347 = vadd.f32 0.0, %v2346
    %v2348 = vpop.f32.mrb[0].mxu0
    %2349 = vdwg.mxu0
    %v2350 = vadd.f32 %v1950, %v2224
    %v2351 = vadd.f32 %v1953, %v2227
    %v2352 = vadd.f32 %v1958, %v2232
    %v2353 = vadd.f32 %v1961, %v2235
    %v2354 = vadd.f32 %v1966, %v2240
    %v2355 = vadd.f32 %v1969, %v2243
    %v2356 = vadd.f32 %v1974, %v2248
    %v2357 = vadd.f32 %v1977, %v2251
    %v2358 = vadd.f32 %v1982, %v2256
    %v2359 = vadd.f32 %v1985, %v2259
    %v2360 = vadd.f32 %v1990, %v2264
    %v2361 = vadd.f32 %v1993, %v2267
    %v2362 = vadd.f32 %v1998, %v2272
    %v2363 = vadd.f32 %v2001, %v2275
    %v2364 = vadd.f32 %v2006, %v2280
    %v2365 = vadd.f32 %v2009, %v2283
    %v2366 = vadd.f32 %v2014, %v2288
    %v2367 = vadd.f32 %v2017, %v2291
    %v2368 = vadd.f32 %v2022, %v2296
    %v2369 = vadd.f32 %v2025, %v2299
    %v2370 = vadd.f32 %v2030, %v2304
    %v2371 = vadd.f32 %v2033, %v2307
    %v2372 = vadd.f32 %v2038, %v2312
    %v2373 = vadd.f32 %v2041, %v2315
    %v2374 = vadd.f32 %v2046, %v2320
    %v2375 = vadd.f32 %v2049, %v2323
    %v2376 = vadd.f32 %v2054, %v2328
    %v2377 = vadd.f32 %v2057, %v2331
    %v2378 = vadd.f32 %v2062, %v2336
    %v2379 = vadd.f32 %v2065, %v2339
    %v2380 = vadd.f32 %v2070, %v2344
    %v2381 = vadd.f32 %v2073, %v2347
    %v2382 = vld [vmem:[#allocation3 + $0x3] sm:$0xff]
    %v2383 = vld [vmem:[#allocation3 + $0xb] sm:$0xff]
    %v2384 = vld [vmem:[#allocation3 + $0x13] sm:$0xff]
    %v2385 = vld [vmem:[#allocation3 + $0x1b] sm:$0xff]
    %v2386 = vld [vmem:[#allocation3 + $0x23] sm:$0xff]
    %v2387 = vld [vmem:[#allocation3 + $0x2b] sm:$0xff]
    %v2388 = vld [vmem:[#allocation3 + $0x33] sm:$0xff]
    %v2389 = vld [vmem:[#allocation3 + $0x3b] sm:$0xff]
    %v2390 = vld [vmem:[#allocation3 + $0x43] sm:$0xff]
    %v2391 = vld [vmem:[#allocation3 + $0x4b] sm:$0xff]
    %v2392 = vld [vmem:[#allocation3 + $0x53] sm:$0xff]
    %v2393 = vld [vmem:[#allocation3 + $0x5b] sm:$0xff]
    %v2394 = vld [vmem:[#allocation3 + $0x63] sm:$0xff]
    %v2395 = vld [vmem:[#allocation3 + $0x6b] sm:$0xff]
    %v2396 = vld [vmem:[#allocation3 + $0x73] sm:$0xff]
    %v2397 = vld [vmem:[#allocation3 + $0x7b] sm:$0xff]
    %v2398 = vld [vmem:[#allocation3 + $0x83] sm:$0xff]
    %v2399 = vld [vmem:[#allocation3 + $0x8b] sm:$0xff]
    %v2400 = vld [vmem:[#allocation3 + $0x93] sm:$0xff]
    %v2401 = vld [vmem:[#allocation3 + $0x9b] sm:$0xff]
    %v2402 = vld [vmem:[#allocation3 + $0xa3] sm:$0xff]
    %v2403 = vld [vmem:[#allocation3 + $0xab] sm:$0xff]
    %v2404 = vld [vmem:[#allocation3 + $0xb3] sm:$0xff]
    %v2405 = vld [vmem:[#allocation3 + $0xbb] sm:$0xff]
    %v2406 = vld [vmem:[#allocation3 + $0xc3] sm:$0xff]
    %v2407 = vld [vmem:[#allocation3 + $0xcb] sm:$0xff]
    %v2408 = vld [vmem:[#allocation3 + $0xd3] sm:$0xff]
    %v2409 = vld [vmem:[#allocation3 + $0xdb] sm:$0xff]
    %v2410 = vld [vmem:[#allocation3 + $0xe3] sm:$0xff]
    %v2411 = vld [vmem:[#allocation3 + $0xeb] sm:$0xff]
    %v2412 = vld [vmem:[#allocation3 + $0xf3] sm:$0xff]
    %v2413 = vld [vmem:[#allocation3 + $0xfb] sm:$0xff]
    %v2414 = vpack.c.bf16 %v2383, %v2382
    %v2415 = vpack.c.bf16 %v2385, %v2384
    %v2416 = vpack.c.bf16 %v2387, %v2386
    %v2417 = vpack.c.bf16 %v2389, %v2388
    %v2418 = vpack.c.bf16 %v2391, %v2390
    %v2419 = vpack.c.bf16 %v2393, %v2392
    %v2420 = vpack.c.bf16 %v2395, %v2394
    %v2421 = vpack.c.bf16 %v2397, %v2396
    %v2422 = vpack.c.bf16 %v2399, %v2398
    %v2423 = vpack.c.bf16 %v2401, %v2400
    %v2424 = vpack.c.bf16 %v2403, %v2402
    %v2425 = vpack.c.bf16 %v2405, %v2404
    %v2426 = vpack.c.bf16 %v2407, %v2406
    %v2427 = vpack.c.bf16 %v2409, %v2408
    %v2428 = vpack.c.bf16 %v2411, %v2410
    %v2429 = vpack.c.bf16 %v2413, %v2412
    %s2430 = scalar_lea.vmem [#allocation7], 192
    %v2431 = vld [vmem:[%s2430] sm:$0xf]
    %v2432 = vld [vmem:[%s2430 + $0x4] sm:$0xf]
    %v2433 = vld [vmem:[%s2430 + $0x8] sm:$0xf]
    %v2434 = vld [vmem:[%s2430 + $0xc] sm:$0xf]
    %v2435 = vld [vmem:[%s2430 + $0x10] sm:$0xf]
    %v2436 = vld [vmem:[%s2430 + $0x14] sm:$0xf]
    %v2437 = vld [vmem:[%s2430 + $0x18] sm:$0xf]
    %v2438 = vld [vmem:[%s2430 + $0x1c] sm:$0xf]
    %v2439 = vld [vmem:[%s2430 + $0x20] sm:$0xf]
    %v2440 = vld [vmem:[%s2430 + $0x24] sm:$0xf]
    %v2441 = vld [vmem:[%s2430 + $0x28] sm:$0xf]
    %v2442 = vld [vmem:[%s2430 + $0x2c] sm:$0xf]
    %v2443 = vld [vmem:[%s2430 + $0x30] sm:$0xf]
    %v2444 = vld [vmem:[%s2430 + $0x34] sm:$0xf]
    %v2445 = vld [vmem:[%s2430 + $0x38] sm:$0xf]
    %v2446 = vld [vmem:[%s2430 + $0x3c] sm:$0xf]
    %v2463 = vunpack.c.l.b16 %v2431
    %v2464 = vunpack.c.l.b16 %v2432
    %v2465 = vunpack.c.l.b16 %v2433
    %v2466 = vunpack.c.l.b16 %v2434
    %v2467 = vunpack.c.l.b16 %v2435
    %v2468 = vunpack.c.l.b16 %v2436
    %v2469 = vunpack.c.l.b16 %v2437
    %v2470 = vunpack.c.l.b16 %v2438
    %v2471 = vunpack.c.l.b16 %v2439
    %v2472 = vunpack.c.l.b16 %v2440
    %v2473 = vunpack.c.l.b16 %v2441
    %v2474 = vunpack.c.l.b16 %v2442
    %v2475 = vunpack.c.l.b16 %v2443
    %v2476 = vunpack.c.l.b16 %v2444
    %v2477 = vunpack.c.l.b16 %v2445
    %v2478 = vunpack.c.l.b16 %v2446
    %v2479 = vpack.c.b16 %v2464, %v2463
    %v2480 = vpack.c.b16 %v2466, %v2465
    %v2481 = vpack.c.b16 %v2468, %v2467
    %v2482 = vpack.c.b16 %v2470, %v2469
    %v2483 = vpack.c.b16 %v2472, %v2471
    %v2484 = vpack.c.b16 %v2474, %v2473
    %v2485 = vpack.c.b16 %v2476, %v2475
    %v2486 = vpack.c.b16 %v2478, %v2477
    %2495 = vmatprep.subr.bf16.mxu0 0
    %2496 = vmatpush1.bf16.msra.mxu0 %v2479
    %2497 = vmatprep.subr.bf16.mxu0 0
    %2498 = vmatpush1.bf16.msra.mxu0 %v2480
    %2499 = vmatprep.subr.bf16.mxu0 0
    %2500 = vmatpush1.bf16.msra.mxu0 %v2481
    %2501 = vmatprep.subr.bf16.mxu0 0
    %2502 = vmatpush1.bf16.msra.mxu0 %v2482
    %2503 = vmatprep.subr.bf16.mxu0 0
    %2504 = vmatpush1.bf16.msra.mxu0 %v2483
    %2505 = vmatprep.subr.bf16.mxu0 0
    %2506 = vmatpush1.bf16.msra.mxu0 %v2484
    %2507 = vmatprep.subr.bf16.mxu0 0
    %2508 = vmatpush1.bf16.msra.mxu0 %v2485
    %2509 = vmatprep.subr.bf16.mxu0 0
    %2510 = vmatpush1.bf16.msra.mxu0 %v2486
    %2511 = vmatprep.subr.bf16.mxu0 0
    %2512 = vmatpush1.bf16.msra.mxu0 0
    %2513 = vmatprep.subr.bf16.mxu0 0
    %2514 = vmatpush1.bf16.msra.mxu0 0
    %2515 = vmatprep.subr.bf16.mxu0 0
    %2516 = vmatpush1.bf16.msra.mxu0 0
    %2517 = vmatprep.subr.bf16.mxu0 0
    %2518 = vmatpush1.bf16.msra.mxu0 0
    %2519 = vmatprep.subr.bf16.mxu0 0
    %2520 = vmatpush1.bf16.msra.mxu0 0
    %2521 = vmatprep.subr.bf16.mxu0 0
    %2522 = vmatpush1.bf16.msra.mxu0 0
    %2523 = vmatprep.subr.bf16.mxu0 0
    %2524 = vmatpush1.bf16.msra.mxu0 0
    %2525 = vmatprep.subr.bf16.mxu0 0
    %2526 = vmatpush1.bf16.msra.mxu0 0
    %2527 = vmatprep.mubr.bf16.mxu0 0
    %2528 = vmatmul.mubr.bf16.gmra.mrb[0].mxu0 %v2414
    %v2529 = vpop.f32.mrb[0].mxu0
    %v2530 = vadd.f32 0.0, %v2529
    %v2531 = vpop.f32.mrb[0].mxu0
    %v2532 = vpop.f32.mrb[0].mxu0
    %v2533 = vadd.f32 0.0, %v2532
    %v2534 = vpop.f32.mrb[0].mxu0
    %2535 = vmatprep.mubr.bf16.mxu0 0
    %2536 = vmatmul.mubr.bf16.gmra.mrb[0].mxu0 %v2415
    %v2537 = vpop.f32.mrb[0].mxu0
    %v2538 = vadd.f32 0.0, %v2537
    %v2539 = vpop.f32.mrb[0].mxu0
    %v2540 = vpop.f32.mrb[0].mxu0
    %v2541 = vadd.f32 0.0, %v2540
    %v2542 = vpop.f32.mrb[0].mxu0
    %2543 = vmatprep.mubr.bf16.mxu0 0
    %2544 = vmatmul.mubr.bf16.gmra.mrb[0].mxu0 %v2416
    %v2545 = vpop.f32.mrb[0].mxu0
    %v2546 = vadd.f32 0.0, %v2545
    %v2547 = vpop.f32.mrb[0].mxu0
    %v2548 = vpop.f32.mrb[0].mxu0
    %v2549 = vadd.f32 0.0, %v2548
    %v2550 = vpop.f32.mrb[0].mxu0
    %2551 = vmatprep.mubr.bf16.mxu0 0
    %2552 = vmatmul.mubr.bf16.gmra.mrb[0].mxu0 %v2417
    %v2553 = vpop.f32.mrb[0].mxu0
    %v2554 = vadd.f32 0.0, %v2553
    %v2555 = vpop.f32.mrb[0].mxu0
    %v2556 = vpop.f32.mrb[0].mxu0
    %v2557 = vadd.f32 0.0, %v2556
    %v2558 = vpop.f32.mrb[0].mxu0
    %2559 = vmatprep.mubr.bf16.mxu0 0
    %2560 = vmatmul.mubr.bf16.gmra.mrb[0].mxu0 %v2418
    %v2561 = vpop.f32.mrb[0].mxu0
    %v2562 = vadd.f32 0.0, %v2561
    %v2563 = vpop.f32.mrb[0].mxu0
    %v2564 = vpop.f32.mrb[0].mxu0
    %v2565 = vadd.f32 0.0, %v2564
    %v2566 = vpop.f32.mrb[0].mxu0
    %2567 = vmatprep.mubr.bf16.mxu0 0
    %2568 = vmatmul.mubr.bf16.gmra.mrb[0].mxu0 %v2419
    %v2569 = vpop.f32.mrb[0].mxu0
    %v2570 = vadd.f32 0.0, %v2569
    %v2571 = vpop.f32.mrb[0].mxu0
    %v2572 = vpop.f32.mrb[0].mxu0
    %v2573 = vadd.f32 0.0, %v2572
    %v2574 = vpop.f32.mrb[0].mxu0
    %2575 = vmatprep.mubr.bf16.mxu0 0
    %2576 = vmatmul.mubr.bf16.gmra.mrb[0].mxu0 %v2420
    %v2577 = vpop.f32.mrb[0].mxu0
    %v2578 = vadd.f32 0.0, %v2577
    %v2579 = vpop.f32.mrb[0].mxu0
    %v2580 = vpop.f32.mrb[0].mxu0
    %v2581 = vadd.f32 0.0, %v2580
    %v2582 = vpop.f32.mrb[0].mxu0
    %2583 = vmatprep.mubr.bf16.mxu0 0
    %2584 = vmatmul.mubr.bf16.gmra.mrb[0].mxu0 %v2421
    %v2585 = vpop.f32.mrb[0].mxu0
    %v2586 = vadd.f32 0.0, %v2585
    %v2587 = vpop.f32.mrb[0].mxu0
    %v2588 = vpop.f32.mrb[0].mxu0
    %v2589 = vadd.f32 0.0, %v2588
    %v2590 = vpop.f32.mrb[0].mxu0
    %2591 = vmatprep.mubr.bf16.mxu0 0
    %2592 = vmatmul.mubr.bf16.gmra.mrb[0].mxu0 %v2422
    %v2593 = vpop.f32.mrb[0].mxu0
    %v2594 = vadd.f32 0.0, %v2593
    %v2595 = vpop.f32.mrb[0].mxu0
    %v2596 = vpop.f32.mrb[0].mxu0
    %v2597 = vadd.f32 0.0, %v2596
    %v2598 = vpop.f32.mrb[0].mxu0
    %2599 = vmatprep.mubr.bf16.mxu0 0
    %2600 = vmatmul.mubr.bf16.gmra.mrb[0].mxu0 %v2423
    %v2601 = vpop.f32.mrb[0].mxu0
    %v2602 = vadd.f32 0.0, %v2601
    %v2603 = vpop.f32.mrb[0].mxu0
    %v2604 = vpop.f32.mrb[0].mxu0
    %v2605 = vadd.f32 0.0, %v2604
    %v2606 = vpop.f32.mrb[0].mxu0
    %2607 = vmatprep.mubr.bf16.mxu0 0
    %2608 = vmatmul.mubr.bf16.gmra.mrb[0].mxu0 %v2424
    %v2609 = vpop.f32.mrb[0].mxu0
    %v2610 = vadd.f32 0.0, %v2609
    %v2611 = vpop.f32.mrb[0].mxu0
    %v2612 = vpop.f32.mrb[0].mxu0
    %v2613 = vadd.f32 0.0, %v2612
    %v2614 = vpop.f32.mrb[0].mxu0
    %2615 = vmatprep.mubr.bf16.mxu0 0
    %2616 = vmatmul.mubr.bf16.gmra.mrb[0].mxu0 %v2425
    %v2617 = vpop.f32.mrb[0].mxu0
    %v2618 = vadd.f32 0.0, %v2617
    %v2619 = vpop.f32.mrb[0].mxu0
    %v2620 = vpop.f32.mrb[0].mxu0
    %v2621 = vadd.f32 0.0, %v2620
    %v2622 = vpop.f32.mrb[0].mxu0
    %2623 = vmatprep.mubr.bf16.mxu0 0
    %2624 = vmatmul.mubr.bf16.gmra.mrb[0].mxu0 %v2426
    %v2625 = vpop.f32.mrb[0].mxu0
    %v2626 = vadd.f32 0.0, %v2625
    %v2627 = vpop.f32.mrb[0].mxu0
    %v2628 = vpop.f32.mrb[0].mxu0
    %v2629 = vadd.f32 0.0, %v2628
    %v2630 = vpop.f32.mrb[0].mxu0
    %2631 = vmatprep.mubr.bf16.mxu0 0
    %2632 = vmatmul.mubr.bf16.gmra.mrb[0].mxu0 %v2427
    %v2633 = vpop.f32.mrb[0].mxu0
    %v2634 = vadd.f32 0.0, %v2633
    %v2635 = vpop.f32.mrb[0].mxu0
    %v2636 = vpop.f32.mrb[0].mxu0
    %v2637 = vadd.f32 0.0, %v2636
    %v2638 = vpop.f32.mrb[0].mxu0
    %2639 = vmatprep.mubr.bf16.mxu0 0
    %2640 = vmatmul.mubr.bf16.gmra.mrb[0].mxu0 %v2428
    %v2641 = vpop.f32.mrb[0].mxu0
    %v2642 = vadd.f32 0.0, %v2641
    %v2643 = vpop.f32.mrb[0].mxu0
    %v2644 = vpop.f32.mrb[0].mxu0
    %v2645 = vadd.f32 0.0, %v2644
    %v2646 = vpop.f32.mrb[0].mxu0
    %2647 = vmatprep.mubr.bf16.mxu0 0
    %2648 = vmatmul.mubr.bf16.gmra.mrb[0].mxu0 %v2429
    %v2649 = vpop.f32.mrb[0].mxu0
    %v2650 = vadd.f32 0.0, %v2649
    %v2651 = vpop.f32.mrb[0].mxu0
    %v2652 = vpop.f32.mrb[0].mxu0
    %v2653 = vadd.f32 0.0, %v2652
    %v2654 = vpop.f32.mrb[0].mxu0
    %2655 = vdwg.mxu0
    %v2656 = vadd.f32 %v2350, %v2530
    %v2657 = vadd.f32 %v2351, %v2533
    %v2658 = vadd.f32 %v2352, %v2538
    %v2659 = vadd.f32 %v2353, %v2541
    %v2660 = vadd.f32 %v2354, %v2546
    %v2661 = vadd.f32 %v2355, %v2549
    %v2662 = vadd.f32 %v2356, %v2554
    %v2663 = vadd.f32 %v2357, %v2557
    %v2664 = vadd.f32 %v2358, %v2562
    %v2665 = vadd.f32 %v2359, %v2565
    %v2666 = vadd.f32 %v2360, %v2570
    %v2667 = vadd.f32 %v2361, %v2573
    %v2668 = vadd.f32 %v2362, %v2578
    %v2669 = vadd.f32 %v2363, %v2581
    %v2670 = vadd.f32 %v2364, %v2586
    %v2671 = vadd.f32 %v2365, %v2589
    %v2672 = vadd.f32 %v2366, %v2594
    %v2673 = vadd.f32 %v2367, %v2597
    %v2674 = vadd.f32 %v2368, %v2602
    %v2675 = vadd.f32 %v2369, %v2605
    %v2676 = vadd.f32 %v2370, %v2610
    %v2677 = vadd.f32 %v2371, %v2613
    %v2678 = vadd.f32 %v2372, %v2618
    %v2679 = vadd.f32 %v2373, %v2621
    %v2680 = vadd.f32 %v2374, %v2626
    %v2681 = vadd.f32 %v2375, %v2629
    %v2682 = vadd.f32 %v2376, %v2634
    %v2683 = vadd.f32 %v2377, %v2637
    %v2684 = vadd.f32 %v2378, %v2642
    %v2685 = vadd.f32 %v2379, %v2645
    %v2686 = vadd.f32 %v2380, %v2650
    %v2687 = vadd.f32 %v2381, %v2653
    %v2688 = vld [vmem:[#allocation3 + $0x4] sm:$0xff]
    %v2689 = vld [vmem:[#allocation3 + $0xc] sm:$0xff]
    %v2690 = vld [vmem:[#allocation3 + $0x14] sm:$0xff]
    %v2691 = vld [vmem:[#allocation3 + $0x1c] sm:$0xff]
    %v2692 = vld [vmem:[#allocation3 + $0x24] sm:$0xff]
    %v2693 = vld [vmem:[#allocation3 + $0x2c] sm:$0xff]
    %v2694 = vld [vmem:[#allocation3 + $0x34] sm:$0xff]
    %v2695 = vld [vmem:[#allocation3 + $0x3c] sm:$0xff]
    %v2696 = vld [vmem:[#allocation3 + $0x44] sm:$0xff]
    %v2697 = vld [vmem:[#allocation3 + $0x4c] sm:$0xff]
    %v2698 = vld [vmem:[#allocation3 + $0x54] sm:$0xff]
    %v2699 = vld [vmem:[#allocation3 + $0x5c] sm:$0xff]
    %v2700 = vld [vmem:[#allocation3 + $0x64] sm:$0xff]
    %v2701 = vld [vmem:[#allocation3 + $0x6c] sm:$0xff]
    %v2702 = vld [vmem:[#allocation3 + $0x74] sm:$0xff]
    %v2703 = vld [vmem:[#allocation3 + $0x7c] sm:$0xff]
    %v2704 = vld [vmem:[#allocation3 + $0x84] sm:$0xff]
    %v2705 = vld [vmem:[#allocation3 + $0x8c] sm:$0xff]
    %v2706 = vld [vmem:[#allocation3 + $0x94] sm:$0xff]
    %v2707 = vld [vmem:[#allocation3 + $0x9c] sm:$0xff]
    %v2708 = vld [vmem:[#allocation3 + $0xa4] sm:$0xff]
    %v2709 = vld [vmem:[#allocation3 + $0xac] sm:$0xff]
    %v2710 = vld [vmem:[#allocation3 + $0xb4] sm:$0xff]
    %v2711 = vld [vmem:[#allocation3 + $0xbc] sm:$0xff]
    %v2712 = vld [vmem:[#allocation3 + $0xc4] sm:$0xff]
    %v2713 = vld [vmem:[#allocation3 + $0xcc] sm:$0xff]
    %v2714 = vld [vmem:[#allocation3 + $0xd4] sm:$0xff]
    %v2715 = vld [vmem:[#allocation3 + $0xdc] sm:$0xff]
    %v2716 = vld [vmem:[#allocation3 + $0xe4] sm:$0xff]
    %v2717 = vld [vmem:[#allocation3 + $0xec] sm:$0xff]
    %v2718 = vld [vmem:[#allocation3 + $0xf4] sm:$0xff]
    %v2719 = vld [vmem:[#allocation3 + $0xfc] sm:$0xff]
    %v2720 = vpack.c.bf16 %v2689, %v2688
    %v2721 = vpack.c.bf16 %v2691, %v2690
    %v2722 = vpack.c.bf16 %v2693, %v2692
    %v2723 = vpack.c.bf16 %v2695, %v2694
    %v2724 = vpack.c.bf16 %v2697, %v2696
    %v2725 = vpack.c.bf16 %v2699, %v2698
    %v2726 = vpack.c.bf16 %v2701, %v2700
    %v2727 = vpack.c.bf16 %v2703, %v2702
    %v2728 = vpack.c.bf16 %v2705, %v2704
    %v2729 = vpack.c.bf16 %v2707, %v2706
    %v2730 = vpack.c.bf16 %v2709, %v2708
    %v2731 = vpack.c.bf16 %v2711, %v2710
    %v2732 = vpack.c.bf16 %v2713, %v2712
    %v2733 = vpack.c.bf16 %v2715, %v2714
    %v2734 = vpack.c.bf16 %v2717, %v2716
    %v2735 = vpack.c.bf16 %v2719, %v2718
    %s2736 = scalar_lea.vmem [#allocation7], 256
    %v2737 = vld [vmem:[%s2736] sm:$0xf]
    %v2738 = vld [vmem:[%s2736 + $0x4] sm:$0xf]
    %v2739 = vld [vmem:[%s2736 + $0x8] sm:$0xf]
    %v2740 = vld [vmem:[%s2736 + $0xc] sm:$0xf]
    %v2741 = vld [vmem:[%s2736 + $0x10] sm:$0xf]
    %v2742 = vld [vmem:[%s2736 + $0x14] sm:$0xf]
    %v2743 = vld [vmem:[%s2736 + $0x18] sm:$0xf]
    %v2744 = vld [vmem:[%s2736 + $0x1c] sm:$0xf]
    %v2745 = vld [vmem:[%s2736 + $0x20] sm:$0xf]
    %v2746 = vld [vmem:[%s2736 + $0x24] sm:$0xf]
    %v2747 = vld [vmem:[%s2736 + $0x28] sm:$0xf]
    %v2748 = vld [vmem:[%s2736 + $0x2c] sm:$0xf]
    %v2749 = vld [vmem:[%s2736 + $0x30] sm:$0xf]
    %v2750 = vld [vmem:[%s2736 + $0x34] sm:$0xf]
    %v2751 = vld [vmem:[%s2736 + $0x38] sm:$0xf]
    %v2752 = vld [vmem:[%s2736 + $0x3c] sm:$0xf]
    %v2769 = vunpack.c.l.b16 %v2737
    %v2770 = vunpack.c.l.b16 %v2738
    %v2771 = vunpack.c.l.b16 %v2739
    %v2772 = vunpack.c.l.b16 %v2740
    %v2773 = vunpack.c.l.b16 %v2741
    %v2774 = vunpack.c.l.b16 %v2742
    %v2775 = vunpack.c.l.b16 %v2743
    %v2776 = vunpack.c.l.b16 %v2744
    %v2777 = vunpack.c.l.b16 %v2745
    %v2778 = vunpack.c.l.b16 %v2746
    %v2779 = vunpack.c.l.b16 %v2747
    %v2780 = vunpack.c.l.b16 %v2748
    %v2781 = vunpack.c.l.b16 %v2749
    %v2782 = vunpack.c.l.b16 %v2750
    %v2783 = vunpack.c.l.b16 %v2751
    %v2784 = vunpack.c.l.b16 %v2752
    %v2785 = vpack.c.b16 %v2770, %v2769
    %v2786 = vpack.c.b16 %v2772, %v2771
    %v2787 = vpack.c.b16 %v2774, %v2773
    %v2788 = vpack.c.b16 %v2776, %v2775
    %v2789 = vpack.c.b16 %v2778, %v2777
    %v2790 = vpack.c.b16 %v2780, %v2779
    %v2791 = vpack.c.b16 %v2782, %v2781
    %v2792 = vpack.c.b16 %v2784, %v2783
    %2801 = vmatprep.subr.bf16.mxu0 0
    %2802 = vmatpush1.bf16.msra.mxu0 %v2785
    %2803 = vmatprep.subr.bf16.mxu0 0
    %2804 = vmatpush1.bf16.msra.mxu0 %v2786
    %2805 = vmatprep.subr.bf16.mxu0 0
    %2806 = vmatpush1.bf16.msra.mxu0 %v2787
    %2807 = vmatprep.subr.bf16.mxu0 0
    %2808 = vmatpush1.bf16.msra.mxu0 %v2788
    %2809 = vmatprep.subr.bf16.mxu0 0
    %2810 = vmatpush1.bf16.msra.mxu0 %v2789
    %2811 = vmatprep.subr.bf16.mxu0 0
    %2812 = vmatpush1.bf16.msra.mxu0 %v2790
    %2813 = vmatprep.subr.bf16.mxu0 0
    %2814 = vmatpush1.bf16.msra.mxu0 %v2791
    %2815 = vmatprep.subr.bf16.mxu0 0
    %2816 = vmatpush1.bf16.msra.mxu0 %v2792
    %2817 = vmatprep.subr.bf16.mxu0 0
    %2818 = vmatpush1.bf16.msra.mxu0 0
    %2819 = vmatprep.subr.bf16.mxu0 0
    %2820 = vmatpush1.bf16.msra.mxu0 0
    %2821 = vmatprep.subr.bf16.mxu0 0
    %2822 = vmatpush1.bf16.msra.mxu0 0
    %2823 = vmatprep.subr.bf16.mxu0 0
    %2824 = vmatpush1.bf16.msra.mxu0 0
    %2825 = vmatprep.subr.bf16.mxu0 0
    %2826 = vmatpush1.bf16.msra.mxu0 0
    %2827 = vmatprep.subr.bf16.mxu0 0
    %2828 = vmatpush1.bf16.msra.mxu0 0
    %2829 = vmatprep.subr.bf16.mxu0 0
    %2830 = vmatpush1.bf16.msra.mxu0 0
    %2831 = vmatprep.subr.bf16.mxu0 0
    %2832 = vmatpush1.bf16.msra.mxu0 0
    %2833 = vmatprep.mubr.bf16.mxu0 0
    %2834 = vmatmul.mubr.bf16.gmra.mrb[0].mxu0 %v2720
    %v2835 = vpop.f32.mrb[0].mxu0
    %v2836 = vadd.f32 0.0, %v2835
    %v2837 = vpop.f32.mrb[0].mxu0
    %v2838 = vpop.f32.mrb[0].mxu0
    %v2839 = vadd.f32 0.0, %v2838
    %v2840 = vpop.f32.mrb[0].mxu0
    %2841 = vmatprep.mubr.bf16.mxu0 0
    %2842 = vmatmul.mubr.bf16.gmra.mrb[0].mxu0 %v2721
    %v2843 = vpop.f32.mrb[0].mxu0
    %v2844 = vadd.f32 0.0, %v2843
    %v2845 = vpop.f32.mrb[0].mxu0
    %v2846 = vpop.f32.mrb[0].mxu0
    %v2847 = vadd.f32 0.0, %v2846
    %v2848 = vpop.f32.mrb[0].mxu0
    %2849 = vmatprep.mubr.bf16.mxu0 0
    %2850 = vmatmul.mubr.bf16.gmra.mrb[0].mxu0 %v2722
    %v2851 = vpop.f32.mrb[0].mxu0
    %v2852 = vadd.f32 0.0, %v2851
    %v2853 = vpop.f32.mrb[0].mxu0
    %v2854 = vpop.f32.mrb[0].mxu0
    %v2855 = vadd.f32 0.0, %v2854
    %v2856 = vpop.f32.mrb[0].mxu0
    %2857 = vmatprep.mubr.bf16.mxu0 0
    %2858 = vmatmul.mubr.bf16.gmra.mrb[0].mxu0 %v2723
    %v2859 = vpop.f32.mrb[0].mxu0
    %v2860 = vadd.f32 0.0, %v2859
    %v2861 = vpop.f32.mrb[0].mxu0
    %v2862 = vpop.f32.mrb[0].mxu0
    %v2863 = vadd.f32 0.0, %v2862
    %v2864 = vpop.f32.mrb[0].mxu0
    %2865 = vmatprep.mubr.bf16.mxu0 0
    %2866 = vmatmul.mubr.bf16.gmra.mrb[0].mxu0 %v2724
    %v2867 = vpop.f32.mrb[0].mxu0
    %v2868 = vadd.f32 0.0, %v2867
    %v2869 = vpop.f32.mrb[0].mxu0
    %v2870 = vpop.f32.mrb[0].mxu0
    %v2871 = vadd.f32 0.0, %v2870
    %v2872 = vpop.f32.mrb[0].mxu0
    %2873 = vmatprep.mubr.bf16.mxu0 0
    %2874 = vmatmul.mubr.bf16.gmra.mrb[0].mxu0 %v2725
    %v2875 = vpop.f32.mrb[0].mxu0
    %v2876 = vadd.f32 0.0, %v2875
    %v2877 = vpop.f32.mrb[0].mxu0
    %v2878 = vpop.f32.mrb[0].mxu0
    %v2879 = vadd.f32 0.0, %v2878
    %v2880 = vpop.f32.mrb[0].mxu0
    %2881 = vmatprep.mubr.bf16.mxu0 0
    %2882 = vmatmul.mubr.bf16.gmra.mrb[0].mxu0 %v2726
    %v2883 = vpop.f32.mrb[0].mxu0
    %v2884 = vadd.f32 0.0, %v2883
    %v2885 = vpop.f32.mrb[0].mxu0
    %v2886 = vpop.f32.mrb[0].mxu0
    %v2887 = vadd.f32 0.0, %v2886
    %v2888 = vpop.f32.mrb[0].mxu0
    %2889 = vmatprep.mubr.bf16.mxu0 0
    %2890 = vmatmul.mubr.bf16.gmra.mrb[0].mxu0 %v2727
    %v2891 = vpop.f32.mrb[0].mxu0
    %v2892 = vadd.f32 0.0, %v2891
    %v2893 = vpop.f32.mrb[0].mxu0
    %v2894 = vpop.f32.mrb[0].mxu0
    %v2895 = vadd.f32 0.0, %v2894
    %v2896 = vpop.f32.mrb[0].mxu0
    %2897 = vmatprep.mubr.bf16.mxu0 0
    %2898 = vmatmul.mubr.bf16.gmra.mrb[0].mxu0 %v2728
    %v2899 = vpop.f32.mrb[0].mxu0
    %v2900 = vadd.f32 0.0, %v2899
    %v2901 = vpop.f32.mrb[0].mxu0
    %v2902 = vpop.f32.mrb[0].mxu0
    %v2903 = vadd.f32 0.0, %v2902
    %v2904 = vpop.f32.mrb[0].mxu0
    %2905 = vmatprep.mubr.bf16.mxu0 0
    %2906 = vmatmul.mubr.bf16.gmra.mrb[0].mxu0 %v2729
    %v2907 = vpop.f32.mrb[0].mxu0
    %v2908 = vadd.f32 0.0, %v2907
    %v2909 = vpop.f32.mrb[0].mxu0
    %v2910 = vpop.f32.mrb[0].mxu0
    %v2911 = vadd.f32 0.0, %v2910
    %v2912 = vpop.f32.mrb[0].mxu0
    %2913 = vmatprep.mubr.bf16.mxu0 0
    %2914 = vmatmul.mubr.bf16.gmra.mrb[0].mxu0 %v2730
    %v2915 = vpop.f32.mrb[0].mxu0
    %v2916 = vadd.f32 0.0, %v2915
    %v2917 = vpop.f32.mrb[0].mxu0
    %v2918 = vpop.f32.mrb[0].mxu0
    %v2919 = vadd.f32 0.0, %v2918
    %v2920 = vpop.f32.mrb[0].mxu0
    %2921 = vmatprep.mubr.bf16.mxu0 0
    %2922 = vmatmul.mubr.bf16.gmra.mrb[0].mxu0 %v2731
    %v2923 = vpop.f32.mrb[0].mxu0
    %v2924 = vadd.f32 0.0, %v2923
    %v2925 = vpop.f32.mrb[0].mxu0
    %v2926 = vpop.f32.mrb[0].mxu0
    %v2927 = vadd.f32 0.0, %v2926
    %v2928 = vpop.f32.mrb[0].mxu0
    %2929 = vmatprep.mubr.bf16.mxu0 0
    %2930 = vmatmul.mubr.bf16.gmra.mrb[0].mxu0 %v2732
    %v2931 = vpop.f32.mrb[0].mxu0
    %v2932 = vadd.f32 0.0, %v2931
    %v2933 = vpop.f32.mrb[0].mxu0
    %v2934 = vpop.f32.mrb[0].mxu0
    %v2935 = vadd.f32 0.0, %v2934
    %v2936 = vpop.f32.mrb[0].mxu0
    %2937 = vmatprep.mubr.bf16.mxu0 0
    %2938 = vmatmul.mubr.bf16.gmra.mrb[0].mxu0 %v2733
    %v2939 = vpop.f32.mrb[0].mxu0
    %v2940 = vadd.f32 0.0, %v2939
    %v2941 = vpop.f32.mrb[0].mxu0
    %v2942 = vpop.f32.mrb[0].mxu0
    %v2943 = vadd.f32 0.0, %v2942
    %v2944 = vpop.f32.mrb[0].mxu0
    %2945 = vmatprep.mubr.bf16.mxu0 0
    %2946 = vmatmul.mubr.bf16.gmra.mrb[0].mxu0 %v2734
    %v2947 = vpop.f32.mrb[0].mxu0
    %v2948 = vadd.f32 0.0, %v2947
    %v2949 = vpop.f32.mrb[0].mxu0
    %v2950 = vpop.f32.mrb[0].mxu0
    %v2951 = vadd.f32 0.0, %v2950
    %v2952 = vpop.f32.mrb[0].mxu0
    %2953 = vmatprep.mubr.bf16.mxu0 0
    %2954 = vmatmul.mubr.bf16.gmra.mrb[0].mxu0 %v2735
    %v2955 = vpop.f32.mrb[0].mxu0
    %v2956 = vadd.f32 0.0, %v2955
    %v2957 = vpop.f32.mrb[0].mxu0
    %v2958 = vpop.f32.mrb[0].mxu0
    %v2959 = vadd.f32 0.0, %v2958
    %v2960 = vpop.f32.mrb[0].mxu0
    %2961 = vdwg.mxu0
    %v2962 = vadd.f32 %v2656, %v2836
    %v2963 = vadd.f32 %v2657, %v2839
    %v2964 = vadd.f32 %v2658, %v2844
    %v2965 = vadd.f32 %v2659, %v2847
    %v2966 = vadd.f32 %v2660, %v2852
    %v2967 = vadd.f32 %v2661, %v2855
    %v2968 = vadd.f32 %v2662, %v2860
    %v2969 = vadd.f32 %v2663, %v2863
    %v2970 = vadd.f32 %v2664, %v2868
    %v2971 = vadd.f32 %v2665, %v2871
    %v2972 = vadd.f32 %v2666, %v2876
    %v2973 = vadd.f32 %v2667, %v2879
    %v2974 = vadd.f32 %v2668, %v2884
    %v2975 = vadd.f32 %v2669, %v2887
    %v2976 = vadd.f32 %v2670, %v2892
    %v2977 = vadd.f32 %v2671, %v2895
    %v2978 = vadd.f32 %v2672, %v2900
    %v2979 = vadd.f32 %v2673, %v2903
    %v2980 = vadd.f32 %v2674, %v2908
    %v2981 = vadd.f32 %v2675, %v2911
    %v2982 = vadd.f32 %v2676, %v2916
    %v2983 = vadd.f32 %v2677, %v2919
    %v2984 = vadd.f32 %v2678, %v2924
    %v2985 = vadd.f32 %v2679, %v2927
    %v2986 = vadd.f32 %v2680, %v2932
    %v2987 = vadd.f32 %v2681, %v2935
    %v2988 = vadd.f32 %v2682, %v2940
    %v2989 = vadd.f32 %v2683, %v2943
    %v2990 = vadd.f32 %v2684, %v2948
    %v2991 = vadd.f32 %v2685, %v2951
    %v2992 = vadd.f32 %v2686, %v2956
    %v2993 = vadd.f32 %v2687, %v2959
    %v2994 = vld [vmem:[%s5] sm:$0x1]
    %v2996 = vlaneseq
    %v2997 = vshrl.u32 %v2996, 7
    %v2998 = vsub.s32 0, %v2997
    %v2999 = vrot.slane %v2994, %v2998
    %v3001 = vadd.f32 %v2962, %v2999
    %v3002 = vadd.f32 %v2963, %v2999
    %v3003 = vadd.f32 %v2964, %v2999
    %v3004 = vadd.f32 %v2965, %v2999
    %v3005 = vadd.f32 %v2966, %v2999
    %v3006 = vadd.f32 %v2967, %v2999
    %v3007 = vadd.f32 %v2968, %v2999
    %v3008 = vadd.f32 %v2969, %v2999
    %v3009 = vadd.f32 %v2970, %v2999
    %v3010 = vadd.f32 %v2971, %v2999
    %v3011 = vadd.f32 %v2972, %v2999
    %v3012 = vadd.f32 %v2973, %v2999
    %v3013 = vadd.f32 %v2974, %v2999
    %v3014 = vadd.f32 %v2975, %v2999
    %v3015 = vadd.f32 %v2976, %v2999
    %v3016 = vadd.f32 %v2977, %v2999
    %v3017 = vadd.f32 %v2978, %v2999
    %v3018 = vadd.f32 %v2979, %v2999
    %v3019 = vadd.f32 %v2980, %v2999
    %v3020 = vadd.f32 %v2981, %v2999
    %v3021 = vadd.f32 %v2982, %v2999
    %v3022 = vadd.f32 %v2983, %v2999
    %v3023 = vadd.f32 %v2984, %v2999
    %v3024 = vadd.f32 %v2985, %v2999
    %v3025 = vadd.f32 %v2986, %v2999
    %v3026 = vadd.f32 %v2987, %v2999
    %v3027 = vadd.f32 %v2988, %v2999
    %v3028 = vadd.f32 %v2989, %v2999
    %v3029 = vadd.f32 %v2990, %v2999
    %v3030 = vadd.f32 %v2991, %v2999
    %v3031 = vadd.f32 %v2992, %v2999
    %v3032 = vadd.f32 %v2993, %v2999
    %v3033 = vmax.f32 %v3001, 0.0
    %v3034 = vmax.f32 %v3002, 0.0
    %v3035 = vmax.f32 %v3003, 0.0
    %v3036 = vmax.f32 %v3004, 0.0
    %v3037 = vmax.f32 %v3005, 0.0
    %v3038 = vmax.f32 %v3006, 0.0
    %v3039 = vmax.f32 %v3007, 0.0
    %v3040 = vmax.f32 %v3008, 0.0
    %v3041 = vmax.f32 %v3009, 0.0
    %v3042 = vmax.f32 %v3010, 0.0
    %v3043 = vmax.f32 %v3011, 0.0
    %v3044 = vmax.f32 %v3012, 0.0
    %v3045 = vmax.f32 %v3013, 0.0
    %v3046 = vmax.f32 %v3014, 0.0
    %v3047 = vmax.f32 %v3015, 0.0
    %v3048 = vmax.f32 %v3016, 0.0
    %v3049 = vmax.f32 %v3017, 0.0
    %v3050 = vmax.f32 %v3018, 0.0
    %v3051 = vmax.f32 %v3019, 0.0
    %v3052 = vmax.f32 %v3020, 0.0
    %v3053 = vmax.f32 %v3021, 0.0
    %v3054 = vmax.f32 %v3022, 0.0
    %v3055 = vmax.f32 %v3023, 0.0
    %v3056 = vmax.f32 %v3024, 0.0
    %v3057 = vmax.f32 %v3025, 0.0
    %v3058 = vmax.f32 %v3026, 0.0
    %v3059 = vmax.f32 %v3027, 0.0
    %v3060 = vmax.f32 %v3028, 0.0
    %v3061 = vmax.f32 %v3029, 0.0
    %v3062 = vmax.f32 %v3030, 0.0
    %v3063 = vmax.f32 %v3031, 0.0
    %v3064 = vmax.f32 %v3032, 0.0
    %3065 = vst [vmem:[#allocation2] sm:$0xff] %v3033
    %3066 = vst [vmem:[#allocation2 + $0x8] sm:$0xff] %v3034
    %3067 = vst [vmem:[#allocation2 + $0x10] sm:$0xff] %v3035
    %3068 = vst [vmem:[#allocation2 + $0x18] sm:$0xff] %v3036
    %3069 = vst [vmem:[#allocation2 + $0x20] sm:$0xff] %v3037
    %3070 = vst [vmem:[#allocation2 + $0x28] sm:$0xff] %v3038
    %3071 = vst [vmem:[#allocation2 + $0x30] sm:$0xff] %v3039
    %3072 = vst [vmem:[#allocation2 + $0x38] sm:$0xff] %v3040
    %3073 = vst [vmem:[#allocation2 + $0x40] sm:$0xff] %v3041
    %3074 = vst [vmem:[#allocation2 + $0x48] sm:$0xff] %v3042
    %3075 = vst [vmem:[#allocation2 + $0x50] sm:$0xff] %v3043
    %3076 = vst [vmem:[#allocation2 + $0x58] sm:$0xff] %v3044
    %3077 = vst [vmem:[#allocation2 + $0x60] sm:$0xff] %v3045
    %3078 = vst [vmem:[#allocation2 + $0x68] sm:$0xff] %v3046
    %3079 = vst [vmem:[#allocation2 + $0x70] sm:$0xff] %v3047
    %3080 = vst [vmem:[#allocation2 + $0x78] sm:$0xff] %v3048
    %3081 = vst [vmem:[#allocation2 + $0x80] sm:$0xff] %v3049
    %3082 = vst [vmem:[#allocation2 + $0x88] sm:$0xff] %v3050
    %3083 = vst [vmem:[#allocation2 + $0x90] sm:$0xff] %v3051
    %3084 = vst [vmem:[#allocation2 + $0x98] sm:$0xff] %v3052
    %3085 = vst [vmem:[#allocation2 + $0xa0] sm:$0xff] %v3053
    %3086 = vst [vmem:[#allocation2 + $0xa8] sm:$0xff] %v3054
    %3087 = vst [vmem:[#allocation2 + $0xb0] sm:$0xff] %v3055
    %3088 = vst [vmem:[#allocation2 + $0xb8] sm:$0xff] %v3056
    %3089 = vst [vmem:[#allocation2 + $0xc0] sm:$0xff] %v3057
    %3090 = vst [vmem:[#allocation2 + $0xc8] sm:$0xff] %v3058
    %3091 = vst [vmem:[#allocation2 + $0xd0] sm:$0xff] %v3059
    %3092 = vst [vmem:[#allocation2 + $0xd8] sm:$0xff] %v3060
    %3093 = vst [vmem:[#allocation2 + $0xe0] sm:$0xff] %v3061
    %3094 = vst [vmem:[#allocation2 + $0xe8] sm:$0xff] %v3062
    %3095 = vst [vmem:[#allocation2 + $0xf0] sm:$0xff] %v3063
    %3096 = vst [vmem:[#allocation2 + $0xf8] sm:$0xff] %v3064
    %v3097 = vld [vmem:[#allocation2] sm:$0xff]
    %v3098 = vld [vmem:[#allocation2 + $0x8] sm:$0xff]
    %v3099 = vld [vmem:[#allocation2 + $0x10] sm:$0xff]
    %v3100 = vld [vmem:[#allocation2 + $0x18] sm:$0xff]
    %v3101 = vld [vmem:[#allocation2 + $0x20] sm:$0xff]
    %v3102 = vld [vmem:[#allocation2 + $0x28] sm:$0xff]
    %v3103 = vld [vmem:[#allocation2 + $0x30] sm:$0xff]
    %v3104 = vld [vmem:[#allocation2 + $0x38] sm:$0xff]
    %v3105 = vld [vmem:[#allocation2 + $0x40] sm:$0xff]
    %v3106 = vld [vmem:[#allocation2 + $0x48] sm:$0xff]
    %v3107 = vld [vmem:[#allocation2 + $0x50] sm:$0xff]
    %v3108 = vld [vmem:[#allocation2 + $0x58] sm:$0xff]
    %v3109 = vld [vmem:[#allocation2 + $0x60] sm:$0xff]
    %v3110 = vld [vmem:[#allocation2 + $0x68] sm:$0xff]
    %v3111 = vld [vmem:[#allocation2 + $0x70] sm:$0xff]
    %v3112 = vld [vmem:[#allocation2 + $0x78] sm:$0xff]
    %v3113 = vld [vmem:[#allocation2 + $0x80] sm:$0xff]
    %v3114 = vld [vmem:[#allocation2 + $0x88] sm:$0xff]
    %v3115 = vld [vmem:[#allocation2 + $0x90] sm:$0xff]
    %v3116 = vld [vmem:[#allocation2 + $0x98] sm:$0xff]
    %v3117 = vld [vmem:[#allocation2 + $0xa0] sm:$0xff]
    %v3118 = vld [vmem:[#allocation2 + $0xa8] sm:$0xff]
    %v3119 = vld [vmem:[#allocation2 + $0xb0] sm:$0xff]
    %v3120 = vld [vmem:[#allocation2 + $0xb8] sm:$0xff]
    %v3121 = vld [vmem:[#allocation2 + $0xc0] sm:$0xff]
    %v3122 = vld [vmem:[#allocation2 + $0xc8] sm:$0xff]
    %v3123 = vld [vmem:[#allocation2 + $0xd0] sm:$0xff]
    %v3124 = vld [vmem:[#allocation2 + $0xd8] sm:$0xff]
    %v3125 = vld [vmem:[#allocation2 + $0xe0] sm:$0xff]
    %v3126 = vld [vmem:[#allocation2 + $0xe8] sm:$0xff]
    %v3127 = vld [vmem:[#allocation2 + $0xf0] sm:$0xff]
    %v3128 = vld [vmem:[#allocation2 + $0xf8] sm:$0xff]
    %v3129 = vpack.c.bf16 %v3098, %v3097
    %v3130 = vpack.c.bf16 %v3100, %v3099
    %v3131 = vpack.c.bf16 %v3102, %v3101
    %v3132 = vpack.c.bf16 %v3104, %v3103
    %v3133 = vpack.c.bf16 %v3106, %v3105
    %v3134 = vpack.c.bf16 %v3108, %v3107
    %v3135 = vpack.c.bf16 %v3110, %v3109
    %v3136 = vpack.c.bf16 %v3112, %v3111
    %v3137 = vpack.c.bf16 %v3114, %v3113
    %v3138 = vpack.c.bf16 %v3116, %v3115
    %v3139 = vpack.c.bf16 %v3118, %v3117
    %v3140 = vpack.c.bf16 %v3120, %v3119
    %v3141 = vpack.c.bf16 %v3122, %v3121
    %v3142 = vpack.c.bf16 %v3124, %v3123
    %v3143 = vpack.c.bf16 %v3126, %v3125
    %v3144 = vpack.c.bf16 %v3128, %v3127
    %v3145 = vld [vmem:[#allocation9] sm:$0xf]
    %v3146 = vld [vmem:[#allocation9 + $0x4] sm:$0xf]
    %v3147 = vld [vmem:[#allocation9 + $0x8] sm:$0xf]
    %v3148 = vld [vmem:[#allocation9 + $0xc] sm:$0xf]
    %v3149 = vld [vmem:[#allocation9 + $0x10] sm:$0xf]
    %v3150 = vld [vmem:[#allocation9 + $0x14] sm:$0xf]
    %v3151 = vld [vmem:[#allocation9 + $0x18] sm:$0xf]
    %v3152 = vld [vmem:[#allocation9 + $0x1c] sm:$0xf]
    %v3153 = vld [vmem:[#allocation9 + $0x20] sm:$0xf]
    %v3154 = vld [vmem:[#allocation9 + $0x24] sm:$0xf]
    %v3155 = vld [vmem:[#allocation9 + $0x28] sm:$0xf]
    %v3156 = vld [vmem:[#allocation9 + $0x2c] sm:$0xf]
    %v3157 = vld [vmem:[#allocation9 + $0x30] sm:$0xf]
    %v3158 = vld [vmem:[#allocation9 + $0x34] sm:$0xf]
    %v3159 = vld [vmem:[#allocation9 + $0x38] sm:$0xf]
    %v3160 = vld [vmem:[#allocation9 + $0x3c] sm:$0xf]
    %v3161 = vld [vmem:[#allocation2 + $0x1] sm:$0xff]
    %v3162 = vld [vmem:[#allocation2 + $0x9] sm:$0xff]
    %v3163 = vld [vmem:[#allocation2 + $0x11] sm:$0xff]
    %v3164 = vld [vmem:[#allocation2 + $0x19] sm:$0xff]
    %v3165 = vld [vmem:[#allocation2 + $0x21] sm:$0xff]
    %v3166 = vld [vmem:[#allocation2 + $0x29] sm:$0xff]
    %v3167 = vld [vmem:[#allocation2 + $0x31] sm:$0xff]
    %v3168 = vld [vmem:[#allocation2 + $0x39] sm:$0xff]
    %v3169 = vld [vmem:[#allocation2 + $0x41] sm:$0xff]
    %v3170 = vld [vmem:[#allocation2 + $0x49] sm:$0xff]
    %v3171 = vld [vmem:[#allocation2 + $0x51] sm:$0xff]
    %v3172 = vld [vmem:[#allocation2 + $0x59] sm:$0xff]
    %v3173 = vld [vmem:[#allocation2 + $0x61] sm:$0xff]
    %v3174 = vld [vmem:[#allocation2 + $0x69] sm:$0xff]
    %v3175 = vld [vmem:[#allocation2 + $0x71] sm:$0xff]
    %v3176 = vld [vmem:[#allocation2 + $0x79] sm:$0xff]
    %v3177 = vld [vmem:[#allocation2 + $0x81] sm:$0xff]
    %v3178 = vld [vmem:[#allocation2 + $0x89] sm:$0xff]
    %v3179 = vld [vmem:[#allocation2 + $0x91] sm:$0xff]
    %v3180 = vld [vmem:[#allocation2 + $0x99] sm:$0xff]
    %v3181 = vld [vmem:[#allocation2 + $0xa1] sm:$0xff]
    %v3182 = vld [vmem:[#allocation2 + $0xa9] sm:$0xff]
    %v3183 = vld [vmem:[#allocation2 + $0xb1] sm:$0xff]
    %v3184 = vld [vmem:[#allocation2 + $0xb9] sm:$0xff]
    %v3185 = vld [vmem:[#allocation2 + $0xc1] sm:$0xff]
    %v3186 = vld [vmem:[#allocation2 + $0xc9] sm:$0xff]
    %v3187 = vld [vmem:[#allocation2 + $0xd1] sm:$0xff]
    %v3188 = vld [vmem:[#allocation2 + $0xd9] sm:$0xff]
    %v3189 = vld [vmem:[#allocation2 + $0xe1] sm:$0xff]
    %v3190 = vld [vmem:[#allocation2 + $0xe9] sm:$0xff]
    %v3191 = vld [vmem:[#allocation2 + $0xf1] sm:$0xff]
    %v3192 = vld [vmem:[#allocation2 + $0xf9] sm:$0xff]
    %v3193 = vpack.c.bf16 %v3162, %v3161
    %v3194 = vpack.c.bf16 %v3164, %v3163
    %v3195 = vpack.c.bf16 %v3166, %v3165
    %v3196 = vpack.c.bf16 %v3168, %v3167
    %v3197 = vpack.c.bf16 %v3170, %v3169
    %v3198 = vpack.c.bf16 %v3172, %v3171
    %v3199 = vpack.c.bf16 %v3174, %v3173
    %v3200 = vpack.c.bf16 %v3176, %v3175
    %v3201 = vpack.c.bf16 %v3178, %v3177
    %v3202 = vpack.c.bf16 %v3180, %v3179
    %v3203 = vpack.c.bf16 %v3182, %v3181
    %v3204 = vpack.c.bf16 %v3184, %v3183
    %v3205 = vpack.c.bf16 %v3186, %v3185
    %v3206 = vpack.c.bf16 %v3188, %v3187
    %v3207 = vpack.c.bf16 %v3190, %v3189
    %v3208 = vpack.c.bf16 %v3192, %v3191
    %s3209 = scalar_lea.vmem [#allocation9], 64
    %v3210 = vld [vmem:[%s3209] sm:$0xf]
    %v3211 = vld [vmem:[%s3209 + $0x4] sm:$0xf]
    %v3212 = vld [vmem:[%s3209 + $0x8] sm:$0xf]
    %v3213 = vld [vmem:[%s3209 + $0xc] sm:$0xf]
    %v3214 = vld [vmem:[%s3209 + $0x10] sm:$0xf]
    %v3215 = vld [vmem:[%s3209 + $0x14] sm:$0xf]
    %v3216 = vld [vmem:[%s3209 + $0x18] sm:$0xf]
    %v3217 = vld [vmem:[%s3209 + $0x1c] sm:$0xf]
    %v3218 = vld [vmem:[%s3209 + $0x20] sm:$0xf]
    %v3219 = vld [vmem:[%s3209 + $0x24] sm:$0xf]
    %v3220 = vld [vmem:[%s3209 + $0x28] sm:$0xf]
    %v3221 = vld [vmem:[%s3209 + $0x2c] sm:$0xf]
    %v3222 = vld [vmem:[%s3209 + $0x30] sm:$0xf]
    %v3223 = vld [vmem:[%s3209 + $0x34] sm:$0xf]
    %v3224 = vld [vmem:[%s3209 + $0x38] sm:$0xf]
    %v3225 = vld [vmem:[%s3209 + $0x3c] sm:$0xf]
    %v3242 = vunpack.c.l.b16 %v3210
    %v3243 = vunpack.c.l.b16 %v3211
    %v3244 = vunpack.c.l.b16 %v3212
    %v3245 = vunpack.c.l.b16 %v3213
    %v3246 = vunpack.c.l.b16 %v3214
    %v3247 = vunpack.c.l.b16 %v3215
    %v3248 = vunpack.c.l.b16 %v3216
    %v3249 = vunpack.c.l.b16 %v3217
    %v3250 = vunpack.c.l.b16 %v3218
    %v3251 = vunpack.c.l.b16 %v3219
    %v3252 = vunpack.c.l.b16 %v3220
    %v3253 = vunpack.c.l.b16 %v3221
    %v3254 = vunpack.c.l.b16 %v3222
    %v3255 = vunpack.c.l.b16 %v3223
    %v3256 = vunpack.c.l.b16 %v3224
    %v3257 = vunpack.c.l.b16 %v3225
    %v3258 = vpack.c.b16 %v3243, %v3242
    %v3259 = vpack.c.b16 %v3245, %v3244
    %v3260 = vpack.c.b16 %v3247, %v3246
    %v3261 = vpack.c.b16 %v3249, %v3248
    %v3262 = vpack.c.b16 %v3251, %v3250
    %v3263 = vpack.c.b16 %v3253, %v3252
    %v3264 = vpack.c.b16 %v3255, %v3254
    %v3265 = vpack.c.b16 %v3257, %v3256
    %3274 = vmatprep.subr.bf16.mxu0 0
    %3275 = vmatpush1.bf16.msra.mxu0 %v3258
    %3276 = vmatprep.subr.bf16.mxu0 0
    %3277 = vmatpush1.bf16.msra.mxu0 %v3259
    %3278 = vmatprep.subr.bf16.mxu0 0
    %3279 = vmatpush1.bf16.msra.mxu0 %v3260
    %3280 = vmatprep.subr.bf16.mxu0 0
    %3281 = vmatpush1.bf16.msra.mxu0 %v3261
    %3282 = vmatprep.subr.bf16.mxu0 0
    %3283 = vmatpush1.bf16.msra.mxu0 %v3262
    %3284 = vmatprep.subr.bf16.mxu0 0
    %3285 = vmatpush1.bf16.msra.mxu0 %v3263
    %3286 = vmatprep.subr.bf16.mxu0 0
    %3287 = vmatpush1.bf16.msra.mxu0 %v3264
    %3288 = vmatprep.subr.bf16.mxu0 0
    %3289 = vmatpush1.bf16.msra.mxu0 %v3265
    %3290 = vmatprep.subr.bf16.mxu0 0
    %3291 = vmatpush1.bf16.msra.mxu0 0
    %3292 = vmatprep.subr.bf16.mxu0 0
    %3293 = vmatpush1.bf16.msra.mxu0 0
    %3294 = vmatprep.subr.bf16.mxu0 0
    %3295 = vmatpush1.bf16.msra.mxu0 0
    %3296 = vmatprep.subr.bf16.mxu0 0
    %3297 = vmatpush1.bf16.msra.mxu0 0
    %3298 = vmatprep.subr.bf16.mxu0 0
    %3299 = vmatpush1.bf16.msra.mxu0 0
    %3300 = vmatprep.subr.bf16.mxu0 0
    %3301 = vmatpush1.bf16.msra.mxu0 0
    %3302 = vmatprep.subr.bf16.mxu0 0
    %3303 = vmatpush1.bf16.msra.mxu0 0
    %3304 = vmatprep.subr.bf16.mxu0 0
    %3305 = vmatpush1.bf16.msra.mxu0 0
    %3306 = vmatprep.mubr.bf16.mxu0 0
    %3307 = vmatmul.mubr.bf16.gmra.mrb[0].mxu0 %v3193
    %v3308 = vpop.f32.mrb[0].mxu0
    %v3309 = vadd.f32 0.0, %v3308
    %v3310 = vpop.f32.mrb[0].mxu0
    %v3311 = vpop.f32.mrb[0].mxu0
    %v3312 = vadd.f32 0.0, %v3311
    %v3313 = vpop.f32.mrb[0].mxu0
    %3314 = vmatprep.mubr.bf16.mxu0 0
    %3315 = vmatmul.mubr.bf16.gmra.mrb[0].mxu0 %v3194
    %v3316 = vpop.f32.mrb[0].mxu0
    %v3317 = vadd.f32 0.0, %v3316
    %v3318 = vpop.f32.mrb[0].mxu0
    %v3319 = vpop.f32.mrb[0].mxu0
    %v3320 = vadd.f32 0.0, %v3319
    %v3321 = vpop.f32.mrb[0].mxu0
    %3322 = vmatprep.mubr.bf16.mxu0 0
    %3323 = vmatmul.mubr.bf16.gmra.mrb[0].mxu0 %v3195
    %v3324 = vpop.f32.mrb[0].mxu0
    %v3325 = vadd.f32 0.0, %v3324
    %v3326 = vpop.f32.mrb[0].mxu0
    %v3327 = vpop.f32.mrb[0].mxu0
    %v3328 = vadd.f32 0.0, %v3327
    %v3329 = vpop.f32.mrb[0].mxu0
    %3330 = vmatprep.mubr.bf16.mxu0 0
    %3331 = vmatmul.mubr.bf16.gmra.mrb[0].mxu0 %v3196
    %v3332 = vpop.f32.mrb[0].mxu0
    %v3333 = vadd.f32 0.0, %v3332
    %v3334 = vpop.f32.mrb[0].mxu0
    %v3335 = vpop.f32.mrb[0].mxu0
    %v3336 = vadd.f32 0.0, %v3335
    %v3337 = vpop.f32.mrb[0].mxu0
    %3338 = vmatprep.mubr.bf16.mxu0 0
    %3339 = vmatmul.mubr.bf16.gmra.mrb[0].mxu0 %v3197
    %v3340 = vpop.f32.mrb[0].mxu0
    %v3341 = vadd.f32 0.0, %v3340
    %v3342 = vpop.f32.mrb[0].mxu0
    %v3343 = vpop.f32.mrb[0].mxu0
    %v3344 = vadd.f32 0.0, %v3343
    %v3345 = vpop.f32.mrb[0].mxu0
    %3346 = vmatprep.mubr.bf16.mxu0 0
    %3347 = vmatmul.mubr.bf16.gmra.mrb[0].mxu0 %v3198
    %v3348 = vpop.f32.mrb[0].mxu0
    %v3349 = vadd.f32 0.0, %v3348
    %v3350 = vpop.f32.mrb[0].mxu0
    %v3351 = vpop.f32.mrb[0].mxu0
    %v3352 = vadd.f32 0.0, %v3351
    %v3353 = vpop.f32.mrb[0].mxu0
    %3354 = vmatprep.mubr.bf16.mxu0 0
    %3355 = vmatmul.mubr.bf16.gmra.mrb[0].mxu0 %v3199
    %v3356 = vpop.f32.mrb[0].mxu0
    %v3357 = vadd.f32 0.0, %v3356
    %v3358 = vpop.f32.mrb[0].mxu0
    %v3359 = vpop.f32.mrb[0].mxu0
    %v3360 = vadd.f32 0.0, %v3359
    %v3361 = vpop.f32.mrb[0].mxu0
    %3362 = vmatprep.mubr.bf16.mxu0 0
    %3363 = vmatmul.mubr.bf16.gmra.mrb[0].mxu0 %v3200
    %v3364 = vpop.f32.mrb[0].mxu0
    %v3365 = vadd.f32 0.0, %v3364
    %v3366 = vpop.f32.mrb[0].mxu0
    %v3367 = vpop.f32.mrb[0].mxu0
    %v3368 = vadd.f32 0.0, %v3367
    %v3369 = vpop.f32.mrb[0].mxu0
    %3370 = vmatprep.mubr.bf16.mxu0 0
    %3371 = vmatmul.mubr.bf16.gmra.mrb[0].mxu0 %v3201
    %v3372 = vpop.f32.mrb[0].mxu0
    %v3373 = vadd.f32 0.0, %v3372
    %v3374 = vpop.f32.mrb[0].mxu0
    %v3375 = vpop.f32.mrb[0].mxu0
    %v3376 = vadd.f32 0.0, %v3375
    %v3377 = vpop.f32.mrb[0].mxu0
    %3378 = vmatprep.mubr.bf16.mxu0 0
    %3379 = vmatmul.mubr.bf16.gmra.mrb[0].mxu0 %v3202
    %v3380 = vpop.f32.mrb[0].mxu0
    %v3381 = vadd.f32 0.0, %v3380
    %v3382 = vpop.f32.mrb[0].mxu0
    %v3383 = vpop.f32.mrb[0].mxu0
    %v3384 = vadd.f32 0.0, %v3383
    %v3385 = vpop.f32.mrb[0].mxu0
    %3386 = vmatprep.mubr.bf16.mxu0 0
    %3387 = vmatmul.mubr.bf16.gmra.mrb[0].mxu0 %v3203
    %v3388 = vpop.f32.mrb[0].mxu0
    %v3389 = vadd.f32 0.0, %v3388
    %v3390 = vpop.f32.mrb[0].mxu0
    %v3391 = vpop.f32.mrb[0].mxu0
    %v3392 = vadd.f32 0.0, %v3391
    %v3393 = vpop.f32.mrb[0].mxu0
    %3394 = vmatprep.mubr.bf16.mxu0 0
    %3395 = vmatmul.mubr.bf16.gmra.mrb[0].mxu0 %v3204
    %v3396 = vpop.f32.mrb[0].mxu0
    %v3397 = vadd.f32 0.0, %v3396
    %v3398 = vpop.f32.mrb[0].mxu0
    %v3399 = vpop.f32.mrb[0].mxu0
    %v3400 = vadd.f32 0.0, %v3399
    %v3401 = vpop.f32.mrb[0].mxu0
    %3402 = vmatprep.mubr.bf16.mxu0 0
    %3403 = vmatmul.mubr.bf16.gmra.mrb[0].mxu0 %v3205
    %v3404 = vpop.f32.mrb[0].mxu0
    %v3405 = vadd.f32 0.0, %v3404
    %v3406 = vpop.f32.mrb[0].mxu0
    %v3407 = vpop.f32.mrb[0].mxu0
    %v3408 = vadd.f32 0.0, %v3407
    %v3409 = vpop.f32.mrb[0].mxu0
    %3410 = vmatprep.mubr.bf16.mxu0 0
    %3411 = vmatmul.mubr.bf16.gmra.mrb[0].mxu0 %v3206
    %v3412 = vpop.f32.mrb[0].mxu0
    %v3413 = vadd.f32 0.0, %v3412
    %v3414 = vpop.f32.mrb[0].mxu0
    %v3415 = vpop.f32.mrb[0].mxu0
    %v3416 = vadd.f32 0.0, %v3415
    %v3417 = vpop.f32.mrb[0].mxu0
    %3418 = vmatprep.mubr.bf16.mxu0 0
    %3419 = vmatmul.mubr.bf16.gmra.mrb[0].mxu0 %v3207
    %v3420 = vpop.f32.mrb[0].mxu0
    %v3421 = vadd.f32 0.0, %v3420
    %v3422 = vpop.f32.mrb[0].mxu0
    %v3423 = vpop.f32.mrb[0].mxu0
    %v3424 = vadd.f32 0.0, %v3423
    %v3425 = vpop.f32.mrb[0].mxu0
    %3426 = vmatprep.mubr.bf16.mxu0 0
    %3427 = vmatmul.mubr.bf16.gmra.mrb[0].mxu0 %v3208
    %v3428 = vpop.f32.mrb[0].mxu0
    %v3429 = vadd.f32 0.0, %v3428
    %v3430 = vpop.f32.mrb[0].mxu0
    %v3431 = vpop.f32.mrb[0].mxu0
    %v3432 = vadd.f32 0.0, %v3431
    %v3433 = vpop.f32.mrb[0].mxu0
    %3434 = vdwg.mxu0
    %v3451 = vunpack.c.l.b16 %v3145
    %v3452 = vunpack.c.l.b16 %v3146
    %v3453 = vunpack.c.l.b16 %v3147
    %v3454 = vunpack.c.l.b16 %v3148
    %v3455 = vunpack.c.l.b16 %v3149
    %v3456 = vunpack.c.l.b16 %v3150
    %v3457 = vunpack.c.l.b16 %v3151
    %v3458 = vunpack.c.l.b16 %v3152
    %v3459 = vunpack.c.l.b16 %v3153
    %v3460 = vunpack.c.l.b16 %v3154
    %v3461 = vunpack.c.l.b16 %v3155
    %v3462 = vunpack.c.l.b16 %v3156
    %v3463 = vunpack.c.l.b16 %v3157
    %v3464 = vunpack.c.l.b16 %v3158
    %v3465 = vunpack.c.l.b16 %v3159
    %v3466 = vunpack.c.l.b16 %v3160
    %v3467 = vpack.c.b16 %v3452, %v3451
    %v3468 = vpack.c.b16 %v3454, %v3453
    %v3469 = vpack.c.b16 %v3456, %v3455
    %v3470 = vpack.c.b16 %v3458, %v3457
    %v3471 = vpack.c.b16 %v3460, %v3459
    %v3472 = vpack.c.b16 %v3462, %v3461
    %v3473 = vpack.c.b16 %v3464, %v3463
    %v3474 = vpack.c.b16 %v3466, %v3465
    %3483 = vmatprep.subr.bf16.mxu0 0
    %3484 = vmatpush1.bf16.msra.mxu0 %v3467
    %3485 = vmatprep.subr.bf16.mxu0 0
    %3486 = vmatpush1.bf16.msra.mxu0 %v3468
    %3487 = vmatprep.subr.bf16.mxu0 0
    %3488 = vmatpush1.bf16.msra.mxu0 %v3469
    %3489 = vmatprep.subr.bf16.mxu0 0
    %3490 = vmatpush1.bf16.msra.mxu0 %v3470
    %3491 = vmatprep.subr.bf16.mxu0 0
    %3492 = vmatpush1.bf16.msra.mxu0 %v3471
    %3493 = vmatprep.subr.bf16.mxu0 0
    %3494 = vmatpush1.bf16.msra.mxu0 %v3472
    %3495 = vmatprep.subr.bf16.mxu0 0
    %3496 = vmatpush1.bf16.msra.mxu0 %v3473
    %3497 = vmatprep.subr.bf16.mxu0 0
    %3498 = vmatpush1.bf16.msra.mxu0 %v3474
    %3499 = vmatprep.subr.bf16.mxu0 0
    %3500 = vmatpush1.bf16.msra.mxu0 0
    %3501 = vmatprep.subr.bf16.mxu0 0
    %3502 = vmatpush1.bf16.msra.mxu0 0
    %3503 = vmatprep.subr.bf16.mxu0 0
    %3504 = vmatpush1.bf16.msra.mxu0 0
    %3505 = vmatprep.subr.bf16.mxu0 0
    %3506 = vmatpush1.bf16.msra.mxu0 0
    %3507 = vmatprep.subr.bf16.mxu0 0
    %3508 = vmatpush1.bf16.msra.mxu0 0
    %3509 = vmatprep.subr.bf16.mxu0 0
    %3510 = vmatpush1.bf16.msra.mxu0 0
    %3511 = vmatprep.subr.bf16.mxu0 0
    %3512 = vmatpush1.bf16.msra.mxu0 0
    %3513 = vmatprep.subr.bf16.mxu0 0
    %3514 = vmatpush1.bf16.msra.mxu0 0
    %3515 = vmatprep.mubr.bf16.mxu0 0
    %3516 = vmatmul.mubr.bf16.gmra.mrb[0].mxu0 %v3129
    %v3517 = vpop.f32.mrb[0].mxu0
    %v3518 = vadd.f32 %v3309, %v3517
    %v3519 = vpop.f32.mrb[0].mxu0
    %v3520 = vpop.f32.mrb[0].mxu0
    %v3521 = vadd.f32 %v3312, %v3520
    %v3522 = vpop.f32.mrb[0].mxu0
    %3523 = vmatprep.mubr.bf16.mxu0 0
    %3524 = vmatmul.mubr.bf16.gmra.mrb[0].mxu0 %v3130
    %v3525 = vpop.f32.mrb[0].mxu0
    %v3526 = vadd.f32 %v3317, %v3525
    %v3527 = vpop.f32.mrb[0].mxu0
    %v3528 = vpop.f32.mrb[0].mxu0
    %v3529 = vadd.f32 %v3320, %v3528
    %v3530 = vpop.f32.mrb[0].mxu0
    %3531 = vmatprep.mubr.bf16.mxu0 0
    %3532 = vmatmul.mubr.bf16.gmra.mrb[0].mxu0 %v3131
    %v3533 = vpop.f32.mrb[0].mxu0
    %v3534 = vadd.f32 %v3325, %v3533
    %v3535 = vpop.f32.mrb[0].mxu0
    %v3536 = vpop.f32.mrb[0].mxu0
    %v3537 = vadd.f32 %v3328, %v3536
    %v3538 = vpop.f32.mrb[0].mxu0
    %3539 = vmatprep.mubr.bf16.mxu0 0
    %3540 = vmatmul.mubr.bf16.gmra.mrb[0].mxu0 %v3132
    %v3541 = vpop.f32.mrb[0].mxu0
    %v3542 = vadd.f32 %v3333, %v3541
    %v3543 = vpop.f32.mrb[0].mxu0
    %v3544 = vpop.f32.mrb[0].mxu0
    %v3545 = vadd.f32 %v3336, %v3544
    %v3546 = vpop.f32.mrb[0].mxu0
    %3547 = vmatprep.mubr.bf16.mxu0 0
    %3548 = vmatmul.mubr.bf16.gmra.mrb[0].mxu0 %v3133
    %v3549 = vpop.f32.mrb[0].mxu0
    %v3550 = vadd.f32 %v3341, %v3549
    %v3551 = vpop.f32.mrb[0].mxu0
    %v3552 = vpop.f32.mrb[0].mxu0
    %v3553 = vadd.f32 %v3344, %v3552
    %v3554 = vpop.f32.mrb[0].mxu0
    %3555 = vmatprep.mubr.bf16.mxu0 0
    %3556 = vmatmul.mubr.bf16.gmra.mrb[0].mxu0 %v3134
    %v3557 = vpop.f32.mrb[0].mxu0
    %v3558 = vadd.f32 %v3349, %v3557
    %v3559 = vpop.f32.mrb[0].mxu0
    %v3560 = vpop.f32.mrb[0].mxu0
    %v3561 = vadd.f32 %v3352, %v3560
    %v3562 = vpop.f32.mrb[0].mxu0
    %3563 = vmatprep.mubr.bf16.mxu0 0
    %3564 = vmatmul.mubr.bf16.gmra.mrb[0].mxu0 %v3135
    %v3565 = vpop.f32.mrb[0].mxu0
    %v3566 = vadd.f32 %v3357, %v3565
    %v3567 = vpop.f32.mrb[0].mxu0
    %v3568 = vpop.f32.mrb[0].mxu0
    %v3569 = vadd.f32 %v3360, %v3568
    %v3570 = vpop.f32.mrb[0].mxu0
    %3571 = vmatprep.mubr.bf16.mxu0 0
    %3572 = vmatmul.mubr.bf16.gmra.mrb[0].mxu0 %v3136
    %v3573 = vpop.f32.mrb[0].mxu0
    %v3574 = vadd.f32 %v3365, %v3573
    %v3575 = vpop.f32.mrb[0].mxu0
    %v3576 = vpop.f32.mrb[0].mxu0
    %v3577 = vadd.f32 %v3368, %v3576
    %v3578 = vpop.f32.mrb[0].mxu0
    %3579 = vmatprep.mubr.bf16.mxu0 0
    %3580 = vmatmul.mubr.bf16.gmra.mrb[0].mxu0 %v3137
    %v3581 = vpop.f32.mrb[0].mxu0
    %v3582 = vadd.f32 %v3373, %v3581
    %v3583 = vpop.f32.mrb[0].mxu0
    %v3584 = vpop.f32.mrb[0].mxu0
    %v3585 = vadd.f32 %v3376, %v3584
    %v3586 = vpop.f32.mrb[0].mxu0
    %3587 = vmatprep.mubr.bf16.mxu0 0
    %3588 = vmatmul.mubr.bf16.gmra.mrb[0].mxu0 %v3138
    %v3589 = vpop.f32.mrb[0].mxu0
    %v3590 = vadd.f32 %v3381, %v3589
    %v3591 = vpop.f32.mrb[0].mxu0
    %v3592 = vpop.f32.mrb[0].mxu0
    %v3593 = vadd.f32 %v3384, %v3592
    %v3594 = vpop.f32.mrb[0].mxu0
    %3595 = vmatprep.mubr.bf16.mxu0 0
    %3596 = vmatmul.mubr.bf16.gmra.mrb[0].mxu0 %v3139
    %v3597 = vpop.f32.mrb[0].mxu0
    %v3598 = vadd.f32 %v3389, %v3597
    %v3599 = vpop.f32.mrb[0].mxu0
    %v3600 = vpop.f32.mrb[0].mxu0
    %v3601 = vadd.f32 %v3392, %v3600
    %v3602 = vpop.f32.mrb[0].mxu0
    %3603 = vmatprep.mubr.bf16.mxu0 0
    %3604 = vmatmul.mubr.bf16.gmra.mrb[0].mxu0 %v3140
    %v3605 = vpop.f32.mrb[0].mxu0
    %v3606 = vadd.f32 %v3397, %v3605
    %v3607 = vpop.f32.mrb[0].mxu0
    %v3608 = vpop.f32.mrb[0].mxu0
    %v3609 = vadd.f32 %v3400, %v3608
    %v3610 = vpop.f32.mrb[0].mxu0
    %3611 = vmatprep.mubr.bf16.mxu0 0
    %3612 = vmatmul.mubr.bf16.gmra.mrb[0].mxu0 %v3141
    %v3613 = vpop.f32.mrb[0].mxu0
    %v3614 = vadd.f32 %v3405, %v3613
    %v3615 = vpop.f32.mrb[0].mxu0
    %v3616 = vpop.f32.mrb[0].mxu0
    %v3617 = vadd.f32 %v3408, %v3616
    %v3618 = vpop.f32.mrb[0].mxu0
    %3619 = vmatprep.mubr.bf16.mxu0 0
    %3620 = vmatmul.mubr.bf16.gmra.mrb[0].mxu0 %v3142
    %v3621 = vpop.f32.mrb[0].mxu0
    %v3622 = vadd.f32 %v3413, %v3621
    %v3623 = vpop.f32.mrb[0].mxu0
    %v3624 = vpop.f32.mrb[0].mxu0
    %v3625 = vadd.f32 %v3416, %v3624
    %v3626 = vpop.f32.mrb[0].mxu0
    %3627 = vmatprep.mubr.bf16.mxu0 0
    %3628 = vmatmul.mubr.bf16.gmra.mrb[0].mxu0 %v3143
    %v3629 = vpop.f32.mrb[0].mxu0
    %v3630 = vadd.f32 %v3421, %v3629
    %v3631 = vpop.f32.mrb[0].mxu0
    %v3632 = vpop.f32.mrb[0].mxu0
    %v3633 = vadd.f32 %v3424, %v3632
    %v3634 = vpop.f32.mrb[0].mxu0
    %3635 = vmatprep.mubr.bf16.mxu0 0
    %3636 = vmatmul.mubr.bf16.gmra.mrb[0].mxu0 %v3144
    %v3637 = vpop.f32.mrb[0].mxu0
    %v3638 = vadd.f32 %v3429, %v3637
    %v3639 = vpop.f32.mrb[0].mxu0
    %v3640 = vpop.f32.mrb[0].mxu0
    %v3641 = vadd.f32 %v3432, %v3640
    %v3642 = vpop.f32.mrb[0].mxu0
    %3643 = vdwg.mxu0
    %v3644 = vld [vmem:[#allocation2 + $0x2] sm:$0xff]
    %v3645 = vld [vmem:[#allocation2 + $0xa] sm:$0xff]
    %v3646 = vld [vmem:[#allocation2 + $0x12] sm:$0xff]
    %v3647 = vld [vmem:[#allocation2 + $0x1a] sm:$0xff]
    %v3648 = vld [vmem:[#allocation2 + $0x22] sm:$0xff]
    %v3649 = vld [vmem:[#allocation2 + $0x2a] sm:$0xff]
    %v3650 = vld [vmem:[#allocation2 + $0x32] sm:$0xff]
    %v3651 = vld [vmem:[#allocation2 + $0x3a] sm:$0xff]
    %v3652 = vld [vmem:[#allocation2 + $0x42] sm:$0xff]
    %v3653 = vld [vmem:[#allocation2 + $0x4a] sm:$0xff]
    %v3654 = vld [vmem:[#allocation2 + $0x52] sm:$0xff]
    %v3655 = vld [vmem:[#allocation2 + $0x5a] sm:$0xff]
    %v3656 = vld [vmem:[#allocation2 + $0x62] sm:$0xff]
    %v3657 = vld [vmem:[#allocation2 + $0x6a] sm:$0xff]
    %v3658 = vld [vmem:[#allocation2 + $0x72] sm:$0xff]
    %v3659 = vld [vmem:[#allocation2 + $0x7a] sm:$0xff]
    %v3660 = vld [vmem:[#allocation2 + $0x82] sm:$0xff]
    %v3661 = vld [vmem:[#allocation2 + $0x8a] sm:$0xff]
    %v3662 = vld [vmem:[#allocation2 + $0x92] sm:$0xff]
    %v3663 = vld [vmem:[#allocation2 + $0x9a] sm:$0xff]
    %v3664 = vld [vmem:[#allocation2 + $0xa2] sm:$0xff]
    %v3665 = vld [vmem:[#allocation2 + $0xaa] sm:$0xff]
    %v3666 = vld [vmem:[#allocation2 + $0xb2] sm:$0xff]
    %v3667 = vld [vmem:[#allocation2 + $0xba] sm:$0xff]
    %v3668 = vld [vmem:[#allocation2 + $0xc2] sm:$0xff]
    %v3669 = vld [vmem:[#allocation2 + $0xca] sm:$0xff]
    %v3670 = vld [vmem:[#allocation2 + $0xd2] sm:$0xff]
    %v3671 = vld [vmem:[#allocation2 + $0xda] sm:$0xff]
    %v3672 = vld [vmem:[#allocation2 + $0xe2] sm:$0xff]
    %v3673 = vld [vmem:[#allocation2 + $0xea] sm:$0xff]
    %v3674 = vld [vmem:[#allocation2 + $0xf2] sm:$0xff]
    %v3675 = vld [vmem:[#allocation2 + $0xfa] sm:$0xff]
    %v3676 = vpack.c.bf16 %v3645, %v3644
    %v3677 = vpack.c.bf16 %v3647, %v3646
    %v3678 = vpack.c.bf16 %v3649, %v3648
    %v3679 = vpack.c.bf16 %v3651, %v3650
    %v3680 = vpack.c.bf16 %v3653, %v3652
    %v3681 = vpack.c.bf16 %v3655, %v3654
    %v3682 = vpack.c.bf16 %v3657, %v3656
    %v3683 = vpack.c.bf16 %v3659, %v3658
    %v3684 = vpack.c.bf16 %v3661, %v3660
    %v3685 = vpack.c.bf16 %v3663, %v3662
    %v3686 = vpack.c.bf16 %v3665, %v3664
    %v3687 = vpack.c.bf16 %v3667, %v3666
    %v3688 = vpack.c.bf16 %v3669, %v3668
    %v3689 = vpack.c.bf16 %v3671, %v3670
    %v3690 = vpack.c.bf16 %v3673, %v3672
    %v3691 = vpack.c.bf16 %v3675, %v3674
    %s3692 = scalar_lea.vmem [#allocation9], 128
    %v3693 = vld [vmem:[%s3692] sm:$0xf]
    %v3694 = vld [vmem:[%s3692 + $0x4] sm:$0xf]
    %v3695 = vld [vmem:[%s3692 + $0x8] sm:$0xf]
    %v3696 = vld [vmem:[%s3692 + $0xc] sm:$0xf]
    %v3697 = vld [vmem:[%s3692 + $0x10] sm:$0xf]
    %v3698 = vld [vmem:[%s3692 + $0x14] sm:$0xf]
    %v3699 = vld [vmem:[%s3692 + $0x18] sm:$0xf]
    %v3700 = vld [vmem:[%s3692 + $0x1c] sm:$0xf]
    %v3701 = vld [vmem:[%s3692 + $0x20] sm:$0xf]
    %v3702 = vld [vmem:[%s3692 + $0x24] sm:$0xf]
    %v3703 = vld [vmem:[%s3692 + $0x28] sm:$0xf]
    %v3704 = vld [vmem:[%s3692 + $0x2c] sm:$0xf]
    %v3705 = vld [vmem:[%s3692 + $0x30] sm:$0xf]
    %v3706 = vld [vmem:[%s3692 + $0x34] sm:$0xf]
    %v3707 = vld [vmem:[%s3692 + $0x38] sm:$0xf]
    %v3708 = vld [vmem:[%s3692 + $0x3c] sm:$0xf]
    %v3725 = vunpack.c.l.b16 %v3693
    %v3726 = vunpack.c.l.b16 %v3694
    %v3727 = vunpack.c.l.b16 %v3695
    %v3728 = vunpack.c.l.b16 %v3696
    %v3729 = vunpack.c.l.b16 %v3697
    %v3730 = vunpack.c.l.b16 %v3698
    %v3731 = vunpack.c.l.b16 %v3699
    %v3732 = vunpack.c.l.b16 %v3700
    %v3733 = vunpack.c.l.b16 %v3701
    %v3734 = vunpack.c.l.b16 %v3702
    %v3735 = vunpack.c.l.b16 %v3703
    %v3736 = vunpack.c.l.b16 %v3704
    %v3737 = vunpack.c.l.b16 %v3705
    %v3738 = vunpack.c.l.b16 %v3706
    %v3739 = vunpack.c.l.b16 %v3707
    %v3740 = vunpack.c.l.b16 %v3708
    %v3741 = vpack.c.b16 %v3726, %v3725
    %v3742 = vpack.c.b16 %v3728, %v3727
    %v3743 = vpack.c.b16 %v3730, %v3729
    %v3744 = vpack.c.b16 %v3732, %v3731
    %v3745 = vpack.c.b16 %v3734, %v3733
    %v3746 = vpack.c.b16 %v3736, %v3735
    %v3747 = vpack.c.b16 %v3738, %v3737
    %v3748 = vpack.c.b16 %v3740, %v3739
    %3757 = vmatprep.subr.bf16.mxu0 0
    %3758 = vmatpush1.bf16.msra.mxu0 %v3741
    %3759 = vmatprep.subr.bf16.mxu0 0
    %3760 = vmatpush1.bf16.msra.mxu0 %v3742
    %3761 = vmatprep.subr.bf16.mxu0 0
    %3762 = vmatpush1.bf16.msra.mxu0 %v3743
    %3763 = vmatprep.subr.bf16.mxu0 0
    %3764 = vmatpush1.bf16.msra.mxu0 %v3744
    %3765 = vmatprep.subr.bf16.mxu0 0
    %3766 = vmatpush1.bf16.msra.mxu0 %v3745
    %3767 = vmatprep.subr.bf16.mxu0 0
    %3768 = vmatpush1.bf16.msra.mxu0 %v3746
    %3769 = vmatprep.subr.bf16.mxu0 0
    %3770 = vmatpush1.bf16.msra.mxu0 %v3747
    %3771 = vmatprep.subr.bf16.mxu0 0
    %3772 = vmatpush1.bf16.msra.mxu0 %v3748
    %3773 = vmatprep.subr.bf16.mxu0 0
    %3774 = vmatpush1.bf16.msra.mxu0 0
    %3775 = vmatprep.subr.bf16.mxu0 0
    %3776 = vmatpush1.bf16.msra.mxu0 0
    %3777 = vmatprep.subr.bf16.mxu0 0
    %3778 = vmatpush1.bf16.msra.mxu0 0
    %3779 = vmatprep.subr.bf16.mxu0 0
    %3780 = vmatpush1.bf16.msra.mxu0 0
    %3781 = vmatprep.subr.bf16.mxu0 0
    %3782 = vmatpush1.bf16.msra.mxu0 0
    %3783 = vmatprep.subr.bf16.mxu0 0
    %3784 = vmatpush1.bf16.msra.mxu0 0
    %3785 = vmatprep.subr.bf16.mxu0 0
    %3786 = vmatpush1.bf16.msra.mxu0 0
    %3787 = vmatprep.subr.bf16.mxu0 0
    %3788 = vmatpush1.bf16.msra.mxu0 0
    %3789 = vmatprep.mubr.bf16.mxu0 0
    %3790 = vmatmul.mubr.bf16.gmra.mrb[0].mxu0 %v3676
    %v3791 = vpop.f32.mrb[0].mxu0
    %v3792 = vadd.f32 0.0, %v3791
    %v3793 = vpop.f32.mrb[0].mxu0
    %v3794 = vpop.f32.mrb[0].mxu0
    %v3795 = vadd.f32 0.0, %v3794
    %v3796 = vpop.f32.mrb[0].mxu0
    %3797 = vmatprep.mubr.bf16.mxu0 0
    %3798 = vmatmul.mubr.bf16.gmra.mrb[0].mxu0 %v3677
    %v3799 = vpop.f32.mrb[0].mxu0
    %v3800 = vadd.f32 0.0, %v3799
    %v3801 = vpop.f32.mrb[0].mxu0
    %v3802 = vpop.f32.mrb[0].mxu0
    %v3803 = vadd.f32 0.0, %v3802
    %v3804 = vpop.f32.mrb[0].mxu0
    %3805 = vmatprep.mubr.bf16.mxu0 0
    %3806 = vmatmul.mubr.bf16.gmra.mrb[0].mxu0 %v3678
    %v3807 = vpop.f32.mrb[0].mxu0
    %v3808 = vadd.f32 0.0, %v3807
    %v3809 = vpop.f32.mrb[0].mxu0
    %v3810 = vpop.f32.mrb[0].mxu0
    %v3811 = vadd.f32 0.0, %v3810
    %v3812 = vpop.f32.mrb[0].mxu0
    %3813 = vmatprep.mubr.bf16.mxu0 0
    %3814 = vmatmul.mubr.bf16.gmra.mrb[0].mxu0 %v3679
    %v3815 = vpop.f32.mrb[0].mxu0
    %v3816 = vadd.f32 0.0, %v3815
    %v3817 = vpop.f32.mrb[0].mxu0
    %v3818 = vpop.f32.mrb[0].mxu0
    %v3819 = vadd.f32 0.0, %v3818
    %v3820 = vpop.f32.mrb[0].mxu0
    %3821 = vmatprep.mubr.bf16.mxu0 0
    %3822 = vmatmul.mubr.bf16.gmra.mrb[0].mxu0 %v3680
    %v3823 = vpop.f32.mrb[0].mxu0
    %v3824 = vadd.f32 0.0, %v3823
    %v3825 = vpop.f32.mrb[0].mxu0
    %v3826 = vpop.f32.mrb[0].mxu0
    %v3827 = vadd.f32 0.0, %v3826
    %v3828 = vpop.f32.mrb[0].mxu0
    %3829 = vmatprep.mubr.bf16.mxu0 0
    %3830 = vmatmul.mubr.bf16.gmra.mrb[0].mxu0 %v3681
    %v3831 = vpop.f32.mrb[0].mxu0
    %v3832 = vadd.f32 0.0, %v3831
    %v3833 = vpop.f32.mrb[0].mxu0
    %v3834 = vpop.f32.mrb[0].mxu0
    %v3835 = vadd.f32 0.0, %v3834
    %v3836 = vpop.f32.mrb[0].mxu0
    %3837 = vmatprep.mubr.bf16.mxu0 0
    %3838 = vmatmul.mubr.bf16.gmra.mrb[0].mxu0 %v3682
    %v3839 = vpop.f32.mrb[0].mxu0
    %v3840 = vadd.f32 0.0, %v3839
    %v3841 = vpop.f32.mrb[0].mxu0
    %v3842 = vpop.f32.mrb[0].mxu0
    %v3843 = vadd.f32 0.0, %v3842
    %v3844 = vpop.f32.mrb[0].mxu0
    %3845 = vmatprep.mubr.bf16.mxu0 0
    %3846 = vmatmul.mubr.bf16.gmra.mrb[0].mxu0 %v3683
    %v3847 = vpop.f32.mrb[0].mxu0
    %v3848 = vadd.f32 0.0, %v3847
    %v3849 = vpop.f32.mrb[0].mxu0
    %v3850 = vpop.f32.mrb[0].mxu0
    %v3851 = vadd.f32 0.0, %v3850
    %v3852 = vpop.f32.mrb[0].mxu0
    %3853 = vmatprep.mubr.bf16.mxu0 0
    %3854 = vmatmul.mubr.bf16.gmra.mrb[0].mxu0 %v3684
    %v3855 = vpop.f32.mrb[0].mxu0
    %v3856 = vadd.f32 0.0, %v3855
    %v3857 = vpop.f32.mrb[0].mxu0
    %v3858 = vpop.f32.mrb[0].mxu0
    %v3859 = vadd.f32 0.0, %v3858
    %v3860 = vpop.f32.mrb[0].mxu0
    %3861 = vmatprep.mubr.bf16.mxu0 0
    %3862 = vmatmul.mubr.bf16.gmra.mrb[0].mxu0 %v3685
    %v3863 = vpop.f32.mrb[0].mxu0
    %v3864 = vadd.f32 0.0, %v3863
    %v3865 = vpop.f32.mrb[0].mxu0
    %v3866 = vpop.f32.mrb[0].mxu0
    %v3867 = vadd.f32 0.0, %v3866
    %v3868 = vpop.f32.mrb[0].mxu0
    %3869 = vmatprep.mubr.bf16.mxu0 0
    %3870 = vmatmul.mubr.bf16.gmra.mrb[0].mxu0 %v3686
    %v3871 = vpop.f32.mrb[0].mxu0
    %v3872 = vadd.f32 0.0, %v3871
    %v3873 = vpop.f32.mrb[0].mxu0
    %v3874 = vpop.f32.mrb[0].mxu0
    %v3875 = vadd.f32 0.0, %v3874
    %v3876 = vpop.f32.mrb[0].mxu0
    %3877 = vmatprep.mubr.bf16.mxu0 0
    %3878 = vmatmul.mubr.bf16.gmra.mrb[0].mxu0 %v3687
    %v3879 = vpop.f32.mrb[0].mxu0
    %v3880 = vadd.f32 0.0, %v3879
    %v3881 = vpop.f32.mrb[0].mxu0
    %v3882 = vpop.f32.mrb[0].mxu0
    %v3883 = vadd.f32 0.0, %v3882
    %v3884 = vpop.f32.mrb[0].mxu0
    %3885 = vmatprep.mubr.bf16.mxu0 0
    %3886 = vmatmul.mubr.bf16.gmra.mrb[0].mxu0 %v3688
    %v3887 = vpop.f32.mrb[0].mxu0
    %v3888 = vadd.f32 0.0, %v3887
    %v3889 = vpop.f32.mrb[0].mxu0
    %v3890 = vpop.f32.mrb[0].mxu0
    %v3891 = vadd.f32 0.0, %v3890
    %v3892 = vpop.f32.mrb[0].mxu0
    %3893 = vmatprep.mubr.bf16.mxu0 0
    %3894 = vmatmul.mubr.bf16.gmra.mrb[0].mxu0 %v3689
    %v3895 = vpop.f32.mrb[0].mxu0
    %v3896 = vadd.f32 0.0, %v3895
    %v3897 = vpop.f32.mrb[0].mxu0
    %v3898 = vpop.f32.mrb[0].mxu0
    %v3899 = vadd.f32 0.0, %v3898
    %v3900 = vpop.f32.mrb[0].mxu0
    %3901 = vmatprep.mubr.bf16.mxu0 0
    %3902 = vmatmul.mubr.bf16.gmra.mrb[0].mxu0 %v3690
    %v3903 = vpop.f32.mrb[0].mxu0
    %v3904 = vadd.f32 0.0, %v3903
    %v3905 = vpop.f32.mrb[0].mxu0
    %v3906 = vpop.f32.mrb[0].mxu0
    %v3907 = vadd.f32 0.0, %v3906
    %v3908 = vpop.f32.mrb[0].mxu0
    %3909 = vmatprep.mubr.bf16.mxu0 0
    %3910 = vmatmul.mubr.bf16.gmra.mrb[0].mxu0 %v3691
    %v3911 = vpop.f32.mrb[0].mxu0
    %v3912 = vadd.f32 0.0, %v3911
    %v3913 = vpop.f32.mrb[0].mxu0
    %v3914 = vpop.f32.mrb[0].mxu0
    %v3915 = vadd.f32 0.0, %v3914
    %v3916 = vpop.f32.mrb[0].mxu0
    %3917 = vdwg.mxu0
    %v3918 = vadd.f32 %v3518, %v3792
    %v3919 = vadd.f32 %v3521, %v3795
    %v3920 = vadd.f32 %v3526, %v3800
    %v3921 = vadd.f32 %v3529, %v3803
    %v3922 = vadd.f32 %v3534, %v3808
    %v3923 = vadd.f32 %v3537, %v3811
    %v3924 = vadd.f32 %v3542, %v3816
    %v3925 = vadd.f32 %v3545, %v3819
    %v3926 = vadd.f32 %v3550, %v3824
    %v3927 = vadd.f32 %v3553, %v3827
    %v3928 = vadd.f32 %v3558, %v3832
    %v3929 = vadd.f32 %v3561, %v3835
    %v3930 = vadd.f32 %v3566, %v3840
    %v3931 = vadd.f32 %v3569, %v3843
    %v3932 = vadd.f32 %v3574, %v3848
    %v3933 = vadd.f32 %v3577, %v3851
    %v3934 = vadd.f32 %v3582, %v3856
    %v3935 = vadd.f32 %v3585, %v3859
    %v3936 = vadd.f32 %v3590, %v3864
    %v3937 = vadd.f32 %v3593, %v3867
    %v3938 = vadd.f32 %v3598, %v3872
    %v3939 = vadd.f32 %v3601, %v3875
    %v3940 = vadd.f32 %v3606, %v3880
    %v3941 = vadd.f32 %v3609, %v3883
    %v3942 = vadd.f32 %v3614, %v3888
    %v3943 = vadd.f32 %v3617, %v3891
    %v3944 = vadd.f32 %v3622, %v3896
    %v3945 = vadd.f32 %v3625, %v3899
    %v3946 = vadd.f32 %v3630, %v3904
    %v3947 = vadd.f32 %v3633, %v3907
    %v3948 = vadd.f32 %v3638, %v3912
    %v3949 = vadd.f32 %v3641, %v3915
    %v3950 = vld [vmem:[#allocation2 + $0x3] sm:$0xff]
    %v3951 = vld [vmem:[#allocation2 + $0xb] sm:$0xff]
    %v3952 = vld [vmem:[#allocation2 + $0x13] sm:$0xff]
    %v3953 = vld [vmem:[#allocation2 + $0x1b] sm:$0xff]
    %v3954 = vld [vmem:[#allocation2 + $0x23] sm:$0xff]
    %v3955 = vld [vmem:[#allocation2 + $0x2b] sm:$0xff]
    %v3956 = vld [vmem:[#allocation2 + $0x33] sm:$0xff]
    %v3957 = vld [vmem:[#allocation2 + $0x3b] sm:$0xff]
    %v3958 = vld [vmem:[#allocation2 + $0x43] sm:$0xff]
    %v3959 = vld [vmem:[#allocation2 + $0x4b] sm:$0xff]
    %v3960 = vld [vmem:[#allocation2 + $0x53] sm:$0xff]
    %v3961 = vld [vmem:[#allocation2 + $0x5b] sm:$0xff]
    %v3962 = vld [vmem:[#allocation2 + $0x63] sm:$0xff]
    %v3963 = vld [vmem:[#allocation2 + $0x6b] sm:$0xff]
    %v3964 = vld [vmem:[#allocation2 + $0x73] sm:$0xff]
    %v3965 = vld [vmem:[#allocation2 + $0x7b] sm:$0xff]
    %v3966 = vld [vmem:[#allocation2 + $0x83] sm:$0xff]
    %v3967 = vld [vmem:[#allocation2 + $0x8b] sm:$0xff]
    %v3968 = vld [vmem:[#allocation2 + $0x93] sm:$0xff]
    %v3969 = vld [vmem:[#allocation2 + $0x9b] sm:$0xff]
    %v3970 = vld [vmem:[#allocation2 + $0xa3] sm:$0xff]
    %v3971 = vld [vmem:[#allocation2 + $0xab] sm:$0xff]
    %v3972 = vld [vmem:[#allocation2 + $0xb3] sm:$0xff]
    %v3973 = vld [vmem:[#allocation2 + $0xbb] sm:$0xff]
    %v3974 = vld [vmem:[#allocation2 + $0xc3] sm:$0xff]
    %v3975 = vld [vmem:[#allocation2 + $0xcb] sm:$0xff]
    %v3976 = vld [vmem:[#allocation2 + $0xd3] sm:$0xff]
    %v3977 = vld [vmem:[#allocation2 + $0xdb] sm:$0xff]
    %v3978 = vld [vmem:[#allocation2 + $0xe3] sm:$0xff]
    %v3979 = vld [vmem:[#allocation2 + $0xeb] sm:$0xff]
    %v3980 = vld [vmem:[#allocation2 + $0xf3] sm:$0xff]
    %v3981 = vld [vmem:[#allocation2 + $0xfb] sm:$0xff]
    %v3982 = vpack.c.bf16 %v3951, %v3950
    %v3983 = vpack.c.bf16 %v3953, %v3952
    %v3984 = vpack.c.bf16 %v3955, %v3954
    %v3985 = vpack.c.bf16 %v3957, %v3956
    %v3986 = vpack.c.bf16 %v3959, %v3958
    %v3987 = vpack.c.bf16 %v3961, %v3960
    %v3988 = vpack.c.bf16 %v3963, %v3962
    %v3989 = vpack.c.bf16 %v3965, %v3964
    %v3990 = vpack.c.bf16 %v3967, %v3966
    %v3991 = vpack.c.bf16 %v3969, %v3968
    %v3992 = vpack.c.bf16 %v3971, %v3970
    %v3993 = vpack.c.bf16 %v3973, %v3972
    %v3994 = vpack.c.bf16 %v3975, %v3974
    %v3995 = vpack.c.bf16 %v3977, %v3976
    %v3996 = vpack.c.bf16 %v3979, %v3978
    %v3997 = vpack.c.bf16 %v3981, %v3980
    %s3998 = scalar_lea.vmem [#allocation9], 192
    %v3999 = vld [vmem:[%s3998] sm:$0xf]
    %v4000 = vld [vmem:[%s3998 + $0x4] sm:$0xf]
    %v4001 = vld [vmem:[%s3998 + $0x8] sm:$0xf]
    %v4002 = vld [vmem:[%s3998 + $0xc] sm:$0xf]
    %v4003 = vld [vmem:[%s3998 + $0x10] sm:$0xf]
    %v4004 = vld [vmem:[%s3998 + $0x14] sm:$0xf]
    %v4005 = vld [vmem:[%s3998 + $0x18] sm:$0xf]
    %v4006 = vld [vmem:[%s3998 + $0x1c] sm:$0xf]
    %v4007 = vld [vmem:[%s3998 + $0x20] sm:$0xf]
    %v4008 = vld [vmem:[%s3998 + $0x24] sm:$0xf]
    %v4009 = vld [vmem:[%s3998 + $0x28] sm:$0xf]
    %v4010 = vld [vmem:[%s3998 + $0x2c] sm:$0xf]
    %v4011 = vld [vmem:[%s3998 + $0x30] sm:$0xf]
    %v4012 = vld [vmem:[%s3998 + $0x34] sm:$0xf]
    %v4013 = vld [vmem:[%s3998 + $0x38] sm:$0xf]
    %v4014 = vld [vmem:[%s3998 + $0x3c] sm:$0xf]
    %v4031 = vunpack.c.l.b16 %v3999
    %v4032 = vunpack.c.l.b16 %v4000
    %v4033 = vunpack.c.l.b16 %v4001
    %v4034 = vunpack.c.l.b16 %v4002
    %v4035 = vunpack.c.l.b16 %v4003
    %v4036 = vunpack.c.l.b16 %v4004
    %v4037 = vunpack.c.l.b16 %v4005
    %v4038 = vunpack.c.l.b16 %v4006
    %v4039 = vunpack.c.l.b16 %v4007
    %v4040 = vunpack.c.l.b16 %v4008
    %v4041 = vunpack.c.l.b16 %v4009
    %v4042 = vunpack.c.l.b16 %v4010
    %v4043 = vunpack.c.l.b16 %v4011
    %v4044 = vunpack.c.l.b16 %v4012
    %v4045 = vunpack.c.l.b16 %v4013
    %v4046 = vunpack.c.l.b16 %v4014
    %v4047 = vpack.c.b16 %v4032, %v4031
    %v4048 = vpack.c.b16 %v4034, %v4033
    %v4049 = vpack.c.b16 %v4036, %v4035
    %v4050 = vpack.c.b16 %v4038, %v4037
    %v4051 = vpack.c.b16 %v4040, %v4039
    %v4052 = vpack.c.b16 %v4042, %v4041
    %v4053 = vpack.c.b16 %v4044, %v4043
    %v4054 = vpack.c.b16 %v4046, %v4045
    %4063 = vmatprep.subr.bf16.mxu0 0
    %4064 = vmatpush1.bf16.msra.mxu0 %v4047
    %4065 = vmatprep.subr.bf16.mxu0 0
    %4066 = vmatpush1.bf16.msra.mxu0 %v4048
    %4067 = vmatprep.subr.bf16.mxu0 0
    %4068 = vmatpush1.bf16.msra.mxu0 %v4049
    %4069 = vmatprep.subr.bf16.mxu0 0
    %4070 = vmatpush1.bf16.msra.mxu0 %v4050
    %4071 = vmatprep.subr.bf16.mxu0 0
    %4072 = vmatpush1.bf16.msra.mxu0 %v4051
    %4073 = vmatprep.subr.bf16.mxu0 0
    %4074 = vmatpush1.bf16.msra.mxu0 %v4052
    %4075 = vmatprep.subr.bf16.mxu0 0
    %4076 = vmatpush1.bf16.msra.mxu0 %v4053
    %4077 = vmatprep.subr.bf16.mxu0 0
    %4078 = vmatpush1.bf16.msra.mxu0 %v4054
    %4079 = vmatprep.subr.bf16.mxu0 0
    %4080 = vmatpush1.bf16.msra.mxu0 0
    %4081 = vmatprep.subr.bf16.mxu0 0
    %4082 = vmatpush1.bf16.msra.mxu0 0
    %4083 = vmatprep.subr.bf16.mxu0 0
    %4084 = vmatpush1.bf16.msra.mxu0 0
    %4085 = vmatprep.subr.bf16.mxu0 0
    %4086 = vmatpush1.bf16.msra.mxu0 0
    %4087 = vmatprep.subr.bf16.mxu0 0
    %4088 = vmatpush1.bf16.msra.mxu0 0
    %4089 = vmatprep.subr.bf16.mxu0 0
    %4090 = vmatpush1.bf16.msra.mxu0 0
    %4091 = vmatprep.subr.bf16.mxu0 0
    %4092 = vmatpush1.bf16.msra.mxu0 0
    %4093 = vmatprep.subr.bf16.mxu0 0
    %4094 = vmatpush1.bf16.msra.mxu0 0
    %4095 = vmatprep.mubr.bf16.mxu0 0
    %4096 = vmatmul.mubr.bf16.gmra.mrb[0].mxu0 %v3982
    %v4097 = vpop.f32.mrb[0].mxu0
    %v4098 = vadd.f32 0.0, %v4097
    %v4099 = vpop.f32.mrb[0].mxu0
    %v4100 = vpop.f32.mrb[0].mxu0
    %v4101 = vadd.f32 0.0, %v4100
    %v4102 = vpop.f32.mrb[0].mxu0
    %4103 = vmatprep.mubr.bf16.mxu0 0
    %4104 = vmatmul.mubr.bf16.gmra.mrb[0].mxu0 %v3983
    %v4105 = vpop.f32.mrb[0].mxu0
    %v4106 = vadd.f32 0.0, %v4105
    %v4107 = vpop.f32.mrb[0].mxu0
    %v4108 = vpop.f32.mrb[0].mxu0
    %v4109 = vadd.f32 0.0, %v4108
    %v4110 = vpop.f32.mrb[0].mxu0
    %4111 = vmatprep.mubr.bf16.mxu0 0
    %4112 = vmatmul.mubr.bf16.gmra.mrb[0].mxu0 %v3984
    %v4113 = vpop.f32.mrb[0].mxu0
    %v4114 = vadd.f32 0.0, %v4113
    %v4115 = vpop.f32.mrb[0].mxu0
    %v4116 = vpop.f32.mrb[0].mxu0
    %v4117 = vadd.f32 0.0, %v4116
    %v4118 = vpop.f32.mrb[0].mxu0
    %4119 = vmatprep.mubr.bf16.mxu0 0
    %4120 = vmatmul.mubr.bf16.gmra.mrb[0].mxu0 %v3985
    %v4121 = vpop.f32.mrb[0].mxu0
    %v4122 = vadd.f32 0.0, %v4121
    %v4123 = vpop.f32.mrb[0].mxu0
    %v4124 = vpop.f32.mrb[0].mxu0
    %v4125 = vadd.f32 0.0, %v4124
    %v4126 = vpop.f32.mrb[0].mxu0
    %4127 = vmatprep.mubr.bf16.mxu0 0
    %4128 = vmatmul.mubr.bf16.gmra.mrb[0].mxu0 %v3986
    %v4129 = vpop.f32.mrb[0].mxu0
    %v4130 = vadd.f32 0.0, %v4129
    %v4131 = vpop.f32.mrb[0].mxu0
    %v4132 = vpop.f32.mrb[0].mxu0
    %v4133 = vadd.f32 0.0, %v4132
    %v4134 = vpop.f32.mrb[0].mxu0
    %4135 = vmatprep.mubr.bf16.mxu0 0
    %4136 = vmatmul.mubr.bf16.gmra.mrb[0].mxu0 %v3987
    %v4137 = vpop.f32.mrb[0].mxu0
    %v4138 = vadd.f32 0.0, %v4137
    %v4139 = vpop.f32.mrb[0].mxu0
    %v4140 = vpop.f32.mrb[0].mxu0
    %v4141 = vadd.f32 0.0, %v4140
    %v4142 = vpop.f32.mrb[0].mxu0
    %4143 = vmatprep.mubr.bf16.mxu0 0
    %4144 = vmatmul.mubr.bf16.gmra.mrb[0].mxu0 %v3988
    %v4145 = vpop.f32.mrb[0].mxu0
    %v4146 = vadd.f32 0.0, %v4145
    %v4147 = vpop.f32.mrb[0].mxu0
    %v4148 = vpop.f32.mrb[0].mxu0
    %v4149 = vadd.f32 0.0, %v4148
    %v4150 = vpop.f32.mrb[0].mxu0
    %4151 = vmatprep.mubr.bf16.mxu0 0
    %4152 = vmatmul.mubr.bf16.gmra.mrb[0].mxu0 %v3989
    %v4153 = vpop.f32.mrb[0].mxu0
    %v4154 = vadd.f32 0.0, %v4153
    %v4155 = vpop.f32.mrb[0].mxu0
    %v4156 = vpop.f32.mrb[0].mxu0
    %v4157 = vadd.f32 0.0, %v4156
    %v4158 = vpop.f32.mrb[0].mxu0
    %4159 = vmatprep.mubr.bf16.mxu0 0
    %4160 = vmatmul.mubr.bf16.gmra.mrb[0].mxu0 %v3990
    %v4161 = vpop.f32.mrb[0].mxu0
    %v4162 = vadd.f32 0.0, %v4161
    %v4163 = vpop.f32.mrb[0].mxu0
    %v4164 = vpop.f32.mrb[0].mxu0
    %v4165 = vadd.f32 0.0, %v4164
    %v4166 = vpop.f32.mrb[0].mxu0
    %4167 = vmatprep.mubr.bf16.mxu0 0
    %4168 = vmatmul.mubr.bf16.gmra.mrb[0].mxu0 %v3991
    %v4169 = vpop.f32.mrb[0].mxu0
    %v4170 = vadd.f32 0.0, %v4169
    %v4171 = vpop.f32.mrb[0].mxu0
    %v4172 = vpop.f32.mrb[0].mxu0
    %v4173 = vadd.f32 0.0, %v4172
    %v4174 = vpop.f32.mrb[0].mxu0
    %4175 = vmatprep.mubr.bf16.mxu0 0
    %4176 = vmatmul.mubr.bf16.gmra.mrb[0].mxu0 %v3992
    %v4177 = vpop.f32.mrb[0].mxu0
    %v4178 = vadd.f32 0.0, %v4177
    %v4179 = vpop.f32.mrb[0].mxu0
    %v4180 = vpop.f32.mrb[0].mxu0
    %v4181 = vadd.f32 0.0, %v4180
    %v4182 = vpop.f32.mrb[0].mxu0
    %4183 = vmatprep.mubr.bf16.mxu0 0
    %4184 = vmatmul.mubr.bf16.gmra.mrb[0].mxu0 %v3993
    %v4185 = vpop.f32.mrb[0].mxu0
    %v4186 = vadd.f32 0.0, %v4185
    %v4187 = vpop.f32.mrb[0].mxu0
    %v4188 = vpop.f32.mrb[0].mxu0
    %v4189 = vadd.f32 0.0, %v4188
    %v4190 = vpop.f32.mrb[0].mxu0
    %4191 = vmatprep.mubr.bf16.mxu0 0
    %4192 = vmatmul.mubr.bf16.gmra.mrb[0].mxu0 %v3994
    %v4193 = vpop.f32.mrb[0].mxu0
    %v4194 = vadd.f32 0.0, %v4193
    %v4195 = vpop.f32.mrb[0].mxu0
    %v4196 = vpop.f32.mrb[0].mxu0
    %v4197 = vadd.f32 0.0, %v4196
    %v4198 = vpop.f32.mrb[0].mxu0
    %4199 = vmatprep.mubr.bf16.mxu0 0
    %4200 = vmatmul.mubr.bf16.gmra.mrb[0].mxu0 %v3995
    %v4201 = vpop.f32.mrb[0].mxu0
    %v4202 = vadd.f32 0.0, %v4201
    %v4203 = vpop.f32.mrb[0].mxu0
    %v4204 = vpop.f32.mrb[0].mxu0
    %v4205 = vadd.f32 0.0, %v4204
    %v4206 = vpop.f32.mrb[0].mxu0
    %4207 = vmatprep.mubr.bf16.mxu0 0
    %4208 = vmatmul.mubr.bf16.gmra.mrb[0].mxu0 %v3996
    %v4209 = vpop.f32.mrb[0].mxu0
    %v4210 = vadd.f32 0.0, %v4209
    %v4211 = vpop.f32.mrb[0].mxu0
    %v4212 = vpop.f32.mrb[0].mxu0
    %v4213 = vadd.f32 0.0, %v4212
    %v4214 = vpop.f32.mrb[0].mxu0
    %4215 = vmatprep.mubr.bf16.mxu0 0
    %4216 = vmatmul.mubr.bf16.gmra.mrb[0].mxu0 %v3997
    %v4217 = vpop.f32.mrb[0].mxu0
    %v4218 = vadd.f32 0.0, %v4217
    %v4219 = vpop.f32.mrb[0].mxu0
    %v4220 = vpop.f32.mrb[0].mxu0
    %v4221 = vadd.f32 0.0, %v4220
    %v4222 = vpop.f32.mrb[0].mxu0
    %4223 = vdwg.mxu0
    %v4224 = vadd.f32 %v3918, %v4098
    %v4225 = vadd.f32 %v3919, %v4101
    %v4226 = vadd.f32 %v3920, %v4106
    %v4227 = vadd.f32 %v3921, %v4109
    %v4228 = vadd.f32 %v3922, %v4114
    %v4229 = vadd.f32 %v3923, %v4117
    %v4230 = vadd.f32 %v3924, %v4122
    %v4231 = vadd.f32 %v3925, %v4125
    %v4232 = vadd.f32 %v3926, %v4130
    %v4233 = vadd.f32 %v3927, %v4133
    %v4234 = vadd.f32 %v3928, %v4138
    %v4235 = vadd.f32 %v3929, %v4141
    %v4236 = vadd.f32 %v3930, %v4146
    %v4237 = vadd.f32 %v3931, %v4149
    %v4238 = vadd.f32 %v3932, %v4154
    %v4239 = vadd.f32 %v3933, %v4157
    %v4240 = vadd.f32 %v3934, %v4162
    %v4241 = vadd.f32 %v3935, %v4165
    %v4242 = vadd.f32 %v3936, %v4170
    %v4243 = vadd.f32 %v3937, %v4173
    %v4244 = vadd.f32 %v3938, %v4178
    %v4245 = vadd.f32 %v3939, %v4181
    %v4246 = vadd.f32 %v3940, %v4186
    %v4247 = vadd.f32 %v3941, %v4189
    %v4248 = vadd.f32 %v3942, %v4194
    %v4249 = vadd.f32 %v3943, %v4197
    %v4250 = vadd.f32 %v3944, %v4202
    %v4251 = vadd.f32 %v3945, %v4205
    %v4252 = vadd.f32 %v3946, %v4210
    %v4253 = vadd.f32 %v3947, %v4213
    %v4254 = vadd.f32 %v3948, %v4218
    %v4255 = vadd.f32 %v3949, %v4221
    %v4256 = vld [vmem:[#allocation2 + $0x4] sm:$0xff]
    %v4257 = vld [vmem:[#allocation2 + $0xc] sm:$0xff]
    %v4258 = vld [vmem:[#allocation2 + $0x14] sm:$0xff]
    %v4259 = vld [vmem:[#allocation2 + $0x1c] sm:$0xff]
    %v4260 = vld [vmem:[#allocation2 + $0x24] sm:$0xff]
    %v4261 = vld [vmem:[#allocation2 + $0x2c] sm:$0xff]
    %v4262 = vld [vmem:[#allocation2 + $0x34] sm:$0xff]
    %v4263 = vld [vmem:[#allocation2 + $0x3c] sm:$0xff]
    %v4264 = vld [vmem:[#allocation2 + $0x44] sm:$0xff]
    %v4265 = vld [vmem:[#allocation2 + $0x4c] sm:$0xff]
    %v4266 = vld [vmem:[#allocation2 + $0x54] sm:$0xff]
    %v4267 = vld [vmem:[#allocation2 + $0x5c] sm:$0xff]
    %v4268 = vld [vmem:[#allocation2 + $0x64] sm:$0xff]
    %v4269 = vld [vmem:[#allocation2 + $0x6c] sm:$0xff]
    %v4270 = vld [vmem:[#allocation2 + $0x74] sm:$0xff]
    %v4271 = vld [vmem:[#allocation2 + $0x7c] sm:$0xff]
    %v4272 = vld [vmem:[#allocation2 + $0x84] sm:$0xff]
    %v4273 = vld [vmem:[#allocation2 + $0x8c] sm:$0xff]
    %v4274 = vld [vmem:[#allocation2 + $0x94] sm:$0xff]
    %v4275 = vld [vmem:[#allocation2 + $0x9c] sm:$0xff]
    %v4276 = vld [vmem:[#allocation2 + $0xa4] sm:$0xff]
    %v4277 = vld [vmem:[#allocation2 + $0xac] sm:$0xff]
    %v4278 = vld [vmem:[#allocation2 + $0xb4] sm:$0xff]
    %v4279 = vld [vmem:[#allocation2 + $0xbc] sm:$0xff]
    %v4280 = vld [vmem:[#allocation2 + $0xc4] sm:$0xff]
    %v4281 = vld [vmem:[#allocation2 + $0xcc] sm:$0xff]
    %v4282 = vld [vmem:[#allocation2 + $0xd4] sm:$0xff]
    %v4283 = vld [vmem:[#allocation2 + $0xdc] sm:$0xff]
    %v4284 = vld [vmem:[#allocation2 + $0xe4] sm:$0xff]
    %v4285 = vld [vmem:[#allocation2 + $0xec] sm:$0xff]
    %v4286 = vld [vmem:[#allocation2 + $0xf4] sm:$0xff]
    %v4287 = vld [vmem:[#allocation2 + $0xfc] sm:$0xff]
    %v4288 = vpack.c.bf16 %v4257, %v4256
    %v4289 = vpack.c.bf16 %v4259, %v4258
    %v4290 = vpack.c.bf16 %v4261, %v4260
    %v4291 = vpack.c.bf16 %v4263, %v4262
    %v4292 = vpack.c.bf16 %v4265, %v4264
    %v4293 = vpack.c.bf16 %v4267, %v4266
    %v4294 = vpack.c.bf16 %v4269, %v4268
    %v4295 = vpack.c.bf16 %v4271, %v4270
    %v4296 = vpack.c.bf16 %v4273, %v4272
    %v4297 = vpack.c.bf16 %v4275, %v4274
    %v4298 = vpack.c.bf16 %v4277, %v4276
    %v4299 = vpack.c.bf16 %v4279, %v4278
    %v4300 = vpack.c.bf16 %v4281, %v4280
    %v4301 = vpack.c.bf16 %v4283, %v4282
    %v4302 = vpack.c.bf16 %v4285, %v4284
    %v4303 = vpack.c.bf16 %v4287, %v4286
    %s4304 = scalar_lea.vmem [#allocation9], 256
    %v4305 = vld [vmem:[%s4304] sm:$0xf]
    %v4306 = vld [vmem:[%s4304 + $0x4] sm:$0xf]
    %v4307 = vld [vmem:[%s4304 + $0x8] sm:$0xf]
    %v4308 = vld [vmem:[%s4304 + $0xc] sm:$0xf]
    %v4309 = vld [vmem:[%s4304 + $0x10] sm:$0xf]
    %v4310 = vld [vmem:[%s4304 + $0x14] sm:$0xf]
    %v4311 = vld [vmem:[%s4304 + $0x18] sm:$0xf]
    %v4312 = vld [vmem:[%s4304 + $0x1c] sm:$0xf]
    %v4313 = vld [vmem:[%s4304 + $0x20] sm:$0xf]
    %v4314 = vld [vmem:[%s4304 + $0x24] sm:$0xf]
    %v4315 = vld [vmem:[%s4304 + $0x28] sm:$0xf]
    %v4316 = vld [vmem:[%s4304 + $0x2c] sm:$0xf]
    %v4317 = vld [vmem:[%s4304 + $0x30] sm:$0xf]
    %v4318 = vld [vmem:[%s4304 + $0x34] sm:$0xf]
    %v4319 = vld [vmem:[%s4304 + $0x38] sm:$0xf]
    %v4320 = vld [vmem:[%s4304 + $0x3c] sm:$0xf]
    %v4337 = vunpack.c.l.b16 %v4305
    %v4338 = vunpack.c.l.b16 %v4306
    %v4339 = vunpack.c.l.b16 %v4307
    %v4340 = vunpack.c.l.b16 %v4308
    %v4341 = vunpack.c.l.b16 %v4309
    %v4342 = vunpack.c.l.b16 %v4310
    %v4343 = vunpack.c.l.b16 %v4311
    %v4344 = vunpack.c.l.b16 %v4312
    %v4345 = vunpack.c.l.b16 %v4313
    %v4346 = vunpack.c.l.b16 %v4314
    %v4347 = vunpack.c.l.b16 %v4315
    %v4348 = vunpack.c.l.b16 %v4316
    %v4349 = vunpack.c.l.b16 %v4317
    %v4350 = vunpack.c.l.b16 %v4318
    %v4351 = vunpack.c.l.b16 %v4319
    %v4352 = vunpack.c.l.b16 %v4320
    %v4353 = vpack.c.b16 %v4338, %v4337
    %v4354 = vpack.c.b16 %v4340, %v4339
    %v4355 = vpack.c.b16 %v4342, %v4341
    %v4356 = vpack.c.b16 %v4344, %v4343
    %v4357 = vpack.c.b16 %v4346, %v4345
    %v4358 = vpack.c.b16 %v4348, %v4347
    %v4359 = vpack.c.b16 %v4350, %v4349
    %v4360 = vpack.c.b16 %v4352, %v4351
    %4369 = vmatprep.subr.bf16.mxu0 0
    %4370 = vmatpush1.bf16.msra.mxu0 %v4353
    %4371 = vmatprep.subr.bf16.mxu0 0
    %4372 = vmatpush1.bf16.msra.mxu0 %v4354
    %4373 = vmatprep.subr.bf16.mxu0 0
    %4374 = vmatpush1.bf16.msra.mxu0 %v4355
    %4375 = vmatprep.subr.bf16.mxu0 0
    %4376 = vmatpush1.bf16.msra.mxu0 %v4356
    %4377 = vmatprep.subr.bf16.mxu0 0
    %4378 = vmatpush1.bf16.msra.mxu0 %v4357
    %4379 = vmatprep.subr.bf16.mxu0 0
    %4380 = vmatpush1.bf16.msra.mxu0 %v4358
    %4381 = vmatprep.subr.bf16.mxu0 0
    %4382 = vmatpush1.bf16.msra.mxu0 %v4359
    %4383 = vmatprep.subr.bf16.mxu0 0
    %4384 = vmatpush1.bf16.msra.mxu0 %v4360
    %4385 = vmatprep.subr.bf16.mxu0 0
    %4386 = vmatpush1.bf16.msra.mxu0 0
    %4387 = vmatprep.subr.bf16.mxu0 0
    %4388 = vmatpush1.bf16.msra.mxu0 0
    %4389 = vmatprep.subr.bf16.mxu0 0
    %4390 = vmatpush1.bf16.msra.mxu0 0
    %4391 = vmatprep.subr.bf16.mxu0 0
    %4392 = vmatpush1.bf16.msra.mxu0 0
    %4393 = vmatprep.subr.bf16.mxu0 0
    %4394 = vmatpush1.bf16.msra.mxu0 0
    %4395 = vmatprep.subr.bf16.mxu0 0
    %4396 = vmatpush1.bf16.msra.mxu0 0
    %4397 = vmatprep.subr.bf16.mxu0 0
    %4398 = vmatpush1.bf16.msra.mxu0 0
    %4399 = vmatprep.subr.bf16.mxu0 0
    %4400 = vmatpush1.bf16.msra.mxu0 0
    %4401 = vmatprep.mubr.bf16.mxu0 0
    %4402 = vmatmul.mubr.bf16.gmra.mrb[0].mxu0 %v4288
    %v4403 = vpop.f32.mrb[0].mxu0
    %v4404 = vadd.f32 0.0, %v4403
    %v4405 = vpop.f32.mrb[0].mxu0
    %v4406 = vpop.f32.mrb[0].mxu0
    %v4407 = vadd.f32 0.0, %v4406
    %v4408 = vpop.f32.mrb[0].mxu0
    %4409 = vmatprep.mubr.bf16.mxu0 0
    %4410 = vmatmul.mubr.bf16.gmra.mrb[0].mxu0 %v4289
    %v4411 = vpop.f32.mrb[0].mxu0
    %v4412 = vadd.f32 0.0, %v4411
    %v4413 = vpop.f32.mrb[0].mxu0
    %v4414 = vpop.f32.mrb[0].mxu0
    %v4415 = vadd.f32 0.0, %v4414
    %v4416 = vpop.f32.mrb[0].mxu0
    %4417 = vmatprep.mubr.bf16.mxu0 0
    %4418 = vmatmul.mubr.bf16.gmra.mrb[0].mxu0 %v4290
    %v4419 = vpop.f32.mrb[0].mxu0
    %v4420 = vadd.f32 0.0, %v4419
    %v4421 = vpop.f32.mrb[0].mxu0
    %v4422 = vpop.f32.mrb[0].mxu0
    %v4423 = vadd.f32 0.0, %v4422
    %v4424 = vpop.f32.mrb[0].mxu0
    %4425 = vmatprep.mubr.bf16.mxu0 0
    %4426 = vmatmul.mubr.bf16.gmra.mrb[0].mxu0 %v4291
    %v4427 = vpop.f32.mrb[0].mxu0
    %v4428 = vadd.f32 0.0, %v4427
    %v4429 = vpop.f32.mrb[0].mxu0
    %v4430 = vpop.f32.mrb[0].mxu0
    %v4431 = vadd.f32 0.0, %v4430
    %v4432 = vpop.f32.mrb[0].mxu0
    %4433 = vmatprep.mubr.bf16.mxu0 0
    %4434 = vmatmul.mubr.bf16.gmra.mrb[0].mxu0 %v4292
    %v4435 = vpop.f32.mrb[0].mxu0
    %v4436 = vadd.f32 0.0, %v4435
    %v4437 = vpop.f32.mrb[0].mxu0
    %v4438 = vpop.f32.mrb[0].mxu0
    %v4439 = vadd.f32 0.0, %v4438
    %v4440 = vpop.f32.mrb[0].mxu0
    %4441 = vmatprep.mubr.bf16.mxu0 0
    %4442 = vmatmul.mubr.bf16.gmra.mrb[0].mxu0 %v4293
    %v4443 = vpop.f32.mrb[0].mxu0
    %v4444 = vadd.f32 0.0, %v4443
    %v4445 = vpop.f32.mrb[0].mxu0
    %v4446 = vpop.f32.mrb[0].mxu0
    %v4447 = vadd.f32 0.0, %v4446
    %v4448 = vpop.f32.mrb[0].mxu0
    %4449 = vmatprep.mubr.bf16.mxu0 0
    %4450 = vmatmul.mubr.bf16.gmra.mrb[0].mxu0 %v4294
    %v4451 = vpop.f32.mrb[0].mxu0
    %v4452 = vadd.f32 0.0, %v4451
    %v4453 = vpop.f32.mrb[0].mxu0
    %v4454 = vpop.f32.mrb[0].mxu0
    %v4455 = vadd.f32 0.0, %v4454
    %v4456 = vpop.f32.mrb[0].mxu0
    %4457 = vmatprep.mubr.bf16.mxu0 0
    %4458 = vmatmul.mubr.bf16.gmra.mrb[0].mxu0 %v4295
    %v4459 = vpop.f32.mrb[0].mxu0
    %v4460 = vadd.f32 0.0, %v4459
    %v4461 = vpop.f32.mrb[0].mxu0
    %v4462 = vpop.f32.mrb[0].mxu0
    %v4463 = vadd.f32 0.0, %v4462
    %v4464 = vpop.f32.mrb[0].mxu0
    %4465 = vmatprep.mubr.bf16.mxu0 0
    %4466 = vmatmul.mubr.bf16.gmra.mrb[0].mxu0 %v4296
    %v4467 = vpop.f32.mrb[0].mxu0
    %v4468 = vadd.f32 0.0, %v4467
    %v4469 = vpop.f32.mrb[0].mxu0
    %v4470 = vpop.f32.mrb[0].mxu0
    %v4471 = vadd.f32 0.0, %v4470
    %v4472 = vpop.f32.mrb[0].mxu0
    %4473 = vmatprep.mubr.bf16.mxu0 0
    %4474 = vmatmul.mubr.bf16.gmra.mrb[0].mxu0 %v4297
    %v4475 = vpop.f32.mrb[0].mxu0
    %v4476 = vadd.f32 0.0, %v4475
    %v4477 = vpop.f32.mrb[0].mxu0
    %v4478 = vpop.f32.mrb[0].mxu0
    %v4479 = vadd.f32 0.0, %v4478
    %v4480 = vpop.f32.mrb[0].mxu0
    %4481 = vmatprep.mubr.bf16.mxu0 0
    %4482 = vmatmul.mubr.bf16.gmra.mrb[0].mxu0 %v4298
    %v4483 = vpop.f32.mrb[0].mxu0
    %v4484 = vadd.f32 0.0, %v4483
    %v4485 = vpop.f32.mrb[0].mxu0
    %v4486 = vpop.f32.mrb[0].mxu0
    %v4487 = vadd.f32 0.0, %v4486
    %v4488 = vpop.f32.mrb[0].mxu0
    %4489 = vmatprep.mubr.bf16.mxu0 0
    %4490 = vmatmul.mubr.bf16.gmra.mrb[0].mxu0 %v4299
    %v4491 = vpop.f32.mrb[0].mxu0
    %v4492 = vadd.f32 0.0, %v4491
    %v4493 = vpop.f32.mrb[0].mxu0
    %v4494 = vpop.f32.mrb[0].mxu0
    %v4495 = vadd.f32 0.0, %v4494
    %v4496 = vpop.f32.mrb[0].mxu0
    %4497 = vmatprep.mubr.bf16.mxu0 0
    %4498 = vmatmul.mubr.bf16.gmra.mrb[0].mxu0 %v4300
    %v4499 = vpop.f32.mrb[0].mxu0
    %v4500 = vadd.f32 0.0, %v4499
    %v4501 = vpop.f32.mrb[0].mxu0
    %v4502 = vpop.f32.mrb[0].mxu0
    %v4503 = vadd.f32 0.0, %v4502
    %v4504 = vpop.f32.mrb[0].mxu0
    %4505 = vmatprep.mubr.bf16.mxu0 0
    %4506 = vmatmul.mubr.bf16.gmra.mrb[0].mxu0 %v4301
    %v4507 = vpop.f32.mrb[0].mxu0
    %v4508 = vadd.f32 0.0, %v4507
    %v4509 = vpop.f32.mrb[0].mxu0
    %v4510 = vpop.f32.mrb[0].mxu0
    %v4511 = vadd.f32 0.0, %v4510
    %v4512 = vpop.f32.mrb[0].mxu0
    %4513 = vmatprep.mubr.bf16.mxu0 0
    %4514 = vmatmul.mubr.bf16.gmra.mrb[0].mxu0 %v4302
    %v4515 = vpop.f32.mrb[0].mxu0
    %v4516 = vadd.f32 0.0, %v4515
    %v4517 = vpop.f32.mrb[0].mxu0
    %v4518 = vpop.f32.mrb[0].mxu0
    %v4519 = vadd.f32 0.0, %v4518
    %v4520 = vpop.f32.mrb[0].mxu0
    %4521 = vmatprep.mubr.bf16.mxu0 0
    %4522 = vmatmul.mubr.bf16.gmra.mrb[0].mxu0 %v4303
    %v4523 = vpop.f32.mrb[0].mxu0
    %v4524 = vadd.f32 0.0, %v4523
    %v4525 = vpop.f32.mrb[0].mxu0
    %v4526 = vpop.f32.mrb[0].mxu0
    %v4527 = vadd.f32 0.0, %v4526
    %v4528 = vpop.f32.mrb[0].mxu0
    %4529 = vdwg.mxu0
    %v4530 = vadd.f32 %v4224, %v4404
    %v4531 = vadd.f32 %v4225, %v4407
    %v4532 = vadd.f32 %v4226, %v4412
    %v4533 = vadd.f32 %v4227, %v4415
    %v4534 = vadd.f32 %v4228, %v4420
    %v4535 = vadd.f32 %v4229, %v4423
    %v4536 = vadd.f32 %v4230, %v4428
    %v4537 = vadd.f32 %v4231, %v4431
    %v4538 = vadd.f32 %v4232, %v4436
    %v4539 = vadd.f32 %v4233, %v4439
    %v4540 = vadd.f32 %v4234, %v4444
    %v4541 = vadd.f32 %v4235, %v4447
    %v4542 = vadd.f32 %v4236, %v4452
    %v4543 = vadd.f32 %v4237, %v4455
    %v4544 = vadd.f32 %v4238, %v4460
    %v4545 = vadd.f32 %v4239, %v4463
    %v4546 = vadd.f32 %v4240, %v4468
    %v4547 = vadd.f32 %v4241, %v4471
    %v4548 = vadd.f32 %v4242, %v4476
    %v4549 = vadd.f32 %v4243, %v4479
    %v4550 = vadd.f32 %v4244, %v4484
    %v4551 = vadd.f32 %v4245, %v4487
    %v4552 = vadd.f32 %v4246, %v4492
    %v4553 = vadd.f32 %v4247, %v4495
    %v4554 = vadd.f32 %v4248, %v4500
    %v4555 = vadd.f32 %v4249, %v4503
    %v4556 = vadd.f32 %v4250, %v4508
    %v4557 = vadd.f32 %v4251, %v4511
    %v4558 = vadd.f32 %v4252, %v4516
    %v4559 = vadd.f32 %v4253, %v4519
    %v4560 = vadd.f32 %v4254, %v4524
    %v4561 = vadd.f32 %v4255, %v4527
    %v4562 = vld [vmem:[#allocation2 + $0x5] sm:$0xff]
    %v4563 = vld [vmem:[#allocation2 + $0xd] sm:$0xff]
    %v4564 = vld [vmem:[#allocation2 + $0x15] sm:$0xff]
    %v4565 = vld [vmem:[#allocation2 + $0x1d] sm:$0xff]
    %v4566 = vld [vmem:[#allocation2 + $0x25] sm:$0xff]
    %v4567 = vld [vmem:[#allocation2 + $0x2d] sm:$0xff]
    %v4568 = vld [vmem:[#allocation2 + $0x35] sm:$0xff]
    %v4569 = vld [vmem:[#allocation2 + $0x3d] sm:$0xff]
    %v4570 = vld [vmem:[#allocation2 + $0x45] sm:$0xff]
    %v4571 = vld [vmem:[#allocation2 + $0x4d] sm:$0xff]
    %v4572 = vld [vmem:[#allocation2 + $0x55] sm:$0xff]
    %v4573 = vld [vmem:[#allocation2 + $0x5d] sm:$0xff]
    %v4574 = vld [vmem:[#allocation2 + $0x65] sm:$0xff]
    %v4575 = vld [vmem:[#allocation2 + $0x6d] sm:$0xff]
    %v4576 = vld [vmem:[#allocation2 + $0x75] sm:$0xff]
    %v4577 = vld [vmem:[#allocation2 + $0x7d] sm:$0xff]
    %v4578 = vld [vmem:[#allocation2 + $0x85] sm:$0xff]
    %v4579 = vld [vmem:[#allocation2 + $0x8d] sm:$0xff]
    %v4580 = vld [vmem:[#allocation2 + $0x95] sm:$0xff]
    %v4581 = vld [vmem:[#allocation2 + $0x9d] sm:$0xff]
    %v4582 = vld [vmem:[#allocation2 + $0xa5] sm:$0xff]
    %v4583 = vld [vmem:[#allocation2 + $0xad] sm:$0xff]
    %v4584 = vld [vmem:[#allocation2 + $0xb5] sm:$0xff]
    %v4585 = vld [vmem:[#allocation2 + $0xbd] sm:$0xff]
    %v4586 = vld [vmem:[#allocation2 + $0xc5] sm:$0xff]
    %v4587 = vld [vmem:[#allocation2 + $0xcd] sm:$0xff]
    %v4588 = vld [vmem:[#allocation2 + $0xd5] sm:$0xff]
    %v4589 = vld [vmem:[#allocation2 + $0xdd] sm:$0xff]
    %v4590 = vld [vmem:[#allocation2 + $0xe5] sm:$0xff]
    %v4591 = vld [vmem:[#allocation2 + $0xed] sm:$0xff]
    %v4592 = vld [vmem:[#allocation2 + $0xf5] sm:$0xff]
    %v4593 = vld [vmem:[#allocation2 + $0xfd] sm:$0xff]
    %v4594 = vpack.c.bf16 %v4563, %v4562
    %v4595 = vpack.c.bf16 %v4565, %v4564
    %v4596 = vpack.c.bf16 %v4567, %v4566
    %v4597 = vpack.c.bf16 %v4569, %v4568
    %v4598 = vpack.c.bf16 %v4571, %v4570
    %v4599 = vpack.c.bf16 %v4573, %v4572
    %v4600 = vpack.c.bf16 %v4575, %v4574
    %v4601 = vpack.c.bf16 %v4577, %v4576
    %v4602 = vpack.c.bf16 %v4579, %v4578
    %v4603 = vpack.c.bf16 %v4581, %v4580
    %v4604 = vpack.c.bf16 %v4583, %v4582
    %v4605 = vpack.c.bf16 %v4585, %v4584
    %v4606 = vpack.c.bf16 %v4587, %v4586
    %v4607 = vpack.c.bf16 %v4589, %v4588
    %v4608 = vpack.c.bf16 %v4591, %v4590
    %v4609 = vpack.c.bf16 %v4593, %v4592
    %s4610 = scalar_lea.vmem [#allocation9], 320
    %v4611 = vld [vmem:[%s4610] sm:$0xf]
    %v4612 = vld [vmem:[%s4610 + $0x4] sm:$0xf]
    %v4613 = vld [vmem:[%s4610 + $0x8] sm:$0xf]
    %v4614 = vld [vmem:[%s4610 + $0xc] sm:$0xf]
    %v4615 = vld [vmem:[%s4610 + $0x10] sm:$0xf]
    %v4616 = vld [vmem:[%s4610 + $0x14] sm:$0xf]
    %v4617 = vld [vmem:[%s4610 + $0x18] sm:$0xf]
    %v4618 = vld [vmem:[%s4610 + $0x1c] sm:$0xf]
    %v4619 = vld [vmem:[%s4610 + $0x20] sm:$0xf]
    %v4620 = vld [vmem:[%s4610 + $0x24] sm:$0xf]
    %v4621 = vld [vmem:[%s4610 + $0x28] sm:$0xf]
    %v4622 = vld [vmem:[%s4610 + $0x2c] sm:$0xf]
    %v4623 = vld [vmem:[%s4610 + $0x30] sm:$0xf]
    %v4624 = vld [vmem:[%s4610 + $0x34] sm:$0xf]
    %v4625 = vld [vmem:[%s4610 + $0x38] sm:$0xf]
    %v4626 = vld [vmem:[%s4610 + $0x3c] sm:$0xf]
    %v4643 = vunpack.c.l.b16 %v4611
    %v4644 = vunpack.c.l.b16 %v4612
    %v4645 = vunpack.c.l.b16 %v4613
    %v4646 = vunpack.c.l.b16 %v4614
    %v4647 = vunpack.c.l.b16 %v4615
    %v4648 = vunpack.c.l.b16 %v4616
    %v4649 = vunpack.c.l.b16 %v4617
    %v4650 = vunpack.c.l.b16 %v4618
    %v4651 = vunpack.c.l.b16 %v4619
    %v4652 = vunpack.c.l.b16 %v4620
    %v4653 = vunpack.c.l.b16 %v4621
    %v4654 = vunpack.c.l.b16 %v4622
    %v4655 = vunpack.c.l.b16 %v4623
    %v4656 = vunpack.c.l.b16 %v4624
    %v4657 = vunpack.c.l.b16 %v4625
    %v4658 = vunpack.c.l.b16 %v4626
    %v4659 = vpack.c.b16 %v4644, %v4643
    %v4660 = vpack.c.b16 %v4646, %v4645
    %v4661 = vpack.c.b16 %v4648, %v4647
    %v4662 = vpack.c.b16 %v4650, %v4649
    %v4663 = vpack.c.b16 %v4652, %v4651
    %v4664 = vpack.c.b16 %v4654, %v4653
    %v4665 = vpack.c.b16 %v4656, %v4655
    %v4666 = vpack.c.b16 %v4658, %v4657
    %4675 = vmatprep.subr.bf16.mxu0 0
    %4676 = vmatpush1.bf16.msra.mxu0 %v4659
    %4677 = vmatprep.subr.bf16.mxu0 0
    %4678 = vmatpush1.bf16.msra.mxu0 %v4660
    %4679 = vmatprep.subr.bf16.mxu0 0
    %4680 = vmatpush1.bf16.msra.mxu0 %v4661
    %4681 = vmatprep.subr.bf16.mxu0 0
    %4682 = vmatpush1.bf16.msra.mxu0 %v4662
    %4683 = vmatprep.subr.bf16.mxu0 0
    %4684 = vmatpush1.bf16.msra.mxu0 %v4663
    %4685 = vmatprep.subr.bf16.mxu0 0
    %4686 = vmatpush1.bf16.msra.mxu0 %v4664
    %4687 = vmatprep.subr.bf16.mxu0 0
    %4688 = vmatpush1.bf16.msra.mxu0 %v4665
    %4689 = vmatprep.subr.bf16.mxu0 0
    %4690 = vmatpush1.bf16.msra.mxu0 %v4666
    %4691 = vmatprep.subr.bf16.mxu0 0
    %4692 = vmatpush1.bf16.msra.mxu0 0
    %4693 = vmatprep.subr.bf16.mxu0 0
    %4694 = vmatpush1.bf16.msra.mxu0 0
    %4695 = vmatprep.subr.bf16.mxu0 0
    %4696 = vmatpush1.bf16.msra.mxu0 0
    %4697 = vmatprep.subr.bf16.mxu0 0
    %4698 = vmatpush1.bf16.msra.mxu0 0
    %4699 = vmatprep.subr.bf16.mxu0 0
    %4700 = vmatpush1.bf16.msra.mxu0 0
    %4701 = vmatprep.subr.bf16.mxu0 0
    %4702 = vmatpush1.bf16.msra.mxu0 0
    %4703 = vmatprep.subr.bf16.mxu0 0
    %4704 = vmatpush1.bf16.msra.mxu0 0
    %4705 = vmatprep.subr.bf16.mxu0 0
    %4706 = vmatpush1.bf16.msra.mxu0 0
    %4707 = vmatprep.mubr.bf16.mxu0 0
    %4708 = vmatmul.mubr.bf16.gmra.mrb[0].mxu0 %v4594
    %v4709 = vpop.f32.mrb[0].mxu0
    %v4710 = vadd.f32 0.0, %v4709
    %v4711 = vpop.f32.mrb[0].mxu0
    %v4712 = vpop.f32.mrb[0].mxu0
    %v4713 = vadd.f32 0.0, %v4712
    %v4714 = vpop.f32.mrb[0].mxu0
    %4715 = vmatprep.mubr.bf16.mxu0 0
    %4716 = vmatmul.mubr.bf16.gmra.mrb[0].mxu0 %v4595
    %v4717 = vpop.f32.mrb[0].mxu0
    %v4718 = vadd.f32 0.0, %v4717
    %v4719 = vpop.f32.mrb[0].mxu0
    %v4720 = vpop.f32.mrb[0].mxu0
    %v4721 = vadd.f32 0.0, %v4720
    %v4722 = vpop.f32.mrb[0].mxu0
    %4723 = vmatprep.mubr.bf16.mxu0 0
    %4724 = vmatmul.mubr.bf16.gmra.mrb[0].mxu0 %v4596
    %v4725 = vpop.f32.mrb[0].mxu0
    %v4726 = vadd.f32 0.0, %v4725
    %v4727 = vpop.f32.mrb[0].mxu0
    %v4728 = vpop.f32.mrb[0].mxu0
    %v4729 = vadd.f32 0.0, %v4728
    %v4730 = vpop.f32.mrb[0].mxu0
    %4731 = vmatprep.mubr.bf16.mxu0 0
    %4732 = vmatmul.mubr.bf16.gmra.mrb[0].mxu0 %v4597
    %v4733 = vpop.f32.mrb[0].mxu0
    %v4734 = vadd.f32 0.0, %v4733
    %v4735 = vpop.f32.mrb[0].mxu0
    %v4736 = vpop.f32.mrb[0].mxu0
    %v4737 = vadd.f32 0.0, %v4736
    %v4738 = vpop.f32.mrb[0].mxu0
    %4739 = vmatprep.mubr.bf16.mxu0 0
    %4740 = vmatmul.mubr.bf16.gmra.mrb[0].mxu0 %v4598
    %v4741 = vpop.f32.mrb[0].mxu0
    %v4742 = vadd.f32 0.0, %v4741
    %v4743 = vpop.f32.mrb[0].mxu0
    %v4744 = vpop.f32.mrb[0].mxu0
    %v4745 = vadd.f32 0.0, %v4744
    %v4746 = vpop.f32.mrb[0].mxu0
    %4747 = vmatprep.mubr.bf16.mxu0 0
    %4748 = vmatmul.mubr.bf16.gmra.mrb[0].mxu0 %v4599
    %v4749 = vpop.f32.mrb[0].mxu0
    %v4750 = vadd.f32 0.0, %v4749
    %v4751 = vpop.f32.mrb[0].mxu0
    %v4752 = vpop.f32.mrb[0].mxu0
    %v4753 = vadd.f32 0.0, %v4752
    %v4754 = vpop.f32.mrb[0].mxu0
    %4755 = vmatprep.mubr.bf16.mxu0 0
    %4756 = vmatmul.mubr.bf16.gmra.mrb[0].mxu0 %v4600
    %v4757 = vpop.f32.mrb[0].mxu0
    %v4758 = vadd.f32 0.0, %v4757
    %v4759 = vpop.f32.mrb[0].mxu0
    %v4760 = vpop.f32.mrb[0].mxu0
    %v4761 = vadd.f32 0.0, %v4760
    %v4762 = vpop.f32.mrb[0].mxu0
    %4763 = vmatprep.mubr.bf16.mxu0 0
    %4764 = vmatmul.mubr.bf16.gmra.mrb[0].mxu0 %v4601
    %v4765 = vpop.f32.mrb[0].mxu0
    %v4766 = vadd.f32 0.0, %v4765
    %v4767 = vpop.f32.mrb[0].mxu0
    %v4768 = vpop.f32.mrb[0].mxu0
    %v4769 = vadd.f32 0.0, %v4768
    %v4770 = vpop.f32.mrb[0].mxu0
    %4771 = vmatprep.mubr.bf16.mxu0 0
    %4772 = vmatmul.mubr.bf16.gmra.mrb[0].mxu0 %v4602
    %v4773 = vpop.f32.mrb[0].mxu0
    %v4774 = vadd.f32 0.0, %v4773
    %v4775 = vpop.f32.mrb[0].mxu0
    %v4776 = vpop.f32.mrb[0].mxu0
    %v4777 = vadd.f32 0.0, %v4776
    %v4778 = vpop.f32.mrb[0].mxu0
    %4779 = vmatprep.mubr.bf16.mxu0 0
    %4780 = vmatmul.mubr.bf16.gmra.mrb[0].mxu0 %v4603
    %v4781 = vpop.f32.mrb[0].mxu0
    %v4782 = vadd.f32 0.0, %v4781
    %v4783 = vpop.f32.mrb[0].mxu0
    %v4784 = vpop.f32.mrb[0].mxu0
    %v4785 = vadd.f32 0.0, %v4784
    %v4786 = vpop.f32.mrb[0].mxu0
    %4787 = vmatprep.mubr.bf16.mxu0 0
    %4788 = vmatmul.mubr.bf16.gmra.mrb[0].mxu0 %v4604
    %v4789 = vpop.f32.mrb[0].mxu0
    %v4790 = vadd.f32 0.0, %v4789
    %v4791 = vpop.f32.mrb[0].mxu0
    %v4792 = vpop.f32.mrb[0].mxu0
    %v4793 = vadd.f32 0.0, %v4792
    %v4794 = vpop.f32.mrb[0].mxu0
    %4795 = vmatprep.mubr.bf16.mxu0 0
    %4796 = vmatmul.mubr.bf16.gmra.mrb[0].mxu0 %v4605
    %v4797 = vpop.f32.mrb[0].mxu0
    %v4798 = vadd.f32 0.0, %v4797
    %v4799 = vpop.f32.mrb[0].mxu0
    %v4800 = vpop.f32.mrb[0].mxu0
    %v4801 = vadd.f32 0.0, %v4800
    %v4802 = vpop.f32.mrb[0].mxu0
    %4803 = vmatprep.mubr.bf16.mxu0 0
    %4804 = vmatmul.mubr.bf16.gmra.mrb[0].mxu0 %v4606
    %v4805 = vpop.f32.mrb[0].mxu0
    %v4806 = vadd.f32 0.0, %v4805
    %v4807 = vpop.f32.mrb[0].mxu0
    %v4808 = vpop.f32.mrb[0].mxu0
    %v4809 = vadd.f32 0.0, %v4808
    %v4810 = vpop.f32.mrb[0].mxu0
    %4811 = vmatprep.mubr.bf16.mxu0 0
    %4812 = vmatmul.mubr.bf16.gmra.mrb[0].mxu0 %v4607
    %v4813 = vpop.f32.mrb[0].mxu0
    %v4814 = vadd.f32 0.0, %v4813
    %v4815 = vpop.f32.mrb[0].mxu0
    %v4816 = vpop.f32.mrb[0].mxu0
    %v4817 = vadd.f32 0.0, %v4816
    %v4818 = vpop.f32.mrb[0].mxu0
    %4819 = vmatprep.mubr.bf16.mxu0 0
    %4820 = vmatmul.mubr.bf16.gmra.mrb[0].mxu0 %v4608
    %v4821 = vpop.f32.mrb[0].mxu0
    %v4822 = vadd.f32 0.0, %v4821
    %v4823 = vpop.f32.mrb[0].mxu0
    %v4824 = vpop.f32.mrb[0].mxu0
    %v4825 = vadd.f32 0.0, %v4824
    %v4826 = vpop.f32.mrb[0].mxu0
    %4827 = vmatprep.mubr.bf16.mxu0 0
    %4828 = vmatmul.mubr.bf16.gmra.mrb[0].mxu0 %v4609
    %v4829 = vpop.f32.mrb[0].mxu0
    %v4830 = vadd.f32 0.0, %v4829
    %v4831 = vpop.f32.mrb[0].mxu0
    %v4832 = vpop.f32.mrb[0].mxu0
    %v4833 = vadd.f32 0.0, %v4832
    %v4834 = vpop.f32.mrb[0].mxu0
    %4835 = vdwg.mxu0
    %v4836 = vadd.f32 %v4530, %v4710
    %v4837 = vadd.f32 %v4531, %v4713
    %v4838 = vadd.f32 %v4532, %v4718
    %v4839 = vadd.f32 %v4533, %v4721
    %v4840 = vadd.f32 %v4534, %v4726
    %v4841 = vadd.f32 %v4535, %v4729
    %v4842 = vadd.f32 %v4536, %v4734
    %v4843 = vadd.f32 %v4537, %v4737
    %v4844 = vadd.f32 %v4538, %v4742
    %v4845 = vadd.f32 %v4539, %v4745
    %v4846 = vadd.f32 %v4540, %v4750
    %v4847 = vadd.f32 %v4541, %v4753
    %v4848 = vadd.f32 %v4542, %v4758
    %v4849 = vadd.f32 %v4543, %v4761
    %v4850 = vadd.f32 %v4544, %v4766
    %v4851 = vadd.f32 %v4545, %v4769
    %v4852 = vadd.f32 %v4546, %v4774
    %v4853 = vadd.f32 %v4547, %v4777
    %v4854 = vadd.f32 %v4548, %v4782
    %v4855 = vadd.f32 %v4549, %v4785
    %v4856 = vadd.f32 %v4550, %v4790
    %v4857 = vadd.f32 %v4551, %v4793
    %v4858 = vadd.f32 %v4552, %v4798
    %v4859 = vadd.f32 %v4553, %v4801
    %v4860 = vadd.f32 %v4554, %v4806
    %v4861 = vadd.f32 %v4555, %v4809
    %v4862 = vadd.f32 %v4556, %v4814
    %v4863 = vadd.f32 %v4557, %v4817
    %v4864 = vadd.f32 %v4558, %v4822
    %v4865 = vadd.f32 %v4559, %v4825
    %v4866 = vadd.f32 %v4560, %v4830
    %v4867 = vadd.f32 %v4561, %v4833
    %v4868 = vld [vmem:[#allocation2 + $0x6] sm:$0xff]
    %v4869 = vld [vmem:[#allocation2 + $0xe] sm:$0xff]
    %v4870 = vld [vmem:[#allocation2 + $0x16] sm:$0xff]
    %v4871 = vld [vmem:[#allocation2 + $0x1e] sm:$0xff]
    %v4872 = vld [vmem:[#allocation2 + $0x26] sm:$0xff]
    %v4873 = vld [vmem:[#allocation2 + $0x2e] sm:$0xff]
    %v4874 = vld [vmem:[#allocation2 + $0x36] sm:$0xff]
    %v4875 = vld [vmem:[#allocation2 + $0x3e] sm:$0xff]
    %v4876 = vld [vmem:[#allocation2 + $0x46] sm:$0xff]
    %v4877 = vld [vmem:[#allocation2 + $0x4e] sm:$0xff]
    %v4878 = vld [vmem:[#allocation2 + $0x56] sm:$0xff]
    %v4879 = vld [vmem:[#allocation2 + $0x5e] sm:$0xff]
    %v4880 = vld [vmem:[#allocation2 + $0x66] sm:$0xff]
    %v4881 = vld [vmem:[#allocation2 + $0x6e] sm:$0xff]
    %v4882 = vld [vmem:[#allocation2 + $0x76] sm:$0xff]
    %v4883 = vld [vmem:[#allocation2 + $0x7e] sm:$0xff]
    %v4884 = vld [vmem:[#allocation2 + $0x86] sm:$0xff]
    %v4885 = vld [vmem:[#allocation2 + $0x8e] sm:$0xff]
    %v4886 = vld [vmem:[#allocation2 + $0x96] sm:$0xff]
    %v4887 = vld [vmem:[#allocation2 + $0x9e] sm:$0xff]
    %v4888 = vld [vmem:[#allocation2 + $0xa6] sm:$0xff]
    %v4889 = vld [vmem:[#allocation2 + $0xae] sm:$0xff]
    %v4890 = vld [vmem:[#allocation2 + $0xb6] sm:$0xff]
    %v4891 = vld [vmem:[#allocation2 + $0xbe] sm:$0xff]
    %v4892 = vld [vmem:[#allocation2 + $0xc6] sm:$0xff]
    %v4893 = vld [vmem:[#allocation2 + $0xce] sm:$0xff]
    %v4894 = vld [vmem:[#allocation2 + $0xd6] sm:$0xff]
    %v4895 = vld [vmem:[#allocation2 + $0xde] sm:$0xff]
    %v4896 = vld [vmem:[#allocation2 + $0xe6] sm:$0xff]
    %v4897 = vld [vmem:[#allocation2 + $0xee] sm:$0xff]
    %v4898 = vld [vmem:[#allocation2 + $0xf6] sm:$0xff]
    %v4899 = vld [vmem:[#allocation2 + $0xfe] sm:$0xff]
    %v4900 = vpack.c.bf16 %v4869, %v4868
    %v4901 = vpack.c.bf16 %v4871, %v4870
    %v4902 = vpack.c.bf16 %v4873, %v4872
    %v4903 = vpack.c.bf16 %v4875, %v4874
    %v4904 = vpack.c.bf16 %v4877, %v4876
    %v4905 = vpack.c.bf16 %v4879, %v4878
    %v4906 = vpack.c.bf16 %v4881, %v4880
    %v4907 = vpack.c.bf16 %v4883, %v4882
    %v4908 = vpack.c.bf16 %v4885, %v4884
    %v4909 = vpack.c.bf16 %v4887, %v4886
    %v4910 = vpack.c.bf16 %v4889, %v4888
    %v4911 = vpack.c.bf16 %v4891, %v4890
    %v4912 = vpack.c.bf16 %v4893, %v4892
    %v4913 = vpack.c.bf16 %v4895, %v4894
    %v4914 = vpack.c.bf16 %v4897, %v4896
    %v4915 = vpack.c.bf16 %v4899, %v4898
    %s4916 = scalar_lea.vmem [#allocation9], 384
    %v4917 = vld [vmem:[%s4916] sm:$0xf]
    %v4918 = vld [vmem:[%s4916 + $0x4] sm:$0xf]
    %v4919 = vld [vmem:[%s4916 + $0x8] sm:$0xf]
    %v4920 = vld [vmem:[%s4916 + $0xc] sm:$0xf]
    %v4921 = vld [vmem:[%s4916 + $0x10] sm:$0xf]
    %v4922 = vld [vmem:[%s4916 + $0x14] sm:$0xf]
    %v4923 = vld [vmem:[%s4916 + $0x18] sm:$0xf]
    %v4924 = vld [vmem:[%s4916 + $0x1c] sm:$0xf]
    %v4925 = vld [vmem:[%s4916 + $0x20] sm:$0xf]
    %v4926 = vld [vmem:[%s4916 + $0x24] sm:$0xf]
    %v4927 = vld [vmem:[%s4916 + $0x28] sm:$0xf]
    %v4928 = vld [vmem:[%s4916 + $0x2c] sm:$0xf]
    %v4929 = vld [vmem:[%s4916 + $0x30] sm:$0xf]
    %v4930 = vld [vmem:[%s4916 + $0x34] sm:$0xf]
    %v4931 = vld [vmem:[%s4916 + $0x38] sm:$0xf]
    %v4932 = vld [vmem:[%s4916 + $0x3c] sm:$0xf]
    %v4949 = vunpack.c.l.b16 %v4917
    %v4950 = vunpack.c.l.b16 %v4918
    %v4951 = vunpack.c.l.b16 %v4919
    %v4952 = vunpack.c.l.b16 %v4920
    %v4953 = vunpack.c.l.b16 %v4921
    %v4954 = vunpack.c.l.b16 %v4922
    %v4955 = vunpack.c.l.b16 %v4923
    %v4956 = vunpack.c.l.b16 %v4924
    %v4957 = vunpack.c.l.b16 %v4925
    %v4958 = vunpack.c.l.b16 %v4926
    %v4959 = vunpack.c.l.b16 %v4927
    %v4960 = vunpack.c.l.b16 %v4928
    %v4961 = vunpack.c.l.b16 %v4929
    %v4962 = vunpack.c.l.b16 %v4930
    %v4963 = vunpack.c.l.b16 %v4931
    %v4964 = vunpack.c.l.b16 %v4932
    %v4965 = vpack.c.b16 %v4950, %v4949
    %v4966 = vpack.c.b16 %v4952, %v4951
    %v4967 = vpack.c.b16 %v4954, %v4953
    %v4968 = vpack.c.b16 %v4956, %v4955
    %v4969 = vpack.c.b16 %v4958, %v4957
    %v4970 = vpack.c.b16 %v4960, %v4959
    %v4971 = vpack.c.b16 %v4962, %v4961
    %v4972 = vpack.c.b16 %v4964, %v4963
    %4981 = vmatprep.subr.bf16.mxu0 0
    %4982 = vmatpush1.bf16.msra.mxu0 %v4965
    %4983 = vmatprep.subr.bf16.mxu0 0
    %4984 = vmatpush1.bf16.msra.mxu0 %v4966
    %4985 = vmatprep.subr.bf16.mxu0 0
    %4986 = vmatpush1.bf16.msra.mxu0 %v4967
    %4987 = vmatprep.subr.bf16.mxu0 0
    %4988 = vmatpush1.bf16.msra.mxu0 %v4968
    %4989 = vmatprep.subr.bf16.mxu0 0
    %4990 = vmatpush1.bf16.msra.mxu0 %v4969
    %4991 = vmatprep.subr.bf16.mxu0 0
    %4992 = vmatpush1.bf16.msra.mxu0 %v4970
    %4993 = vmatprep.subr.bf16.mxu0 0
    %4994 = vmatpush1.bf16.msra.mxu0 %v4971
    %4995 = vmatprep.subr.bf16.mxu0 0
    %4996 = vmatpush1.bf16.msra.mxu0 %v4972
    %4997 = vmatprep.subr.bf16.mxu0 0
    %4998 = vmatpush1.bf16.msra.mxu0 0
    %4999 = vmatprep.subr.bf16.mxu0 0
    %5000 = vmatpush1.bf16.msra.mxu0 0
    %5001 = vmatprep.subr.bf16.mxu0 0
    %5002 = vmatpush1.bf16.msra.mxu0 0
    %5003 = vmatprep.subr.bf16.mxu0 0
    %5004 = vmatpush1.bf16.msra.mxu0 0
    %5005 = vmatprep.subr.bf16.mxu0 0
    %5006 = vmatpush1.bf16.msra.mxu0 0
    %5007 = vmatprep.subr.bf16.mxu0 0
    %5008 = vmatpush1.bf16.msra.mxu0 0
    %5009 = vmatprep.subr.bf16.mxu0 0
    %5010 = vmatpush1.bf16.msra.mxu0 0
    %5011 = vmatprep.subr.bf16.mxu0 0
    %5012 = vmatpush1.bf16.msra.mxu0 0
    %5013 = vmatprep.mubr.bf16.mxu0 0
    %5014 = vmatmul.mubr.bf16.gmra.mrb[0].mxu0 %v4900
    %v5015 = vpop.f32.mrb[0].mxu0
    %v5016 = vadd.f32 0.0, %v5015
    %v5017 = vpop.f32.mrb[0].mxu0
    %v5018 = vpop.f32.mrb[0].mxu0
    %v5019 = vadd.f32 0.0, %v5018
    %v5020 = vpop.f32.mrb[0].mxu0
    %5021 = vmatprep.mubr.bf16.mxu0 0
    %5022 = vmatmul.mubr.bf16.gmra.mrb[0].mxu0 %v4901
    %v5023 = vpop.f32.mrb[0].mxu0
    %v5024 = vadd.f32 0.0, %v5023
    %v5025 = vpop.f32.mrb[0].mxu0
    %v5026 = vpop.f32.mrb[0].mxu0
    %v5027 = vadd.f32 0.0, %v5026
    %v5028 = vpop.f32.mrb[0].mxu0
    %5029 = vmatprep.mubr.bf16.mxu0 0
    %5030 = vmatmul.mubr.bf16.gmra.mrb[0].mxu0 %v4902
    %v5031 = vpop.f32.mrb[0].mxu0
    %v5032 = vadd.f32 0.0, %v5031
    %v5033 = vpop.f32.mrb[0].mxu0
    %v5034 = vpop.f32.mrb[0].mxu0
    %v5035 = vadd.f32 0.0, %v5034
    %v5036 = vpop.f32.mrb[0].mxu0
    %5037 = vmatprep.mubr.bf16.mxu0 0
    %5038 = vmatmul.mubr.bf16.gmra.mrb[0].mxu0 %v4903
    %v5039 = vpop.f32.mrb[0].mxu0
    %v5040 = vadd.f32 0.0, %v5039
    %v5041 = vpop.f32.mrb[0].mxu0
    %v5042 = vpop.f32.mrb[0].mxu0
    %v5043 = vadd.f32 0.0, %v5042
    %v5044 = vpop.f32.mrb[0].mxu0
    %5045 = vmatprep.mubr.bf16.mxu0 0
    %5046 = vmatmul.mubr.bf16.gmra.mrb[0].mxu0 %v4904
    %v5047 = vpop.f32.mrb[0].mxu0
    %v5048 = vadd.f32 0.0, %v5047
    %v5049 = vpop.f32.mrb[0].mxu0
    %v5050 = vpop.f32.mrb[0].mxu0
    %v5051 = vadd.f32 0.0, %v5050
    %v5052 = vpop.f32.mrb[0].mxu0
    %5053 = vmatprep.mubr.bf16.mxu0 0
    %5054 = vmatmul.mubr.bf16.gmra.mrb[0].mxu0 %v4905
    %v5055 = vpop.f32.mrb[0].mxu0
    %v5056 = vadd.f32 0.0, %v5055
    %v5057 = vpop.f32.mrb[0].mxu0
    %v5058 = vpop.f32.mrb[0].mxu0
    %v5059 = vadd.f32 0.0, %v5058
    %v5060 = vpop.f32.mrb[0].mxu0
    %5061 = vmatprep.mubr.bf16.mxu0 0
    %5062 = vmatmul.mubr.bf16.gmra.mrb[0].mxu0 %v4906
    %v5063 = vpop.f32.mrb[0].mxu0
    %v5064 = vadd.f32 0.0, %v5063
    %v5065 = vpop.f32.mrb[0].mxu0
    %v5066 = vpop.f32.mrb[0].mxu0
    %v5067 = vadd.f32 0.0, %v5066
    %v5068 = vpop.f32.mrb[0].mxu0
    %5069 = vmatprep.mubr.bf16.mxu0 0
    %5070 = vmatmul.mubr.bf16.gmra.mrb[0].mxu0 %v4907
    %v5071 = vpop.f32.mrb[0].mxu0
    %v5072 = vadd.f32 0.0, %v5071
    %v5073 = vpop.f32.mrb[0].mxu0
    %v5074 = vpop.f32.mrb[0].mxu0
    %v5075 = vadd.f32 0.0, %v5074
    %v5076 = vpop.f32.mrb[0].mxu0
    %5077 = vmatprep.mubr.bf16.mxu0 0
    %5078 = vmatmul.mubr.bf16.gmra.mrb[0].mxu0 %v4908
    %v5079 = vpop.f32.mrb[0].mxu0
    %v5080 = vadd.f32 0.0, %v5079
    %v5081 = vpop.f32.mrb[0].mxu0
    %v5082 = vpop.f32.mrb[0].mxu0
    %v5083 = vadd.f32 0.0, %v5082
    %v5084 = vpop.f32.mrb[0].mxu0
    %5085 = vmatprep.mubr.bf16.mxu0 0
    %5086 = vmatmul.mubr.bf16.gmra.mrb[0].mxu0 %v4909
    %v5087 = vpop.f32.mrb[0].mxu0
    %v5088 = vadd.f32 0.0, %v5087
    %v5089 = vpop.f32.mrb[0].mxu0
    %v5090 = vpop.f32.mrb[0].mxu0
    %v5091 = vadd.f32 0.0, %v5090
    %v5092 = vpop.f32.mrb[0].mxu0
    %5093 = vmatprep.mubr.bf16.mxu0 0
    %5094 = vmatmul.mubr.bf16.gmra.mrb[0].mxu0 %v4910
    %v5095 = vpop.f32.mrb[0].mxu0
    %v5096 = vadd.f32 0.0, %v5095
    %v5097 = vpop.f32.mrb[0].mxu0
    %v5098 = vpop.f32.mrb[0].mxu0
    %v5099 = vadd.f32 0.0, %v5098
    %v5100 = vpop.f32.mrb[0].mxu0
    %5101 = vmatprep.mubr.bf16.mxu0 0
    %5102 = vmatmul.mubr.bf16.gmra.mrb[0].mxu0 %v4911
    %v5103 = vpop.f32.mrb[0].mxu0
    %v5104 = vadd.f32 0.0, %v5103
    %v5105 = vpop.f32.mrb[0].mxu0
    %v5106 = vpop.f32.mrb[0].mxu0
    %v5107 = vadd.f32 0.0, %v5106
    %v5108 = vpop.f32.mrb[0].mxu0
    %5109 = vmatprep.mubr.bf16.mxu0 0
    %5110 = vmatmul.mubr.bf16.gmra.mrb[0].mxu0 %v4912
    %v5111 = vpop.f32.mrb[0].mxu0
    %v5112 = vadd.f32 0.0, %v5111
    %v5113 = vpop.f32.mrb[0].mxu0
    %v5114 = vpop.f32.mrb[0].mxu0
    %v5115 = vadd.f32 0.0, %v5114
    %v5116 = vpop.f32.mrb[0].mxu0
    %5117 = vmatprep.mubr.bf16.mxu0 0
    %5118 = vmatmul.mubr.bf16.gmra.mrb[0].mxu0 %v4913
    %v5119 = vpop.f32.mrb[0].mxu0
    %v5120 = vadd.f32 0.0, %v5119
    %v5121 = vpop.f32.mrb[0].mxu0
    %v5122 = vpop.f32.mrb[0].mxu0
    %v5123 = vadd.f32 0.0, %v5122
    %v5124 = vpop.f32.mrb[0].mxu0
    %5125 = vmatprep.mubr.bf16.mxu0 0
    %5126 = vmatmul.mubr.bf16.gmra.mrb[0].mxu0 %v4914
    %v5127 = vpop.f32.mrb[0].mxu0
    %v5128 = vadd.f32 0.0, %v5127
    %v5129 = vpop.f32.mrb[0].mxu0
    %v5130 = vpop.f32.mrb[0].mxu0
    %v5131 = vadd.f32 0.0, %v5130
    %v5132 = vpop.f32.mrb[0].mxu0
    %5133 = vmatprep.mubr.bf16.mxu0 0
    %5134 = vmatmul.mubr.bf16.gmra.mrb[0].mxu0 %v4915
    %v5135 = vpop.f32.mrb[0].mxu0
    %v5136 = vadd.f32 0.0, %v5135
    %v5137 = vpop.f32.mrb[0].mxu0
    %v5138 = vpop.f32.mrb[0].mxu0
    %v5139 = vadd.f32 0.0, %v5138
    %v5140 = vpop.f32.mrb[0].mxu0
    %5141 = vdwg.mxu0
    %v5142 = vadd.f32 %v4836, %v5016
    %v5143 = vadd.f32 %v4837, %v5019
    %v5144 = vadd.f32 %v4838, %v5024
    %v5145 = vadd.f32 %v4839, %v5027
    %v5146 = vadd.f32 %v4840, %v5032
    %v5147 = vadd.f32 %v4841, %v5035
    %v5148 = vadd.f32 %v4842, %v5040
    %v5149 = vadd.f32 %v4843, %v5043
    %v5150 = vadd.f32 %v4844, %v5048
    %v5151 = vadd.f32 %v4845, %v5051
    %v5152 = vadd.f32 %v4846, %v5056
    %v5153 = vadd.f32 %v4847, %v5059
    %v5154 = vadd.f32 %v4848, %v5064
    %v5155 = vadd.f32 %v4849, %v5067
    %v5156 = vadd.f32 %v4850, %v5072
    %v5157 = vadd.f32 %v4851, %v5075
    %v5158 = vadd.f32 %v4852, %v5080
    %v5159 = vadd.f32 %v4853, %v5083
    %v5160 = vadd.f32 %v4854, %v5088
    %v5161 = vadd.f32 %v4855, %v5091
    %v5162 = vadd.f32 %v4856, %v5096
    %v5163 = vadd.f32 %v4857, %v5099
    %v5164 = vadd.f32 %v4858, %v5104
    %v5165 = vadd.f32 %v4859, %v5107
    %v5166 = vadd.f32 %v4860, %v5112
    %v5167 = vadd.f32 %v4861, %v5115
    %v5168 = vadd.f32 %v4862, %v5120
    %v5169 = vadd.f32 %v4863, %v5123
    %v5170 = vadd.f32 %v4864, %v5128
    %v5171 = vadd.f32 %v4865, %v5131
    %v5172 = vadd.f32 %v4866, %v5136
    %v5173 = vadd.f32 %v4867, %v5139
    %v5174 = vld [vmem:[%s7] sm:$0x1]
    %v5176 = vlaneseq
    %v5177 = vshrl.u32 %v5176, 7
    %v5178 = vsub.s32 0, %v5177
    %v5179 = vrot.slane %v5174, %v5178
    %v5181 = vadd.f32 %v5142, %v5179
    %v5182 = vadd.f32 %v5143, %v5179
    %v5183 = vadd.f32 %v5144, %v5179
    %v5184 = vadd.f32 %v5145, %v5179
    %v5185 = vadd.f32 %v5146, %v5179
    %v5186 = vadd.f32 %v5147, %v5179
    %v5187 = vadd.f32 %v5148, %v5179
    %v5188 = vadd.f32 %v5149, %v5179
    %v5189 = vadd.f32 %v5150, %v5179
    %v5190 = vadd.f32 %v5151, %v5179
    %v5191 = vadd.f32 %v5152, %v5179
    %v5192 = vadd.f32 %v5153, %v5179
    %v5193 = vadd.f32 %v5154, %v5179
    %v5194 = vadd.f32 %v5155, %v5179
    %v5195 = vadd.f32 %v5156, %v5179
    %v5196 = vadd.f32 %v5157, %v5179
    %v5197 = vadd.f32 %v5158, %v5179
    %v5198 = vadd.f32 %v5159, %v5179
    %v5199 = vadd.f32 %v5160, %v5179
    %v5200 = vadd.f32 %v5161, %v5179
    %v5201 = vadd.f32 %v5162, %v5179
    %v5202 = vadd.f32 %v5163, %v5179
    %v5203 = vadd.f32 %v5164, %v5179
    %v5204 = vadd.f32 %v5165, %v5179
    %v5205 = vadd.f32 %v5166, %v5179
    %v5206 = vadd.f32 %v5167, %v5179
    %v5207 = vadd.f32 %v5168, %v5179
    %v5208 = vadd.f32 %v5169, %v5179
    %v5209 = vadd.f32 %v5170, %v5179
    %v5210 = vadd.f32 %v5171, %v5179
    %v5211 = vadd.f32 %v5172, %v5179
    %v5212 = vadd.f32 %v5173, %v5179
    %v5213 = vmax.f32 %v5181, 0.0
    %v5214 = vmax.f32 %v5182, 0.0
    %v5215 = vmax.f32 %v5183, 0.0
    %v5216 = vmax.f32 %v5184, 0.0
    %v5217 = vmax.f32 %v5185, 0.0
    %v5218 = vmax.f32 %v5186, 0.0
    %v5219 = vmax.f32 %v5187, 0.0
    %v5220 = vmax.f32 %v5188, 0.0
    %v5221 = vmax.f32 %v5189, 0.0
    %v5222 = vmax.f32 %v5190, 0.0
    %v5223 = vmax.f32 %v5191, 0.0
    %v5224 = vmax.f32 %v5192, 0.0
    %v5225 = vmax.f32 %v5193, 0.0
    %v5226 = vmax.f32 %v5194, 0.0
    %v5227 = vmax.f32 %v5195, 0.0
    %v5228 = vmax.f32 %v5196, 0.0
    %v5229 = vmax.f32 %v5197, 0.0
    %v5230 = vmax.f32 %v5198, 0.0
    %v5231 = vmax.f32 %v5199, 0.0
    %v5232 = vmax.f32 %v5200, 0.0
    %v5233 = vmax.f32 %v5201, 0.0
    %v5234 = vmax.f32 %v5202, 0.0
    %v5235 = vmax.f32 %v5203, 0.0
    %v5236 = vmax.f32 %v5204, 0.0
    %v5237 = vmax.f32 %v5205, 0.0
    %v5238 = vmax.f32 %v5206, 0.0
    %v5239 = vmax.f32 %v5207, 0.0
    %v5240 = vmax.f32 %v5208, 0.0
    %v5241 = vmax.f32 %v5209, 0.0
    %v5242 = vmax.f32 %v5210, 0.0
    %v5243 = vmax.f32 %v5211, 0.0
    %v5244 = vmax.f32 %v5212, 0.0
    %v5245 = vlaneseq
    %v5246 = vshrl.u32 %v5245, 7
    %v5247 = vadd.s32 %v5246, 8
    %v5248 = vadd.s32 %v5246, 16
    %v5249 = vadd.s32 %v5246, 24
    %vm5250 = vcmp.lt.s32.totalorder %v5246, 20
    %vm5251 = vcmp.lt.s32.totalorder %v5247, 20
    %vm5252 = vcmp.lt.s32.totalorder %v5248, 20
    %vm5253 = vcmp.lt.s32.totalorder %v5249, 20
    %v5254 = vsel %vm5250, %v5213, 0.0
    %v5255 = vsel %vm5251, %v5214, 0.0
    %v5256 = vsel %vm5252, %v5215, 0.0
    %v5257 = vsel %vm5253, %v5216, 0.0
    %v5258 = vsel %vm5250, %v5217, 0.0
    %v5259 = vsel %vm5251, %v5218, 0.0
    %v5260 = vsel %vm5252, %v5219, 0.0
    %v5261 = vsel %vm5253, %v5220, 0.0
    %v5262 = vsel %vm5250, %v5221, 0.0
    %v5263 = vsel %vm5251, %v5222, 0.0
    %v5264 = vsel %vm5252, %v5223, 0.0
    %v5265 = vsel %vm5253, %v5224, 0.0
    %v5266 = vsel %vm5250, %v5225, 0.0
    %v5267 = vsel %vm5251, %v5226, 0.0
    %v5268 = vsel %vm5252, %v5227, 0.0
    %v5269 = vsel %vm5253, %v5228, 0.0
    %v5270 = vsel %vm5250, %v5229, 0.0
    %v5271 = vsel %vm5251, %v5230, 0.0
    %v5272 = vsel %vm5252, %v5231, 0.0
    %v5273 = vsel %vm5253, %v5232, 0.0
    %v5274 = vsel %vm5250, %v5233, 0.0
    %v5275 = vsel %vm5251, %v5234, 0.0
    %v5276 = vsel %vm5252, %v5235, 0.0
    %v5277 = vsel %vm5253, %v5236, 0.0
    %v5278 = vsel %vm5250, %v5237, 0.0
    %v5279 = vsel %vm5251, %v5238, 0.0
    %v5280 = vsel %vm5252, %v5239, 0.0
    %v5281 = vsel %vm5253, %v5240, 0.0
    %v5282 = vsel %vm5250, %v5241, 0.0
    %v5283 = vsel %vm5251, %v5242, 0.0
    %v5284 = vsel %vm5252, %v5243, 0.0
    %v5285 = vsel %vm5253, %v5244, 0.0
    %v5286 = vmax.f32 %v5254, %v5255
    %v5287 = vmax.f32 %v5286, %v5256
    %v5288 = vmax.f32 %v5287, %v5257
    %v5289 = vrot.slane %v5288, 4
    %v5290 = vmax.f32 %v5288, %v5289
    %v5291 = vrot.slane %v5290, 2
    %v5292 = vmax.f32 %v5290, %v5291
    %v5293 = vrot.slane %v5292, 1
    %v5294 = vmax.f32 %v5292, %v5293
    %v5295 = vmax.f32 %v5258, %v5259
    %v5296 = vmax.f32 %v5295, %v5260
    %v5297 = vmax.f32 %v5296, %v5261
    %v5298 = vrot.slane %v5297, 4
    %v5299 = vmax.f32 %v5297, %v5298
    %v5300 = vrot.slane %v5299, 2
    %v5301 = vmax.f32 %v5299, %v5300
    %v5302 = vrot.slane %v5301, 1
    %v5303 = vmax.f32 %v5301, %v5302
    %v5304 = vmax.f32 %v5262, %v5263
    %v5305 = vmax.f32 %v5304, %v5264
    %v5306 = vmax.f32 %v5305, %v5265
    %v5307 = vrot.slane %v5306, 4
    %v5308 = vmax.f32 %v5306, %v5307
    %v5309 = vrot.slane %v5308, 2
    %v5310 = vmax.f32 %v5308, %v5309
    %v5311 = vrot.slane %v5310, 1
    %v5312 = vmax.f32 %v5310, %v5311
    %v5313 = vmax.f32 %v5266, %v5267
    %v5314 = vmax.f32 %v5313, %v5268
    %v5315 = vmax.f32 %v5314, %v5269
    %v5316 = vrot.slane %v5315, 4
    %v5317 = vmax.f32 %v5315, %v5316
    %v5318 = vrot.slane %v5317, 2
    %v5319 = vmax.f32 %v5317, %v5318
    %v5320 = vrot.slane %v5319, 1
    %v5321 = vmax.f32 %v5319, %v5320
    %v5322 = vmax.f32 %v5270, %v5271
    %v5323 = vmax.f32 %v5322, %v5272
    %v5324 = vmax.f32 %v5323, %v5273
    %v5325 = vrot.slane %v5324, 4
    %v5326 = vmax.f32 %v5324, %v5325
    %v5327 = vrot.slane %v5326, 2
    %v5328 = vmax.f32 %v5326, %v5327
    %v5329 = vrot.slane %v5328, 1
    %v5330 = vmax.f32 %v5328, %v5329
    %v5331 = vmax.f32 %v5274, %v5275
    %v5332 = vmax.f32 %v5331, %v5276
    %v5333 = vmax.f32 %v5332, %v5277
    %v5334 = vrot.slane %v5333, 4
    %v5335 = vmax.f32 %v5333, %v5334
    %v5336 = vrot.slane %v5335, 2
    %v5337 = vmax.f32 %v5335, %v5336
    %v5338 = vrot.slane %v5337, 1
    %v5339 = vmax.f32 %v5337, %v5338
    %v5340 = vmax.f32 %v5278, %v5279
    %v5341 = vmax.f32 %v5340, %v5280
    %v5342 = vmax.f32 %v5341, %v5281
    %v5343 = vrot.slane %v5342, 4
    %v5344 = vmax.f32 %v5342, %v5343
    %v5345 = vrot.slane %v5344, 2
    %v5346 = vmax.f32 %v5344, %v5345
    %v5347 = vrot.slane %v5346, 1
    %v5348 = vmax.f32 %v5346, %v5347
    %v5349 = vmax.f32 %v5282, %v5283
    %v5350 = vmax.f32 %v5349, %v5284
    %v5351 = vmax.f32 %v5350, %v5285
    %v5352 = vrot.slane %v5351, 4
    %v5353 = vmax.f32 %v5351, %v5352
    %v5354 = vrot.slane %v5353, 2
    %v5355 = vmax.f32 %v5353, %v5354
    %v5356 = vrot.slane %v5355, 1
    %v5357 = vmax.f32 %v5355, %v5356
    %vm5366 = vcmask 1041409
    %v5367 = vsel %vm5366, %v5303, %v5294
    %vm5368 = vcmask 1042434
    %v5369 = vsel %vm5368, %v5312, %v5367
    %vm5370 = vcmask 1043459
    %v5371 = vsel %vm5370, %v5321, %v5369
    %vm5372 = vcmask 1044484
    %v5373 = vsel %vm5372, %v5330, %v5371
    %vm5374 = vcmask 1045509
    %v5375 = vsel %vm5374, %v5339, %v5373
    %vm5376 = vcmask 1046534
    %v5377 = vsel %vm5376, %v5348, %v5375
    %vm5378 = vcmask 1047559
    %v5379 = vsel %vm5378, %v5357, %v5377
    %5381 = vst [vmem:[#allocation10] sm:$0xff] %v5379
    // Predicated region
    $region46: #{tpu_custom_call.1} parent=1 // pred_check
      _
    $region47: #{tpu_custom_call.1} parent=1 // pred_check_branch
      %5383 = sbr.rel (0) target = $region49
    $region48: #{tpu_custom_call.1} parent=1 // pred_region
      %s5385 = ssub.s32 128, 128
      %5386 = vsyncadd [#allocation6], %s5385
      %s5388 = sshll.u32 [#allocation10], 4
      %s5389 = int_to_ptr.vmem [resolvable:$true] %s5388
      %5391 = dma.vmem_to_hbm [thread:$0]  %s5389, 128, %s8, [#allocation6]
    $region49: #{tpu_custom_call.1} parent=1 // pred_fallthru
      _
    // Predicated region
    $region50: #{tpu_custom_call.1} parent=1 // pred_check
      _
    $region51: #{tpu_custom_call.1} parent=1 // pred_check_branch
      %5393 = sbr.rel (0) target = $region53
    $region52: #{tpu_custom_call.1} parent=1 // pred_region
      %5394 = dma.done [#allocation6], 128
    $region53: #{tpu_custom_call.1} parent=1 // pred_fallthru
      _
    %5395 = vsyncpa [#allocation5], 1
    %5396 = vsyncpa [#allocation8], 1
    %5397 = vsyncpa [#allocation6], 1

</llo_original>
